<compile_context>
chip_gen: v7x
topology: tpu7x:2x2x1
jax: 0.10.0
libtpu: 0.0.40
codegen_flags: <defaults>
</compile_context>

<pallas_src>
import functools

import jax
import jax.numpy as jnp
from jax import lax
from jax.experimental import pallas as pl
from jax.experimental.pallas import tpu as pltpu

LANE = 128
_EPS = 1e-5
_VMEM_LIMIT = 64 * 1024 * 1024


def _round_up(x, m):
    return (x + m - 1) // m * m


# ----------------------------- in-kernel math helpers -----------------------------

def _erf(x):
    # Abramowitz & Stegun 7.1.26 (|err| ~ 1.5e-7) == exact (erf) PyTorch nn.GELU().
    # Divide replaced by the EUP approximate reciprocal (frees VALU slots).
    p = 0.3275911
    a1, a2, a3, a4, a5 = 0.254829592, -0.284496736, 1.421413741, -1.453152027, 1.061405429
    sgn = jnp.where(x >= 0.0, 1.0, -1.0)
    ax = jnp.abs(x)
    t = pl.reciprocal(1.0 + p * ax, approx=True)
    poly = ((((a5 * t + a4) * t + a3) * t + a2) * t + a1) * t
    return sgn * (1.0 - poly * jnp.exp(-ax * ax))


def _gelu(x):
    return 0.5 * x * (1.0 + _erf(x * 0.7071067811865476))


# ------------------------------------ pass 1 ---------------------------------------
# conv1 (3x3 s2) and skip conv (3x3 s2) as im2col matmuls + BN1 partial statistics.

def _pass1_kernel(p_ref, w1_ref, b1_ref, ws_ref, bs_ref, y1_ref, ys_ref, st_ref):
    p = p_ref[...]                                                   # (TR, 9*Cin) bf16
    y1 = jnp.dot(p, w1_ref[...], preferred_element_type=jnp.float32) + b1_ref[...]
    ys = jnp.dot(p, ws_ref[...], preferred_element_type=jnp.float32) + bs_ref[...]
    y1_ref[...] = y1
    ys_ref[...] = ys
    s = jnp.sum(y1, axis=0, keepdims=True)                           # (1, Cp)
    q = jnp.sum(y1 * y1, axis=0, keepdims=True)
    st_ref[...] = jnp.concatenate([s, q], axis=0).reshape(1, 2, y1.shape[-1])


# ------------------------------------ pass 2 ---------------------------------------
# BN1 + GELU, then conv2 (3x3 s1 p1) as ONE fused big-K matmul, + BN2 partial stats.

def _make_pass2_kernel(TH, W2, Cp):
    def kernel(cur_ref, prev_ref, nxt_ref, sc1_ref, sh1_ref, w2_ref, b2_ref,
               y2_ref, st_ref, pad_ref):
        h = pl.program_id(1)
        n_h = pl.num_programs(1)
        sc1 = sc1_ref[...]                                           # (1, Cp)
        sh1 = sh1_ref[...]

        def bn1_gelu(v):                                             # v: (rows, Cp) f32
            return _gelu(v * sc1 + sh1)

        a_int = bn1_gelu(cur_ref[...].reshape(TH * W2, Cp)).reshape(TH, W2, Cp)
        prev = bn1_gelu(prev_ref[...].reshape(W2, Cp))
        nxt = bn1_gelu(nxt_ref[...].reshape(W2, Cp))
        # zero the halo rows at the image top / bottom boundaries
        prev = prev * (h > 0).astype(jnp.float32)
        nxt = nxt * (h < n_h - 1).astype(jnp.float32)

        # halo-only zeroing of the padded scratch (left/right columns); the interior
        # and the top/bottom halo rows are fully overwritten below.
        zcol = jnp.zeros((TH + 2, 1, Cp), jnp.float32)
        pad_ref[:, 0:1, :] = zcol
        pad_ref[:, W2 + 1:W2 + 2, :] = zcol
        pad_ref[0:1, 1:W2 + 1, :] = prev.reshape(1, W2, Cp)
        pad_ref[TH + 1:TH + 2, 1:W2 + 1, :] = nxt.reshape(1, W2, Cp)
        pad_ref[1:TH + 1, 1:W2 + 1, :] = a_int

        # conv2 as a single matmul: im2col slab (TH*W2, 9*Cp) @ (9*Cp, Cp)
        taps = [pad_ref[kh:kh + TH, kw:kw + W2, :].reshape(TH * W2, Cp)
                .astype(jnp.bfloat16)
                for kh in range(3) for kw in range(3)]
        slab = jnp.concatenate(taps, axis=-1)                        # (TH*W2, 9*Cp) bf16
        y2 = jnp.dot(slab, w2_ref[...], preferred_element_type=jnp.float32) + b2_ref[...]

        y2_ref[...] = y2.reshape(1, TH, W2, Cp)
        s = jnp.sum(y2, axis=0, keepdims=True)
        q = jnp.sum(y2 * y2, axis=0, keepdims=True)
        st_ref[...] = jnp.concatenate([s, q], axis=0).reshape(1, 1, 2, Cp)

    return kernel


# ------------------------------------ pass 3 ---------------------------------------
# BN2 normalize + residual/skip add + final GELU.

def _pass3_kernel(y2_ref, ys_ref, sc2_ref, sh2_ref, o_ref):
    y2n = y2_ref[...] * sc2_ref[...] + sh2_ref[...]
    o_ref[...] = _gelu(y2n + ys_ref[...])


# ------------------------------------ wrapper --------------------------------------

@functools.partial(jax.jit, static_argnames=("target_rows",))
def skipmodule_forward(x_nchw, params, *, target_rows=512):
    f32 = jnp.float32
    N, Cin, H, W = x_nchw.shape
    Cmid = params["w1"].shape[0]
    H2 = (H - 1) // 2 + 1
    W2 = (W - 1) // 2 + 1
    R = N * H2 * W2
    K1 = 9 * Cin
    Cp = _round_up(Cmid, LANE)

    # --- row tiling for passes 1/3: largest divisor of R that is a multiple of 8 ---
    TR = R
    cap = max(8, min(R, target_rows))
    for d in range(8, cap + 1, 8):
        if R % d == 0:
            TR = d
    nRT = R // TR

    # --- image-row tiling for pass 2: TH divides H2, TH*W2 rows per tile ---
    TH = 1
    for d in range(1, H2 + 1):
        if H2 % d == 0 and d * W2 <= max(target_rows, W2):
            TH = d
    nH = H2 // TH

    # ---- im2col for the two stride-2 convs (tap-major, channel-minor), cast bf16 ----
    # TODO(synk): fold this im2col into pass 1 (stride-2 halo reads in-kernel) to kill
    # the extra HBM round trip of the patch tensor.
    x = jnp.transpose(x_nchw, (0, 2, 3, 1)).astype(f32)              # NCHW -> NHWC
    xp = jnp.pad(x, ((0, 0), (1, 1), (1, 1), (0, 0)))
    cols = [xp[:, kh:kh + 2 * H2:2, kw:kw + 2 * W2:2, :]
            for kh in range(3) for kw in range(3)]
    patches = jnp.concatenate(cols, axis=-1).reshape(R, K1).astype(jnp.bfloat16)

    # ---- weights / BN params, output channels padded to the 128-lane vreg width ----
    def conv_w(w):                       # (Co, Ci, 3, 3) -> (9*Ci, Cp) bf16
        co, ci = w.shape[0], w.shape[1]
        wf = jnp.transpose(w, (2, 3, 1, 0)).reshape(9 * ci, co)
        return jnp.pad(wf, ((0, 0), (0, Cp - co))).astype(jnp.bfloat16)

    def rowp(v):                         # (Cmid,) -> (1, Cp) f32, zero padded
        return jnp.pad(v.astype(f32), (0, Cp - v.shape[0])).reshape(1, Cp)

    w1f = conv_w(params["w1"])
    wsf = conv_w(params["ws"])
    w2t = jnp.transpose(params["w2"], (2, 3, 1, 0))                  # (3,3,Ci,Co)
    w2t = jnp.pad(w2t, ((0, 0), (0, 0), (0, Cp - Cmid), (0, Cp - Cmid)))
    w2f = w2t.reshape(9 * Cp, Cp).astype(jnp.bfloat16)

    b1r, bsr, b2r = rowp(params["b1"]), rowp(params["bs"]), rowp(params["b2"])
    g1r, be1r = rowp(params["g1"]), rowp(params["be1"])
    g2r, be2r = rowp(params["g2"]), rowp(params["be2"])

    cp1 = pltpu.CompilerParams(dimension_semantics=("parallel",),
                               vmem_limit_bytes=_VMEM_LIMIT)
    cp2 = pltpu.CompilerParams(dimension_semantics=("parallel", "parallel"),
                               vmem_limit_bytes=_VMEM_LIMIT)

    # ---------------------------------- pass 1 ----------------------------------
    y1, ys, st1 = pl.pallas_call(
        _pass1_kernel,
        out_shape=(jax.ShapeDtypeStruct((R, Cp), f32),
                   jax.ShapeDtypeStruct((R, Cp), f32),
                   jax.ShapeDtypeStruct((nRT, 2, Cp), f32)),
        grid_spec=pltpu.PrefetchScalarGridSpec(
            num_scalar_prefetch=0,
            grid=(nRT,),
            in_specs=[
                pl.BlockSpec((TR, K1), lambda i: (i, 0)),
                pl.BlockSpec((K1, Cp), lambda i: (0, 0)),
                pl.BlockSpec((1, Cp), lambda i: (0, 0)),
                pl.BlockSpec((K1, Cp), lambda i: (0, 0)),
                pl.BlockSpec((1, Cp), lambda i: (0, 0)),
            ],
            out_specs=[
                pl.BlockSpec((TR, Cp), lambda i: (i, 0)),
                pl.BlockSpec((TR, Cp), lambda i: (i, 0)),
                pl.BlockSpec((1, 2, Cp), lambda i: (i, 0, 0)),
            ]),
        compiler_params=cp1,
    )(patches, w1f, b1r, wsf, bsr)

    # tiny per-channel BN math (pure XLA glue)
    def bn_affine(s_row, q_row, g_row, be_row):
        m = s_row / float(R)
        v = jnp.maximum(q_row / float(R) - m * m, 0.0)
        scale = g_row * lax.rsqrt(v + _EPS)
        shift = be_row - m * scale
        return scale, shift

    sc1, sh1 = bn_affine(jnp.sum(st1[:, 0, :], axis=0, keepdims=True),
                         jnp.sum(st1[:, 1, :], axis=0, keepdims=True), g1r, be1r)

    # ---------------------------------- pass 2 ----------------------------------
    y1_4d = y1.reshape(N, H2, W2, Cp)
    y2_4d, st2 = pl.pallas_call(
        _make_pass2_kernel(TH, W2, Cp),
        out_shape=(jax.ShapeDtypeStruct((N, H2, W2, Cp), f32),
                   jax.ShapeDtypeStruct((N, nH, 2, Cp), f32)),
        grid_spec=pltpu.PrefetchScalarGridSpec(
            num_scalar_prefetch=0,
            grid=(N, nH),
            in_specs=[
                pl.BlockSpec((1, TH, W2, Cp), lambda n, h: (n, h, 0, 0)),
                pl.BlockSpec((1, 1, W2, Cp),
                             lambda n, h: (n, jnp.maximum(h * TH - 1, 0), 0, 0)),
                pl.BlockSpec((1, 1, W2, Cp),
                             lambda n, h: (n, jnp.minimum((h + 1) * TH, H2 - 1), 0, 0)),
                pl.BlockSpec((1, Cp), lambda n, h: (0, 0)),
                pl.BlockSpec((1, Cp), lambda n, h: (0, 0)),
                pl.BlockSpec((9 * Cp, Cp), lambda n, h: (0, 0)),
                pl.BlockSpec((1, Cp), lambda n, h: (0, 0)),
            ],
            out_specs=[
                pl.BlockSpec((1, TH, W2, Cp), lambda n, h: (n, h, 0, 0)),
                pl.BlockSpec((1, 1, 2, Cp), lambda n, h: (n, h, 0, 0)),
            ],
            scratch_shapes=[pltpu.VMEM((TH + 2, W2 + 2, Cp), f32)]),
        compiler_params=cp2,
    )(y1_4d, y1_4d, y1_4d, sc1, sh1, w2f, b2r)

    sc2, sh2 = bn_affine(jnp.sum(st2[:, :, 0, :], axis=(0, 1)).reshape(1, Cp),
                         jnp.sum(st2[:, :, 1, :], axis=(0, 1)).reshape(1, Cp), g2r, be2r)

    # ---------------------------------- pass 3 ----------------------------------
    out2d = pl.pallas_call(
        _pass3_kernel,
        out_shape=jax.ShapeDtypeStruct((R, Cp), f32),
        grid_spec=pltpu.PrefetchScalarGridSpec(
            num_scalar_prefetch=0,
            grid=(nRT,),
            in_specs=[
                pl.BlockSpec((TR, Cp), lambda i: (i, 0)),
                pl.BlockSpec((TR, Cp), lambda i: (i, 0)),
                pl.BlockSpec((1, Cp), lambda i: (0, 0)),
                pl.BlockSpec((1, Cp), lambda i: (0, 0)),
            ],
            out_specs=pl.BlockSpec((TR, Cp), lambda i: (i, 0))),
        compiler_params=cp1,
    )(y2_4d.reshape(R, Cp), ys, sc2, sh2)

    out = out2d.reshape(N, H2, W2, Cp)[..., :Cmid]
    return jnp.transpose(out, (0, 3, 1, 2))                          # back to NCHW


# ----------------------------- pure-JAX reference check ----------------------------

def _ref_forward(x, p):
    def conv(t, w, b, s):
        y = lax.conv_general_dilated(t, w, (s, s), ((1, 1), (1, 1)),
                                     dimension_numbers=("NCHW", "OIHW", "NCHW"))
        return y + b[None, :, None, None]

    def bn(y, g, b, eps=1e-5):
        m = y.mean(axis=(0, 2, 3), keepdims=True)
        v = ((y - m) ** 2).mean(axis=(0, 2, 3), keepdims=True)
        return (y - m) * lax.rsqrt(v + eps) * g[None, :, None, None] + b[None, :, None, None]

    gelu = lambda t: jax.nn.gelu(t, approximate=False)
    r = conv(x, p["w1"], p["b1"], 2)
    r = gelu(bn(r, p["g1"], p["be1"]))
    r = conv(r, p["w2"], p["b2"], 1)
    r = bn(r, p["g2"], p["be2"])
    s = conv(x, p["ws"], p["bs"], 2)
    return gelu(r + s)


if __name__ == "__main__":
    key = jax.random.PRNGKey(0)
    N, Cin, Cmid, H, W = 2, 4, 8, 16, 16
    ks = jax.random.split(key, 7)
    params = {
        "w1": 0.2 * jax.random.normal(ks[0], (Cmid, Cin, 3, 3), jnp.float32),
        "b1": 0.1 * jax.random.normal(ks[1], (Cmid,), jnp.float32),
        "g1": jnp.ones((Cmid,), jnp.float32),
        "be1": jnp.zeros((Cmid,), jnp.float32),
        "w2": 0.2 * jax.random.normal(ks[2], (Cmid, Cmid, 3, 3), jnp.float32),
        "b2": 0.1 * jax.random.normal(ks[3], (Cmid,), jnp.float32),
        "g2": jnp.ones((Cmid,), jnp.float32),
        "be2": jnp.zeros((Cmid,), jnp.float32),
        "ws": 0.2 * jax.random.normal(ks[4], (Cmid, Cin, 3, 3), jnp.float32),
        "bs": 0.1 * jax.random.normal(ks[5], (Cmid,), jnp.float32),
    }
    x = jax.random.normal(ks[6], (N, Cin, H, W), jnp.float32)

    # small target_rows so the test exercises multi-tile grids, cross-tile BN stats
    # accumulation and the conv2 halo-row path.
    out = jax.block_until_ready(skipmodule_forward(x, params, target_rows=32))
    ref = jax.block_until_ready(_ref_forward(x, params))
    assert out.shape == (N, Cmid, H // 2, W // 2), out.shape
    err = float(jnp.max(jnp.abs(out - ref)))
    if err > 2e-2:
        raise SystemExit(f"mismatch vs reference: max abs err {err}")
    print("KERNEL_OK")
</pallas_src>

<mosaic_0001>
module attributes {stable_mosaic.version = 11 : i64} {
  func.func @_pass1_kernel(%arg0: i32, %arg1: memref<32x36xbf16, #tpu.memory_space<vmem>>, %arg2: memref<36x128xbf16, #tpu.memory_space<vmem>>, %arg3: memref<1x128xf32, #tpu.memory_space<vmem>>, %arg4: memref<36x128xbf16, #tpu.memory_space<vmem>>, %arg5: memref<1x128xf32, #tpu.memory_space<vmem>>, %arg6: memref<32x128xf32, #tpu.memory_space<vmem>>, %arg7: memref<32x128xf32, #tpu.memory_space<vmem>>, %arg8: memref<1x2x128xf32, #tpu.memory_space<vmem>>) attributes {dimension_semantics = [#tpu.dimension_semantics<parallel>], iteration_bounds = array<i64: 4>, scalar_prefetch = 0 : i64, scratch_operands = 0 : i64, tpu.core_type = #tpu.core_type<tc>, window_params = [{transform_indices = @transform_0, window_bounds = array<i64: 32, 36>}, {pipeline_mode = #tpu.pipeline_mode<synchronous>, transform_indices = @transform_1, window_bounds = array<i64: 36, 128>}, {pipeline_mode = #tpu.pipeline_mode<synchronous>, transform_indices = @transform_2, window_bounds = array<i64: 1, 128>}, {pipeline_mode = #tpu.pipeline_mode<synchronous>, transform_indices = @transform_3, window_bounds = array<i64: 36, 128>}, {pipeline_mode = #tpu.pipeline_mode<synchronous>, transform_indices = @transform_4, window_bounds = array<i64: 1, 128>}, {transform_indices = @transform_5, window_bounds = array<i64: 32, 128>}, {transform_indices = @transform_6, window_bounds = array<i64: 32, 128>}, {transform_indices = @transform_7, window_bounds = array<i64: 1, 2, 128>}]} {
    %c0 = arith.constant 0 : index
    %c0_0 = arith.constant 0 : index
    %0 = vector.load %arg1[%c0, %c0_0] : memref<32x36xbf16, #tpu.memory_space<vmem>>, vector<32x36xbf16>
    %c0_1 = arith.constant 0 : index
    %c0_2 = arith.constant 0 : index
    %1 = vector.load %arg2[%c0_1, %c0_2] : memref<36x128xbf16, #tpu.memory_space<vmem>>, vector<36x128xbf16>
    %cst = arith.constant dense<0.000000e+00> : vector<32x128xf32>
    %2 = tpu.matmul %0, %1, %cst {dimension_numbers = #tpu.dot_dimension_numbers<[1], [0], [0], [1], [0, 0, 1, 1], [], []>} : vector<32x36xbf16>, vector<36x128xbf16>, vector<32x128xf32> -> vector<32x128xf32>
    %c0_3 = arith.constant 0 : index
    %c0_4 = arith.constant 0 : index
    %3 = vector.load %arg3[%c0_3, %c0_4] : memref<1x128xf32, #tpu.memory_space<vmem>>, vector<1x128xf32>
    %4 = vector.broadcast %3 : vector<1x128xf32> to vector<32x128xf32>
    %5 = arith.addf %2, %4 : vector<32x128xf32>
    %c0_5 = arith.constant 0 : index
    %c0_6 = arith.constant 0 : index
    %6 = vector.load %arg4[%c0_5, %c0_6] : memref<36x128xbf16, #tpu.memory_space<vmem>>, vector<36x128xbf16>
    %cst_7 = arith.constant dense<0.000000e+00> : vector<32x128xf32>
    %7 = tpu.matmul %0, %6, %cst_7 {dimension_numbers = #tpu.dot_dimension_numbers<[1], [0], [0], [1], [0, 0, 1, 1], [], []>} : vector<32x36xbf16>, vector<36x128xbf16>, vector<32x128xf32> -> vector<32x128xf32>
    %c0_8 = arith.constant 0 : index
    %c0_9 = arith.constant 0 : index
    %8 = vector.load %arg5[%c0_8, %c0_9] : memref<1x128xf32, #tpu.memory_space<vmem>>, vector<1x128xf32>
    %9 = vector.broadcast %8 : vector<1x128xf32> to vector<32x128xf32>
    %10 = arith.addf %7, %9 : vector<32x128xf32>
    %c0_10 = arith.constant 0 : index
    %c0_11 = arith.constant 0 : index
    %11 = vector.load %arg6[%c0_10, %c0_11] : memref<32x128xf32, #tpu.memory_space<vmem>>, vector<32x128xf32>
    tpu.vector_store %arg6[%c0_10, %c0_11], %5 {strides = array<i32>} : memref<32x128xf32, #tpu.memory_space<vmem>>, vector<32x128xf32>,
    %c0_12 = arith.constant 0 : index
    %c0_13 = arith.constant 0 : index
    %12 = vector.load %arg7[%c0_12, %c0_13] : memref<32x128xf32, #tpu.memory_space<vmem>>, vector<32x128xf32>
    tpu.vector_store %arg7[%c0_12, %c0_13], %10 {strides = array<i32>} : memref<32x128xf32, #tpu.memory_space<vmem>>, vector<32x128xf32>,
    %cst_14 = arith.constant dense<0.000000e+00> : vector<128xf32>
    %13 = vector.multi_reduction <add>, %5, %cst_14 [0] : vector<32x128xf32> to vector<128xf32>
    %14 = vector.shape_cast %13 : vector<128xf32> to vector<1x128xf32>
    %15 = arith.mulf %5, %5 : vector<32x128xf32>
    %cst_15 = arith.constant dense<0.000000e+00> : vector<128xf32>
    %16 = vector.multi_reduction <add>, %15, %cst_15 [0] : vector<32x128xf32> to vector<128xf32>
    %17 = vector.shape_cast %16 : vector<128xf32> to vector<1x128xf32>
    %18 = tpu.concatenate %14, %17 in 0 : vector<1x128xf32>, vector<1x128xf32> -> vector<2x128xf32>
    %19 = vector.shape_cast %18 : vector<2x128xf32> to vector<1x2x128xf32>
    %c0_16 = arith.constant 0 : index
    %c0_17 = arith.constant 0 : index
    %c0_18 = arith.constant 0 : index
    %20 = vector.load %arg8[%c0_16, %c0_17, %c0_18] : memref<1x2x128xf32, #tpu.memory_space<vmem>>, vector<1x2x128xf32>
    tpu.vector_store %arg8[%c0_16, %c0_17, %c0_18], %19 {strides = array<i32>} : memref<1x2x128xf32, #tpu.memory_space<vmem>>, vector<1x2x128xf32>,
    return
  }
  func.func @transform_0(%arg0: i32) -> (i32, i32) {
    %c0_i32 = arith.constant 0 : i32
    %c0_i32_0 = arith.constant 0 : i32
    return %arg0, %c0_i32 : i32, i32
  }
  func.func @transform_1(%arg0: i32) -> (i32, i32) {
    %c0_i32 = arith.constant 0 : i32
    %c0_i32_0 = arith.constant 0 : i32
    %c0_i32_1 = arith.constant 0 : i32
    return %c0_i32, %c0_i32_0 : i32, i32
  }
  func.func @transform_2(%arg0: i32) -> (i32, i32) {
    %c0_i32 = arith.constant 0 : i32
    %c0_i32_0 = arith.constant 0 : i32
    %c0_i32_1 = arith.constant 0 : i32
    return %c0_i32, %c0_i32_0 : i32, i32
  }
  func.func @transform_3(%arg0: i32) -> (i32, i32) {
    %c0_i32 = arith.constant 0 : i32
    %c0_i32_0 = arith.constant 0 : i32
    %c0_i32_1 = arith.constant 0 : i32
    return %c0_i32, %c0_i32_0 : i32, i32
  }
  func.func @transform_4(%arg0: i32) -> (i32, i32) {
    %c0_i32 = arith.constant 0 : i32
    %c0_i32_0 = arith.constant 0 : i32
    %c0_i32_1 = arith.constant 0 : i32
    return %c0_i32, %c0_i32_0 : i32, i32
  }
  func.func @transform_5(%arg0: i32) -> (i32, i32) {
    %c0_i32 = arith.constant 0 : i32
    %c0_i32_0 = arith.constant 0 : i32
    return %arg0, %c0_i32 : i32, i32
  }
  func.func @transform_6(%arg0: i32) -> (i32, i32) {
    %c0_i32 = arith.constant 0 : i32
    %c0_i32_0 = arith.constant 0 : i32
    return %arg0, %c0_i32 : i32, i32
  }
  func.func @transform_7(%arg0: i32) -> (i32, i32, i32) {
    %c0_i32 = arith.constant 0 : i32
    %c0_i32_0 = arith.constant 0 : i32
    %c0_i32_1 = arith.constant 0 : i32
    return %arg0, %c0_i32, %c0_i32_0 : i32, i32, i32
  }
}

module attributes {stable_mosaic.version = 11 : i64} {
  func.func @_pass3_kernel(%arg0: i32, %arg1: memref<32x128xf32, #tpu.memory_space<vmem>>, %arg2: memref<32x128xf32, #tpu.memory_space<vmem>>, %arg3: memref<1x128xf32, #tpu.memory_space<vmem>>, %arg4: memref<1x128xf32, #tpu.memory_space<vmem>>, %arg5: memref<32x128xf32, #tpu.memory_space<vmem>>) attributes {dimension_semantics = [#tpu.dimension_semantics<parallel>], iteration_bounds = array<i64: 4>, scalar_prefetch = 0 : i64, scratch_operands = 0 : i64, tpu.core_type = #tpu.core_type<tc>, window_params = [{transform_indices = @transform_0, window_bounds = array<i64: 32, 128>}, {transform_indices = @transform_1, window_bounds = array<i64: 32, 128>}, {pipeline_mode = #tpu.pipeline_mode<synchronous>, transform_indices = @transform_2, window_bounds = array<i64: 1, 128>}, {pipeline_mode = #tpu.pipeline_mode<synchronous>, transform_indices = @transform_3, window_bounds = array<i64: 1, 128>}, {transform_indices = @transform_4, window_bounds = array<i64: 32, 128>}]} {
    %c0 = arith.constant 0 : index
    %c0_0 = arith.constant 0 : index
    %0 = vector.load %arg1[%c0, %c0_0] : memref<32x128xf32, #tpu.memory_space<vmem>>, vector<32x128xf32>
    %c0_1 = arith.constant 0 : index
    %c0_2 = arith.constant 0 : index
    %1 = vector.load %arg3[%c0_1, %c0_2] : memref<1x128xf32, #tpu.memory_space<vmem>>, vector<1x128xf32>
    %2 = vector.broadcast %1 : vector<1x128xf32> to vector<32x128xf32>
    %3 = arith.mulf %0, %2 : vector<32x128xf32>
    %c0_3 = arith.constant 0 : index
    %c0_4 = arith.constant 0 : index
    %4 = vector.load %arg4[%c0_3, %c0_4] : memref<1x128xf32, #tpu.memory_space<vmem>>, vector<1x128xf32>
    %5 = vector.broadcast %4 : vector<1x128xf32> to vector<32x128xf32>
    %6 = arith.addf %3, %5 : vector<32x128xf32>
    %c0_5 = arith.constant 0 : index
    %c0_6 = arith.constant 0 : index
    %7 = vector.load %arg2[%c0_5, %c0_6] : memref<32x128xf32, #tpu.memory_space<vmem>>, vector<32x128xf32>
    %8 = arith.addf %6, %7 : vector<32x128xf32>
    %cst = arith.constant 5.000000e-01 : f32
    %9 = vector.broadcast %cst : f32 to vector<32x128xf32>
    %10 = arith.mulf %9, %8 : vector<32x128xf32>
    %cst_7 = arith.constant 0.707106769 : f32
    %11 = vector.broadcast %cst_7 : f32 to vector<32x128xf32>
    %12 = arith.mulf %8, %11 : vector<32x128xf32>
    %cst_8 = arith.constant 0.000000e+00 : f32
    %13 = vector.broadcast %cst_8 : f32 to vector<32x128xf32>
    %14 = arith.cmpf oge, %12, %13 : vector<32x128xf32>
    %cst_9 = arith.constant 1.000000e+00 : f32
    %cst_10 = arith.constant -1.000000e+00 : f32
    %15 = vector.broadcast %cst_9 : f32 to vector<32x128xf32>
    %16 = vector.broadcast %cst_10 : f32 to vector<32x128xf32>
    %17 = arith.select %14, %15, %16 : vector<32x128xi1>, vector<32x128xf32>
    %18 = math.absf %12 : vector<32x128xf32>
    %cst_11 = arith.constant 0.327591091 : f32
    %19 = vector.broadcast %cst_11 : f32 to vector<32x128xf32>
    %20 = arith.mulf %19, %18 : vector<32x128xf32>
    %cst_12 = arith.constant 1.000000e+00 : f32
    %21 = vector.broadcast %cst_12 : f32 to vector<32x128xf32>
    %22 = arith.addf %21, %20 : vector<32x128xf32>
    %23 = tpu.reciprocal %22 {approx = true} : vector<32x128xf32> -> vector<32x128xf32>
    %cst_13 = arith.constant 1.06140542 : f32
    %24 = vector.broadcast %cst_13 : f32 to vector<32x128xf32>
    %25 = arith.mulf %24, %23 : vector<32x128xf32>
    %cst_14 = arith.constant -1.45315206 : f32
    %26 = vector.broadcast %cst_14 : f32 to vector<32x128xf32>
    %27 = arith.addf %25, %26 : vector<32x128xf32>
    %28 = arith.mulf %27, %23 : vector<32x128xf32>
    %cst_15 = arith.constant 1.42141378 : f32
    %29 = vector.broadcast %cst_15 : f32 to vector<32x128xf32>
    %30 = arith.addf %28, %29 : vector<32x128xf32>
    %31 = arith.mulf %30, %23 : vector<32x128xf32>
    %cst_16 = arith.constant -0.284496725 : f32
    %32 = vector.broadcast %cst_16 : f32 to vector<32x128xf32>
    %33 = arith.addf %31, %32 : vector<32x128xf32>
    %34 = arith.mulf %33, %23 : vector<32x128xf32>
    %cst_17 = arith.constant 0.254829586 : f32
    %35 = vector.broadcast %cst_17 : f32 to vector<32x128xf32>
    %36 = arith.addf %34, %35 : vector<32x128xf32>
    %37 = arith.mulf %36, %23 : vector<32x128xf32>
    %cst_18 = arith.constant 0.000000e+00 : f32
    %38 = vector.broadcast %cst_18 : f32 to vector<32x128xf32>
    %39 = arith.subf %38, %18 : vector<32x128xf32>
    %40 = arith.mulf %39, %18 : vector<32x128xf32>
    %41 = math.exp %40 : vector<32x128xf32>
    %42 = arith.mulf %37, %41 : vector<32x128xf32>
    %cst_19 = arith.constant 1.000000e+00 : f32
    %43 = vector.broadcast %cst_19 : f32 to vector<32x128xf32>
    %44 = arith.subf %43, %42 : vector<32x128xf32>
    %45 = arith.mulf %17, %44 : vector<32x128xf32>
    %cst_20 = arith.constant 1.000000e+00 : f32
    %46 = vector.broadcast %cst_20 : f32 to vector<32x128xf32>
    %47 = arith.addf %46, %45 : vector<32x128xf32>
    %48 = arith.mulf %10, %47 : vector<32x128xf32>
    %c0_21 = arith.constant 0 : index
    %c0_22 = arith.constant 0 : index
    %49 = vector.load %arg5[%c0_21, %c0_22] : memref<32x128xf32, #tpu.memory_space<vmem>>, vector<32x128xf32>
    tpu.vector_store %arg5[%c0_21, %c0_22], %48 {strides = array<i32>} : memref<32x128xf32, #tpu.memory_space<vmem>>, vector<32x128xf32>,
    return
  }
  func.func @transform_0(%arg0: i32) -> (i32, i32) {
    %c0_i32 = arith.constant 0 : i32
    %c0_i32_0 = arith.constant 0 : i32
    return %arg0, %c0_i32 : i32, i32
  }
  func.func @transform_1(%arg0: i32) -> (i32, i32) {
    %c0_i32 = arith.constant 0 : i32
    %c0_i32_0 = arith.constant 0 : i32
    return %arg0, %c0_i32 : i32, i32
  }
  func.func @transform_2(%arg0: i32) -> (i32, i32) {
    %c0_i32 = arith.constant 0 : i32
    %c0_i32_0 = arith.constant 0 : i32
    %c0_i32_1 = arith.constant 0 : i32
    return %c0_i32, %c0_i32_0 : i32, i32
  }
  func.func @transform_3(%arg0: i32) -> (i32, i32) {
    %c0_i32 = arith.constant 0 : i32
    %c0_i32_0 = arith.constant 0 : i32
    %c0_i32_1 = arith.constant 0 : i32
    return %c0_i32, %c0_i32_0 : i32, i32
  }
  func.func @transform_4(%arg0: i32) -> (i32, i32) {
    %c0_i32 = arith.constant 0 : i32
    %c0_i32_0 = arith.constant 0 : i32
    return %arg0, %c0_i32 : i32, i32
  }
}

module attributes {stable_mosaic.version = 11 : i64} {
  func.func @kernel(%arg0: i32, %arg1: i32, %arg2: memref<1x4x8x128xf32, #tpu.memory_space<vmem>>, %arg3: memref<1x1x8x128xf32, #tpu.memory_space<vmem>>, %arg4: memref<1x1x8x128xf32, #tpu.memory_space<vmem>>, %arg5: memref<1x128xf32, #tpu.memory_space<vmem>>, %arg6: memref<1x128xf32, #tpu.memory_space<vmem>>, %arg7: memref<1152x128xbf16, #tpu.memory_space<vmem>>, %arg8: memref<1x128xf32, #tpu.memory_space<vmem>>, %arg9: memref<1x4x8x128xf32, #tpu.memory_space<vmem>>, %arg10: memref<1x1x2x128xf32, #tpu.memory_space<vmem>>, %arg11: memref<6x10x128xf32, #tpu.memory_space<vmem>>) attributes {dimension_semantics = [#tpu.dimension_semantics<parallel>, #tpu.dimension_semantics<parallel>], iteration_bounds = array<i64: 2, 2>, scalar_prefetch = 0 : i64, scratch_operands = 1 : i64, tpu.core_type = #tpu.core_type<tc>, window_params = [{transform_indices = @transform_0, window_bounds = array<i64: 1, 4, 8, 128>}, {transform_indices = @transform_1, window_bounds = array<i64: 1, 1, 8, 128>}, {transform_indices = @transform_2, window_bounds = array<i64: 1, 1, 8, 128>}, {pipeline_mode = #tpu.pipeline_mode<synchronous>, transform_indices = @transform_3, window_bounds = array<i64: 1, 128>}, {pipeline_mode = #tpu.pipeline_mode<synchronous>, transform_indices = @transform_4, window_bounds = array<i64: 1, 128>}, {pipeline_mode = #tpu.pipeline_mode<synchronous>, transform_indices = @transform_5, window_bounds = array<i64: 1152, 128>}, {pipeline_mode = #tpu.pipeline_mode<synchronous>, transform_indices = @transform_6, window_bounds = array<i64: 1, 128>}, {transform_indices = @transform_7, window_bounds = array<i64: 1, 4, 8, 128>}, {transform_indices = @transform_8, window_bounds = array<i64: 1, 1, 2, 128>}]} {
    %c0 = arith.constant 0 : index
    %c0_0 = arith.constant 0 : index
    %0 = vector.load %arg5[%c0, %c0_0] : memref<1x128xf32, #tpu.memory_space<vmem>>, vector<1x128xf32>
    %c0_1 = arith.constant 0 : index
    %c0_2 = arith.constant 0 : index
    %1 = vector.load %arg6[%c0_1, %c0_2] : memref<1x128xf32, #tpu.memory_space<vmem>>, vector<1x128xf32>
    %c0_3 = arith.constant 0 : index
    %c0_4 = arith.constant 0 : index
    %c0_5 = arith.constant 0 : index
    %c0_6 = arith.constant 0 : index
    %2 = vector.load %arg2[%c0_3, %c0_4, %c0_5, %c0_6] : memref<1x4x8x128xf32, #tpu.memory_space<vmem>>, vector<1x4x8x128xf32>
    %3 = vector.shape_cast %2 : vector<1x4x8x128xf32> to vector<32x128xf32>
    %4 = vector.broadcast %0 : vector<1x128xf32> to vector<32x128xf32>
    %5 = arith.mulf %3, %4 : vector<32x128xf32>
    %6 = vector.broadcast %1 : vector<1x128xf32> to vector<32x128xf32>
    %7 = arith.addf %5, %6 : vector<32x128xf32>
    %cst = arith.constant 5.000000e-01 : f32
    %8 = vector.broadcast %cst : f32 to vector<32x128xf32>
    %9 = arith.mulf %8, %7 : vector<32x128xf32>
    %cst_7 = arith.constant 0.707106769 : f32
    %10 = vector.broadcast %cst_7 : f32 to vector<32x128xf32>
    %11 = arith.mulf %7, %10 : vector<32x128xf32>
    %cst_8 = arith.constant 0.000000e+00 : f32
    %12 = vector.broadcast %cst_8 : f32 to vector<32x128xf32>
    %13 = arith.cmpf oge, %11, %12 : vector<32x128xf32>
    %cst_9 = arith.constant 1.000000e+00 : f32
    %cst_10 = arith.constant -1.000000e+00 : f32
    %14 = vector.broadcast %cst_9 : f32 to vector<32x128xf32>
    %15 = vector.broadcast %cst_10 : f32 to vector<32x128xf32>
    %16 = arith.select %13, %14, %15 : vector<32x128xi1>, vector<32x128xf32>
    %17 = math.absf %11 : vector<32x128xf32>
    %cst_11 = arith.constant 0.327591091 : f32
    %18 = vector.broadcast %cst_11 : f32 to vector<32x128xf32>
    %19 = arith.mulf %18, %17 : vector<32x128xf32>
    %cst_12 = arith.constant 1.000000e+00 : f32
    %20 = vector.broadcast %cst_12 : f32 to vector<32x128xf32>
    %21 = arith.addf %20, %19 : vector<32x128xf32>
    %22 = tpu.reciprocal %21 {approx = true} : vector<32x128xf32> -> vector<32x128xf32>
    %cst_13 = arith.constant 1.06140542 : f32
    %23 = vector.broadcast %cst_13 : f32 to vector<32x128xf32>
    %24 = arith.mulf %23, %22 : vector<32x128xf32>
    %cst_14 = arith.constant -1.45315206 : f32
    %25 = vector.broadcast %cst_14 : f32 to vector<32x128xf32>
    %26 = arith.addf %24, %25 : vector<32x128xf32>
    %27 = arith.mulf %26, %22 : vector<32x128xf32>
    %cst_15 = arith.constant 1.42141378 : f32
    %28 = vector.broadcast %cst_15 : f32 to vector<32x128xf32>
    %29 = arith.addf %27, %28 : vector<32x128xf32>
    %30 = arith.mulf %29, %22 : vector<32x128xf32>
    %cst_16 = arith.constant -0.284496725 : f32
    %31 = vector.broadcast %cst_16 : f32 to vector<32x128xf32>
    %32 = arith.addf %30, %31 : vector<32x128xf32>
    %33 = arith.mulf %32, %22 : vector<32x128xf32>
    %cst_17 = arith.constant 0.254829586 : f32
    %34 = vector.broadcast %cst_17 : f32 to vector<32x128xf32>
    %35 = arith.addf %33, %34 : vector<32x128xf32>
    %36 = arith.mulf %35, %22 : vector<32x128xf32>
    %cst_18 = arith.constant 0.000000e+00 : f32
    %37 = vector.broadcast %cst_18 : f32 to vector<32x128xf32>
    %38 = arith.subf %37, %17 : vector<32x128xf32>
    %39 = arith.mulf %38, %17 : vector<32x128xf32>
    %40 = math.exp %39 : vector<32x128xf32>
    %41 = arith.mulf %36, %40 : vector<32x128xf32>
    %cst_19 = arith.constant 1.000000e+00 : f32
    %42 = vector.broadcast %cst_19 : f32 to vector<32x128xf32>
    %43 = arith.subf %42, %41 : vector<32x128xf32>
    %44 = arith.mulf %16, %43 : vector<32x128xf32>
    %cst_20 = arith.constant 1.000000e+00 : f32
    %45 = vector.broadcast %cst_20 : f32 to vector<32x128xf32>
    %46 = arith.addf %45, %44 : vector<32x128xf32>
    %47 = arith.mulf %9, %46 : vector<32x128xf32>
    %48 = vector.shape_cast %47 : vector<32x128xf32> to vector<4x8x128xf32>
    %c0_21 = arith.constant 0 : index
    %c0_22 = arith.constant 0 : index
    %c0_23 = arith.constant 0 : index
    %c0_24 = arith.constant 0 : index
    %49 = vector.load %arg3[%c0_21, %c0_22, %c0_23, %c0_24] : memref<1x1x8x128xf32, #tpu.memory_space<vmem>>, vector<1x1x8x128xf32>
    %50 = vector.shape_cast %49 : vector<1x1x8x128xf32> to vector<8x128xf32>
    %51 = vector.broadcast %0 : vector<1x128xf32> to vector<8x128xf32>
    %52 = arith.mulf %50, %51 : vector<8x128xf32>
    %53 = vector.broadcast %1 : vector<1x128xf32> to vector<8x128xf32>
    %54 = arith.addf %52, %53 : vector<8x128xf32>
    %cst_25 = arith.constant 5.000000e-01 : f32
    %55 = vector.broadcast %cst_25 : f32 to vector<8x128xf32>
    %56 = arith.mulf %55, %54 : vector<8x128xf32>
    %cst_26 = arith.constant 0.707106769 : f32
    %57 = vector.broadcast %cst_26 : f32 to vector<8x128xf32>
    %58 = arith.mulf %54, %57 : vector<8x128xf32>
    %cst_27 = arith.constant 0.000000e+00 : f32
    %59 = vector.broadcast %cst_27 : f32 to vector<8x128xf32>
    %60 = arith.cmpf oge, %58, %59 : vector<8x128xf32>
    %cst_28 = arith.constant 1.000000e+00 : f32
    %cst_29 = arith.constant -1.000000e+00 : f32
    %61 = vector.broadcast %cst_28 : f32 to vector<8x128xf32>
    %62 = vector.broadcast %cst_29 : f32 to vector<8x128xf32>
    %63 = arith.select %60, %61, %62 : vector<8x128xi1>, vector<8x128xf32>
    %64 = math.absf %58 : vector<8x128xf32>
    %cst_30 = arith.constant 0.327591091 : f32
    %65 = vector.broadcast %cst_30 : f32 to vector<8x128xf32>
    %66 = arith.mulf %65, %64 : vector<8x128xf32>
    %cst_31 = arith.constant 1.000000e+00 : f32
    %67 = vector.broadcast %cst_31 : f32 to vector<8x128xf32>
    %68 = arith.addf %67, %66 : vector<8x128xf32>
    %69 = tpu.reciprocal %68 {approx = true} : vector<8x128xf32> -> vector<8x128xf32>
    %cst_32 = arith.constant 1.06140542 : f32
    %70 = vector.broadcast %cst_32 : f32 to vector<8x128xf32>
    %71 = arith.mulf %70, %69 : vector<8x128xf32>
    %cst_33 = arith.constant -1.45315206 : f32
    %72 = vector.broadcast %cst_33 : f32 to vector<8x128xf32>
    %73 = arith.addf %71, %72 : vector<8x128xf32>
    %74 = arith.mulf %73, %69 : vector<8x128xf32>
    %cst_34 = arith.constant 1.42141378 : f32
    %75 = vector.broadcast %cst_34 : f32 to vector<8x128xf32>
    %76 = arith.addf %74, %75 : vector<8x128xf32>
    %77 = arith.mulf %76, %69 : vector<8x128xf32>
    %cst_35 = arith.constant -0.284496725 : f32
    %78 = vector.broadcast %cst_35 : f32 to vector<8x128xf32>
    %79 = arith.addf %77, %78 : vector<8x128xf32>
    %80 = arith.mulf %79, %69 : vector<8x128xf32>
    %cst_36 = arith.constant 0.254829586 : f32
    %81 = vector.broadcast %cst_36 : f32 to vector<8x128xf32>
    %82 = arith.addf %80, %81 : vector<8x128xf32>
    %83 = arith.mulf %82, %69 : vector<8x128xf32>
    %cst_37 = arith.constant 0.000000e+00 : f32
    %84 = vector.broadcast %cst_37 : f32 to vector<8x128xf32>
    %85 = arith.subf %84, %64 : vector<8x128xf32>
    %86 = arith.mulf %85, %64 : vector<8x128xf32>
    %87 = math.exp %86 : vector<8x128xf32>
    %88 = arith.mulf %83, %87 : vector<8x128xf32>
    %cst_38 = arith.constant 1.000000e+00 : f32
    %89 = vector.broadcast %cst_38 : f32 to vector<8x128xf32>
    %90 = arith.subf %89, %88 : vector<8x128xf32>
    %91 = arith.mulf %63, %90 : vector<8x128xf32>
    %cst_39 = arith.constant 1.000000e+00 : f32
    %92 = vector.broadcast %cst_39 : f32 to vector<8x128xf32>
    %93 = arith.addf %92, %91 : vector<8x128xf32>
    %94 = arith.mulf %56, %93 : vector<8x128xf32>
    %c0_40 = arith.constant 0 : index
    %c0_41 = arith.constant 0 : index
    %c0_42 = arith.constant 0 : index
    %c0_43 = arith.constant 0 : index
    %95 = vector.load %arg4[%c0_40, %c0_41, %c0_42, %c0_43] : memref<1x1x8x128xf32, #tpu.memory_space<vmem>>, vector<1x1x8x128xf32>
    %96 = vector.shape_cast %95 : vector<1x1x8x128xf32> to vector<8x128xf32>
    %97 = vector.broadcast %0 : vector<1x128xf32> to vector<8x128xf32>
    %98 = arith.mulf %96, %97 : vector<8x128xf32>
    %99 = vector.broadcast %1 : vector<1x128xf32> to vector<8x128xf32>
    %100 = arith.addf %98, %99 : vector<8x128xf32>
    %cst_44 = arith.constant 5.000000e-01 : f32
    %101 = vector.broadcast %cst_44 : f32 to vector<8x128xf32>
    %102 = arith.mulf %101, %100 : vector<8x128xf32>
    %cst_45 = arith.constant 0.707106769 : f32
    %103 = vector.broadcast %cst_45 : f32 to vector<8x128xf32>
    %104 = arith.mulf %100, %103 : vector<8x128xf32>
    %cst_46 = arith.constant 0.000000e+00 : f32
    %105 = vector.broadcast %cst_46 : f32 to vector<8x128xf32>
    %106 = arith.cmpf oge, %104, %105 : vector<8x128xf32>
    %cst_47 = arith.constant 1.000000e+00 : f32
    %cst_48 = arith.constant -1.000000e+00 : f32
    %107 = vector.broadcast %cst_47 : f32 to vector<8x128xf32>
    %108 = vector.broadcast %cst_48 : f32 to vector<8x128xf32>
    %109 = arith.select %106, %107, %108 : vector<8x128xi1>, vector<8x128xf32>
    %110 = math.absf %104 : vector<8x128xf32>
    %cst_49 = arith.constant 0.327591091 : f32
    %111 = vector.broadcast %cst_49 : f32 to vector<8x128xf32>
    %112 = arith.mulf %111, %110 : vector<8x128xf32>
    %cst_50 = arith.constant 1.000000e+00 : f32
    %113 = vector.broadcast %cst_50 : f32 to vector<8x128xf32>
    %114 = arith.addf %113, %112 : vector<8x128xf32>
    %115 = tpu.reciprocal %114 {approx = true} : vector<8x128xf32> -> vector<8x128xf32>
    %cst_51 = arith.constant 1.06140542 : f32
    %116 = vector.broadcast %cst_51 : f32 to vector<8x128xf32>
    %117 = arith.mulf %116, %115 : vector<8x128xf32>
    %cst_52 = arith.constant -1.45315206 : f32
    %118 = vector.broadcast %cst_52 : f32 to vector<8x128xf32>
    %119 = arith.addf %117, %118 : vector<8x128xf32>
    %120 = arith.mulf %119, %115 : vector<8x128xf32>
    %cst_53 = arith.constant 1.42141378 : f32
    %121 = vector.broadcast %cst_53 : f32 to vector<8x128xf32>
    %122 = arith.addf %120, %121 : vector<8x128xf32>
    %123 = arith.mulf %122, %115 : vector<8x128xf32>
    %cst_54 = arith.constant -0.284496725 : f32
    %124 = vector.broadcast %cst_54 : f32 to vector<8x128xf32>
    %125 = arith.addf %123, %124 : vector<8x128xf32>
    %126 = arith.mulf %125, %115 : vector<8x128xf32>
    %cst_55 = arith.constant 0.254829586 : f32
    %127 = vector.broadcast %cst_55 : f32 to vector<8x128xf32>
    %128 = arith.addf %126, %127 : vector<8x128xf32>
    %129 = arith.mulf %128, %115 : vector<8x128xf32>
    %cst_56 = arith.constant 0.000000e+00 : f32
    %130 = vector.broadcast %cst_56 : f32 to vector<8x128xf32>
    %131 = arith.subf %130, %110 : vector<8x128xf32>
    %132 = arith.mulf %131, %110 : vector<8x128xf32>
    %133 = math.exp %132 : vector<8x128xf32>
    %134 = arith.mulf %129, %133 : vector<8x128xf32>
    %cst_57 = arith.constant 1.000000e+00 : f32
    %135 = vector.broadcast %cst_57 : f32 to vector<8x128xf32>
    %136 = arith.subf %135, %134 : vector<8x128xf32>
    %137 = arith.mulf %109, %136 : vector<8x128xf32>
    %cst_58 = arith.constant 1.000000e+00 : f32
    %138 = vector.broadcast %cst_58 : f32 to vector<8x128xf32>
    %139 = arith.addf %138, %137 : vector<8x128xf32>
    %140 = arith.mulf %102, %139 : vector<8x128xf32>
    %c0_i32 = arith.constant 0 : i32
    %141 = arith.cmpi sgt, %arg1, %c0_i32 : i32
    %142 = arith.extui %141 : i1 to i32
    %143 = arith.sitofp %142 : i32 to f32
    %144 = vector.broadcast %143 : f32 to vector<8x128xf32>
    %145 = arith.mulf %94, %144 : vector<8x128xf32>
    %c1_i32 = arith.constant 1 : i32
    %146 = arith.cmpi slt, %arg1, %c1_i32 : i32
    %147 = arith.extui %146 : i1 to i32
    %148 = arith.sitofp %147 : i32 to f32
    %149 = vector.broadcast %148 : f32 to vector<8x128xf32>
    %150 = arith.mulf %140, %149 : vector<8x128xf32>
    %cst_59 = arith.constant 0.000000e+00 : f32
    %151 = vector.broadcast %cst_59 : f32 to vector<6x1x128xf32>
    %c0_60 = arith.constant 0 : index
    %c0_61 = arith.constant 0 : index
    %c0_62 = arith.constant 0 : index
    %152 = vector.load %arg11[%c0_60, %c0_61, %c0_62] : memref<6x10x128xf32, #tpu.memory_space<vmem>>, vector<6x1x128xf32>
    tpu.vector_store %arg11[%c0_60, %c0_61, %c0_62], %151 {strides = array<i32>} : memref<6x10x128xf32, #tpu.memory_space<vmem>>, vector<6x1x128xf32>,
    %c0_63 = arith.constant 0 : index
    %c9 = arith.constant 9 : index
    %c0_64 = arith.constant 0 : index
    %153 = vector.load %arg11[%c0_63, %c9, %c0_64] : memref<6x10x128xf32, #tpu.memory_space<vmem>>, vector<6x1x128xf32>
    tpu.vector_store %arg11[%c0_63, %c9, %c0_64], %151 {strides = array<i32>} : memref<6x10x128xf32, #tpu.memory_space<vmem>>, vector<6x1x128xf32>,
    %154 = vector.shape_cast %145 : vector<8x128xf32> to vector<1x8x128xf32>
    %c0_65 = arith.constant 0 : index
    %c1 = arith.constant 1 : index
    %c0_66 = arith.constant 0 : index
    %155 = vector.load %arg11[%c0_65, %c1, %c0_66] : memref<6x10x128xf32, #tpu.memory_space<vmem>>, vector<1x8x128xf32>
    tpu.vector_store %arg11[%c0_65, %c1, %c0_66], %154 {strides = array<i32>} : memref<6x10x128xf32, #tpu.memory_space<vmem>>, vector<1x8x128xf32>,
    %156 = vector.shape_cast %150 : vector<8x128xf32> to vector<1x8x128xf32>
    %c5 = arith.constant 5 : index
    %c1_67 = arith.constant 1 : index
    %c0_68 = arith.constant 0 : index
    %157 = vector.load %arg11[%c5, %c1_67, %c0_68] : memref<6x10x128xf32, #tpu.memory_space<vmem>>, vector<1x8x128xf32>
    tpu.vector_store %arg11[%c5, %c1_67, %c0_68], %156 {strides = array<i32>} : memref<6x10x128xf32, #tpu.memory_space<vmem>>, vector<1x8x128xf32>,
    %c1_69 = arith.constant 1 : index
    %c1_70 = arith.constant 1 : index
    %c0_71 = arith.constant 0 : index
    %158 = vector.load %arg11[%c1_69, %c1_70, %c0_71] : memref<6x10x128xf32, #tpu.memory_space<vmem>>, vector<4x8x128xf32>
    tpu.vector_store %arg11[%c1_69, %c1_70, %c0_71], %48 {strides = array<i32>} : memref<6x10x128xf32, #tpu.memory_space<vmem>>, vector<4x8x128xf32>,
    %c0_72 = arith.constant 0 : index
    %c0_73 = arith.constant 0 : index
    %c0_74 = arith.constant 0 : index
    %159 = vector.load %arg11[%c0_72, %c0_73, %c0_74] : memref<6x10x128xf32, #tpu.memory_space<vmem>>, vector<4x8x128xf32>
    %160 = vector.shape_cast %159 : vector<4x8x128xf32> to vector<32x128xf32>
    %161 = arith.truncf %160 : vector<32x128xf32> to vector<32x128xbf16>
    %c0_75 = arith.constant 0 : index
    %c1_76 = arith.constant 1 : index
    %c0_77 = arith.constant 0 : index
    %162 = vector.load %arg11[%c0_75, %c1_76, %c0_77] : memref<6x10x128xf32, #tpu.memory_space<vmem>>, vector<4x8x128xf32>
    %163 = vector.shape_cast %162 : vector<4x8x128xf32> to vector<32x128xf32>
    %164 = arith.truncf %163 : vector<32x128xf32> to vector<32x128xbf16>
    %c0_78 = arith.constant 0 : index
    %c2 = arith.constant 2 : index
    %c0_79 = arith.constant 0 : index
    %165 = vector.load %arg11[%c0_78, %c2, %c0_79] : memref<6x10x128xf32, #tpu.memory_space<vmem>>, vector<4x8x128xf32>
    %166 = vector.shape_cast %165 : vector<4x8x128xf32> to vector<32x128xf32>
    %167 = arith.truncf %166 : vector<32x128xf32> to vector<32x128xbf16>
    %c1_80 = arith.constant 1 : index
    %c0_81 = arith.constant 0 : index
    %c0_82 = arith.constant 0 : index
    %168 = vector.load %arg11[%c1_80, %c0_81, %c0_82] : memref<6x10x128xf32, #tpu.memory_space<vmem>>, vector<4x8x128xf32>
    %169 = vector.shape_cast %168 : vector<4x8x128xf32> to vector<32x128xf32>
    %170 = arith.truncf %169 : vector<32x128xf32> to vector<32x128xbf16>
    %c1_83 = arith.constant 1 : index
    %c1_84 = arith.constant 1 : index
    %c0_85 = arith.constant 0 : index
    %171 = vector.load %arg11[%c1_83, %c1_84, %c0_85] : memref<6x10x128xf32, #tpu.memory_space<vmem>>, vector<4x8x128xf32>
    %172 = vector.shape_cast %171 : vector<4x8x128xf32> to vector<32x128xf32>
    %173 = arith.truncf %172 : vector<32x128xf32> to vector<32x128xbf16>
    %c1_86 = arith.constant 1 : index
    %c2_87 = arith.constant 2 : index
    %c0_88 = arith.constant 0 : index
    %174 = vector.load %arg11[%c1_86, %c2_87, %c0_88] : memref<6x10x128xf32, #tpu.memory_space<vmem>>, vector<4x8x128xf32>
    %175 = vector.shape_cast %174 : vector<4x8x128xf32> to vector<32x128xf32>
    %176 = arith.truncf %175 : vector<32x128xf32> to vector<32x128xbf16>
    %c2_89 = arith.constant 2 : index
    %c0_90 = arith.constant 0 : index
    %c0_91 = arith.constant 0 : index
    %177 = vector.load %arg11[%c2_89, %c0_90, %c0_91] : memref<6x10x128xf32, #tpu.memory_space<vmem>>, vector<4x8x128xf32>
    %178 = vector.shape_cast %177 : vector<4x8x128xf32> to vector<32x128xf32>
    %179 = arith.truncf %178 : vector<32x128xf32> to vector<32x128xbf16>
    %c2_92 = arith.constant 2 : index
    %c1_93 = arith.constant 1 : index
    %c0_94 = arith.constant 0 : index
    %180 = vector.load %arg11[%c2_92, %c1_93, %c0_94] : memref<6x10x128xf32, #tpu.memory_space<vmem>>, vector<4x8x128xf32>
    %181 = vector.shape_cast %180 : vector<4x8x128xf32> to vector<32x128xf32>
    %182 = arith.truncf %181 : vector<32x128xf32> to vector<32x128xbf16>
    %c2_95 = arith.constant 2 : index
    %c2_96 = arith.constant 2 : index
    %c0_97 = arith.constant 0 : index
    %183 = vector.load %arg11[%c2_95, %c2_96, %c0_97] : memref<6x10x128xf32, #tpu.memory_space<vmem>>, vector<4x8x128xf32>
    %184 = vector.shape_cast %183 : vector<4x8x128xf32> to vector<32x128xf32>
    %185 = arith.truncf %184 : vector<32x128xf32> to vector<32x128xbf16>
    %186 = tpu.concatenate %161, %164, %167, %170, %173, %176, %179, %182, %185 in 1 : vector<32x128xbf16>, vector<32x128xbf16>, vector<32x128xbf16>, vector<32x128xbf16>, vector<32x128xbf16>, vector<32x128xbf16>, vector<32x128xbf16>, vector<32x128xbf16>, vector<32x128xbf16> -> vector<32x1152xbf16>
    %c0_98 = arith.constant 0 : index
    %c0_99 = arith.constant 0 : index
    %187 = vector.load %arg7[%c0_98, %c0_99] : memref<1152x128xbf16, #tpu.memory_space<vmem>>, vector<1152x128xbf16>
    %cst_100 = arith.constant dense<0.000000e+00> : vector<32x128xf32>
    %188 = tpu.matmul %186, %187, %cst_100 {dimension_numbers = #tpu.dot_dimension_numbers<[1], [0], [0], [1], [0, 0, 1, 1], [], []>} : vector<32x1152xbf16>, vector<1152x128xbf16>, vector<32x128xf32> -> vector<32x128xf32>
    %c0_101 = arith.constant 0 : index
    %c0_102 = arith.constant 0 : index
    %189 = vector.load %arg8[%c0_101, %c0_102] : memref<1x128xf32, #tpu.memory_space<vmem>>, vector<1x128xf32>
    %190 = vector.broadcast %189 : vector<1x128xf32> to vector<32x128xf32>
    %191 = arith.addf %188, %190 : vector<32x128xf32>
    %192 = vector.shape_cast %191 : vector<32x128xf32> to vector<1x4x8x128xf32>
    %c0_103 = arith.constant 0 : index
    %c0_104 = arith.constant 0 : index
    %c0_105 = arith.constant 0 : index
    %c0_106 = arith.constant 0 : index
    %193 = vector.load %arg9[%c0_103, %c0_104, %c0_105, %c0_106] : memref<1x4x8x128xf32, #tpu.memory_space<vmem>>, vector<1x4x8x128xf32>
    tpu.vector_store %arg9[%c0_103, %c0_104, %c0_105, %c0_106], %192 {strides = array<i32>} : memref<1x4x8x128xf32, #tpu.memory_space<vmem>>, vector<1x4x8x128xf32>,
    %cst_107 = arith.constant dense<0.000000e+00> : vector<128xf32>
    %194 = vector.multi_reduction <add>, %191, %cst_107 [0] : vector<32x128xf32> to vector<128xf32>
    %195 = vector.shape_cast %194 : vector<128xf32> to vector<1x128xf32>
    %196 = arith.mulf %191, %191 : vector<32x128xf32>
    %cst_108 = arith.constant dense<0.000000e+00> : vector<128xf32>
    %197 = vector.multi_reduction <add>, %196, %cst_108 [0] : vector<32x128xf32> to vector<128xf32>
    %198 = vector.shape_cast %197 : vector<128xf32> to vector<1x128xf32>
    %199 = tpu.concatenate %195, %198 in 0 : vector<1x128xf32>, vector<1x128xf32> -> vector<2x128xf32>
    %200 = vector.shape_cast %199 : vector<2x128xf32> to vector<1x1x2x128xf32>
    %c0_109 = arith.constant 0 : index
    %c0_110 = arith.constant 0 : index
    %c0_111 = arith.constant 0 : index
    %c0_112 = arith.constant 0 : index
    %201 = vector.load %arg10[%c0_109, %c0_110, %c0_111, %c0_112] : memref<1x1x2x128xf32, #tpu.memory_space<vmem>>, vector<1x1x2x128xf32>
    tpu.vector_store %arg10[%c0_109, %c0_110, %c0_111, %c0_112], %200 {strides = array<i32>} : memref<1x1x2x128xf32, #tpu.memory_space<vmem>>, vector<1x1x2x128xf32>,
    return
  }
  func.func @transform_0(%arg0: i32, %arg1: i32) -> (i32, i32, i32, i32) {
    %c0_i32 = arith.constant 0 : i32
    %c0_i32_0 = arith.constant 0 : i32
    %c0_i32_1 = arith.constant 0 : i32
    return %arg0, %arg1, %c0_i32, %c0_i32_0 : i32, i32, i32, i32
  }
  func.func @transform_1(%arg0: i32, %arg1: i32) -> (i32, i32, i32, i32) {
    %c4_i32 = arith.constant 4 : i32
    %0 = arith.muli %arg1, %c4_i32 : i32
    %c1_i32 = arith.constant 1 : i32
    %1 = arith.subi %0, %c1_i32 : i32
    %c0_i32 = arith.constant 0 : i32
    %2 = arith.maxsi %1, %c0_i32 : i32
    %c0_i32_0 = arith.constant 0 : i32
    %c0_i32_1 = arith.constant 0 : i32
    %c0_i32_2 = arith.constant 0 : i32
    return %arg0, %2, %c0_i32_0, %c0_i32_1 : i32, i32, i32, i32
  }
  func.func @transform_2(%arg0: i32, %arg1: i32) -> (i32, i32, i32, i32) {
    %c1_i32 = arith.constant 1 : i32
    %0 = arith.addi %arg1, %c1_i32 : i32
    %c4_i32 = arith.constant 4 : i32
    %1 = arith.muli %0, %c4_i32 : i32
    %c7_i32 = arith.constant 7 : i32
    %2 = arith.minsi %1, %c7_i32 : i32
    %c0_i32 = arith.constant 0 : i32
    %c0_i32_0 = arith.constant 0 : i32
    %c0_i32_1 = arith.constant 0 : i32
    return %arg0, %2, %c0_i32, %c0_i32_0 : i32, i32, i32, i32
  }
  func.func @transform_3(%arg0: i32, %arg1: i32) -> (i32, i32) {
    %c0_i32 = arith.constant 0 : i32
    %c0_i32_0 = arith.constant 0 : i32
    %c0_i32_1 = arith.constant 0 : i32
    return %c0_i32, %c0_i32_0 : i32, i32
  }
  func.func @transform_4(%arg0: i32, %arg1: i32) -> (i32, i32) {
    %c0_i32 = arith.constant 0 : i32
    %c0_i32_0 = arith.constant 0 : i32
    %c0_i32_1 = arith.constant 0 : i32
    return %c0_i32, %c0_i32_0 : i32, i32
  }
  func.func @transform_5(%arg0: i32, %arg1: i32) -> (i32, i32) {
    %c0_i32 = arith.constant 0 : i32
    %c0_i32_0 = arith.constant 0 : i32
    %c0_i32_1 = arith.constant 0 : i32
    return %c0_i32, %c0_i32_0 : i32, i32
  }
  func.func @transform_6(%arg0: i32, %arg1: i32) -> (i32, i32) {
    %c0_i32 = arith.constant 0 : i32
    %c0_i32_0 = arith.constant 0 : i32
    %c0_i32_1 = arith.constant 0 : i32
    return %c0_i32, %c0_i32_0 : i32, i32
  }
  func.func @transform_7(%arg0: i32, %arg1: i32) -> (i32, i32, i32, i32) {
    %c0_i32 = arith.constant 0 : i32
    %c0_i32_0 = arith.constant 0 : i32
    %c0_i32_1 = arith.constant 0 : i32
    return %arg0, %arg1, %c0_i32, %c0_i32_0 : i32, i32, i32, i32
  }
  func.func @transform_8(%arg0: i32, %arg1: i32) -> (i32, i32, i32, i32) {
    %c0_i32 = arith.constant 0 : i32
    %c0_i32_0 = arith.constant 0 : i32
    %c0_i32_1 = arith.constant 0 : i32
    return %arg0, %arg1, %c0_i32, %c0_i32_0 : i32, i32, i32, i32
  }
}

</mosaic_0001>

<llo_original>
// kernel: skipmodule_forward.5
$region0: #{skipmodule_forward.5}
  #allocation0 [shape = 'u32[]', space=smem, size = 0x4, offset = 0x4, fixed_abs, tag = 'smem constant byte address 0x4 - core index']
  #allocation1 [shape = 'u32[144,128]{1,0:T(1,128)}', space=vmem, size = 0x12000, scoped, tag = 'internal scratch']
  %s0 = inlined_call_operand.hbm [shape: f32[128,128], index: 0, kind: input, shape index: {}]
  %s1 = inlined_call_operand.hbm [shape: f32[128,128], index: 1, kind: input, shape index: {}]
  %s2 = inlined_call_operand.hbm [shape: f32[1,128], index: 2, kind: input, shape index: {}]
  %s3 = inlined_call_operand.hbm [shape: f32[1,128], index: 3, kind: input, shape index: {}]
  %s4 = inlined_call_operand.hbm [shape: f32[128,128], index: 4, kind: output, shape index: {}]
  %s5 = sld [smem:[#allocation0]]
  $region65: #{skipmodule_forward.5} parent=0
    _
  %s7 = ssub.s32 1, %s5
  %s8 = scalar_select 0, %s7, %s5
  $region1: #{skipmodule_forward.5} parent=0
    #allocation2 [shape = 'u8[32768]{0}', space=vmem, size = 0x8000, scoped, tag = 'input window, operand 0']
    #allocation3 [shape = 's32[2]{0}', space=sflag, size = 0x8, scoped, tag = 'scoped memory for skipmodule_forward.5']
    #allocation4 [shape = 's32[2]{0}', space=sflag, size = 0x8, scoped, tag = 'scoped memory for skipmodule_forward.5']
    #allocation5 [shape = 'u8[32768]{0}', space=vmem, size = 0x8000, scoped, tag = 'input window, operand 1']
    #allocation6 [shape = 's32[2]{0}', space=sflag, size = 0x8, scoped, tag = 'scoped memory for skipmodule_forward.5']
    #allocation7 [shape = 'u8[512]{0}', space=vmem, size = 0x400, scoped, tag = 'input window, operand 2, single buffered']
    #allocation8 [shape = 'u8[512]{0}', space=vmem, size = 0x400, scoped, tag = 'input window, operand 3, single buffered']
    #allocation9 [shape = 's32[1]{0}', space=sflag, size = 0x4, scoped, tag = 'scoped memory for skipmodule_forward.5']
    #allocation10 [shape = 'u8[32768]{0}', space=vmem, size = 0x8000, scoped, tag = 'output window, operand 0']
    %9 = vsyncpa [#allocation3], 0
    %s10 = scalar_lea.sflag [#allocation3], 1
    %11 = vsyncpa %s10, 0
    %12 = vsyncpa [#allocation6], 0
    %s13 = scalar_lea.sflag [#allocation6], 1
    %14 = vsyncpa %s13, 0
    %15 = vsyncpa [#allocation9], 0
    %16 = vsyncpa [#allocation4], 0
    %s17 = scalar_lea.sflag [#allocation4], 1
    %18 = vsyncpa %s17, 0
    loop: start=0, step=1, limit=6
    $region2: #{skipmodule_forward.5} parent=1 // loop_pre_header
      _
    $region3: #{skipmodule_forward.5} parent=1 // loop_header
      %s20 = sphi 0, %s24
      %p21 = scmp.ge.s32.totalorder %s20, 6
      %s30 = sphi 0, %s32
      %s33 = sphi 0, %s30
      %s34 = sphi 0, %s33
      %s50 = sphi 0, %s34
      %s56 = sphi 0, %s58
      %s59 = sphi 0, %s56
      %s60 = sphi 0, %s59
      %s76 = sphi 0, %s60
      %s80 = sphi 0, %s80
      %s82 = sphi 0, %s80
      %s83 = sphi 0, %s82
      %s97 = sphi 0, %s83
      %s101 = sphi 0, %s101
      %s103 = sphi 0, %s101
      %s104 = sphi 0, %s103
      %s118 = sphi 0, %s104
      %s124 = sphi 0, %s126
      %s127 = sphi 0, %s124
      %s128 = sphi 0, %s127
      %s144 = sphi 0, %s128
    $region4: #{skipmodule_forward.5} parent=1 // loop_header_branch
      %23 = sbr.rel (%p21) target = $region8
    $region5: #{skipmodule_forward.5} parent=1 // loop_body
      %s25 = ssub.s32 %s20, 1
      %s26 = ssub.s32 %s20, 2
      %s27 = sadd.s32 %s20, 1
      %s28 = ssub.s32 %s20, %s27
      %p29 = scmp.eq.s32.totalorder %s28, 0
      %s31 = sadd.s32 %s30, 1
      %s32 = scalar_select %p29, %s30, %s31
      %p35 = pneg %p29
      %p36 = scmp.eq.s32.totalorder %s20, 3
      %p37 = por %p35, %p36
      %p38 = scmp.ne.s32.totalorder %s30, %s33
      %p39 = scmp.eq.s32.totalorder %s20, 0
      %p40 = por %p38, %p39
      %p41 = scmp.ne.s32.totalorder %s30, %s33
      %p42 = scmp.eq.s32.totalorder %s25, 3
      %p43 = por %p41, %p42
      %p44 = scmp.ne.s32.totalorder %s33, %s34
      %p45 = scmp.eq.s32.totalorder %s25, 0
      %p46 = por %p44, %p45
      %p47 = scmp.ne.s32.totalorder %s33, %s34
      %p48 = scmp.eq.s32.totalorder %s26, 3
      %p49 = por %p47, %p48
      %p51 = scmp.ne.s32.totalorder %s34, %s50
      %p52 = scmp.eq.s32.totalorder %s26, 0
      %p53 = por %p51, %p52
      %s54 = ssub.s32 %s20, %s27
      %p55 = scmp.eq.s32.totalorder %s54, 0
      %s57 = sadd.s32 %s56, 1
      %s58 = scalar_select %p55, %s56, %s57
      %p61 = pneg %p55
      %p62 = scmp.eq.s32.totalorder %s20, 3
      %p63 = por %p61, %p62
      %p64 = scmp.ne.s32.totalorder %s56, %s59
      %p65 = scmp.eq.s32.totalorder %s20, 0
      %p66 = por %p64, %p65
      %p67 = scmp.ne.s32.totalorder %s56, %s59
      %p68 = scmp.eq.s32.totalorder %s25, 3
      %p69 = por %p67, %p68
      %p70 = scmp.ne.s32.totalorder %s59, %s60
      %p71 = scmp.eq.s32.totalorder %s25, 0
      %p72 = por %p70, %p71
      %p73 = scmp.ne.s32.totalorder %s59, %s60
      %p74 = scmp.eq.s32.totalorder %s26, 3
      %p75 = por %p73, %p74
      %p77 = scmp.ne.s32.totalorder %s60, %s76
      %p78 = scmp.eq.s32.totalorder %s26, 0
      %p79 = por %p77, %p78
      %s81 = sadd.s32 %s80, 1
      %p84 = scmp.eq.s32.totalorder %s20, 3
      %p85 = scmp.ne.s32.totalorder %s80, %s82
      %p86 = scmp.eq.s32.totalorder %s20, 0
      %p87 = por %p85, %p86
      %p88 = scmp.ne.s32.totalorder %s80, %s82
      %p89 = scmp.eq.s32.totalorder %s25, 3
      %p90 = por %p88, %p89
      %p91 = scmp.ne.s32.totalorder %s82, %s83
      %p92 = scmp.eq.s32.totalorder %s25, 0
      %p93 = por %p91, %p92
      %p94 = scmp.ne.s32.totalorder %s82, %s83
      %p95 = scmp.eq.s32.totalorder %s26, 3
      %p96 = por %p94, %p95
      %p98 = scmp.ne.s32.totalorder %s83, %s97
      %p99 = scmp.eq.s32.totalorder %s26, 0
      %p100 = por %p98, %p99
      %s102 = sadd.s32 %s101, 1
      %p105 = scmp.eq.s32.totalorder %s20, 3
      %p106 = scmp.ne.s32.totalorder %s101, %s103
      %p107 = scmp.eq.s32.totalorder %s20, 0
      %p108 = por %p106, %p107
      %p109 = scmp.ne.s32.totalorder %s101, %s103
      %p110 = scmp.eq.s32.totalorder %s25, 3
      %p111 = por %p109, %p110
      %p112 = scmp.ne.s32.totalorder %s103, %s104
      %p113 = scmp.eq.s32.totalorder %s25, 0
      %p114 = por %p112, %p113
      %p115 = scmp.ne.s32.totalorder %s103, %s104
      %p116 = scmp.eq.s32.totalorder %s26, 3
      %p117 = por %p115, %p116
      %p119 = scmp.ne.s32.totalorder %s104, %s118
      %p120 = scmp.eq.s32.totalorder %s26, 0
      %p121 = por %p119, %p120
      %s122 = ssub.s32 %s20, %s27
      %p123 = scmp.eq.s32.totalorder %s122, 0
      %s125 = sadd.s32 %s124, 1
      %s126 = scalar_select %p123, %s124, %s125
      %p129 = pneg %p123
      %p130 = scmp.eq.s32.totalorder %s20, 3
      %p131 = por %p129, %p130
      %p132 = scmp.ne.s32.totalorder %s124, %s127
      %p133 = scmp.eq.s32.totalorder %s20, 0
      %p134 = por %p132, %p133
      %p135 = scmp.ne.s32.totalorder %s124, %s127
      %p136 = scmp.eq.s32.totalorder %s25, 3
      %p137 = por %p135, %p136
      %p138 = scmp.ne.s32.totalorder %s127, %s128
      %p139 = scmp.eq.s32.totalorder %s25, 0
      %p140 = por %p138, %p139
      %p141 = scmp.ne.s32.totalorder %s127, %s128
      %p142 = scmp.eq.s32.totalorder %s26, 3
      %p143 = por %p141, %p142
      %p145 = scmp.ne.s32.totalorder %s128, %s144
      %p146 = scmp.eq.s32.totalorder %s26, 0
      %p147 = por %p145, %p146
      %p148 = scmp.le.s32.totalorder 1, %s20
      %p149 = scmp.lt.s32.totalorder %s20, 5
      %p150 = pnand %p148, %p149
      %p151 = pneg %p150
      // Predicated region
      $region9: #{skipmodule_forward.5} parent=5 // pred_check
        _
      $region10: #{skipmodule_forward.5} parent=5 // pred_check_branch
        %153 = sbr.rel (%p150) target = $region12
      $region11: #{skipmodule_forward.5} parent=5 // pred_region
        %s154 = ssub.s32 %s20, 1
        // Predicated region
        $region13: #{skipmodule_forward.5} parent=11 // pred_check
          %p155 = pneg %p93
        $region14: #{skipmodule_forward.5} parent=11 // pred_check_branch
          %157 = sbr.rel (%p155) target = $region16
        $region15: #{skipmodule_forward.5} parent=11 // pred_region
          %s159 = ssub.s32 16, 16
          %160 = vsyncadd [#allocation6], %s159
          %s162 = sshll.u32 [#allocation7], 4
          %s163 = int_to_ptr.vmem [resolvable:$true] %s162
          %165 = dma.hbm_to_vmem [thread:$0]  %s2, 16, %s163, [#allocation6]
        $region16: #{skipmodule_forward.5} parent=11 // pred_fallthru
          _
        // Predicated region
        $region17: #{skipmodule_forward.5} parent=11 // pred_check
          %p166 = pneg %p114
        $region18: #{skipmodule_forward.5} parent=11 // pred_check_branch
          %168 = sbr.rel (%p166) target = $region20
        $region19: #{skipmodule_forward.5} parent=11 // pred_region
          %s170 = ssub.s32 16, 16
          %171 = vsyncadd [#allocation9], %s170
          %s173 = sshll.u32 [#allocation8], 4
          %s174 = int_to_ptr.vmem [resolvable:$true] %s173
          %176 = dma.hbm_to_vmem [thread:$0]  %s3, 16, %s174, [#allocation9]
        $region20: #{skipmodule_forward.5} parent=11 // pred_fallthru
          _
      $region12: #{skipmodule_forward.5} parent=5 // pred_fallthru
        _
      %p177 = scmp.lt.s32.totalorder %s20, 4
      // Predicated region
      $region21: #{skipmodule_forward.5} parent=5 // pred_check
        %p178 = pneg %p177
      $region22: #{skipmodule_forward.5} parent=5 // pred_check_branch
        %180 = sbr.rel (%p178) target = $region24
      $region23: #{skipmodule_forward.5} parent=5 // pred_region
        // Predicated region
        $region25: #{skipmodule_forward.5} parent=23 // pred_check
          %p181 = pneg %p40
        $region26: #{skipmodule_forward.5} parent=23 // pred_check_branch
          %183 = sbr.rel (%p181) target = $region28
        $region27: #{skipmodule_forward.5} parent=23 // pred_region
          %s184 = sand.u32 %s30, 1
          %s185 = scalar_lea.sflag [#allocation3], %s184
          %s186 = sand.u32 %s30, 1
          %s187 = smul.addr %s186, 32
          %s188 = scalar_lea.vmem [#allocation2], %s187
          %s189 = smul.u32 4, %s20
          %s191 = ssub.s32 512, 512
          %192 = vsyncadd %s185, %s191
          %s193 = smul.addr %s189, 128
          %s194 = scalar_lea.hbm %s0, %s193
          %s195 = sshll.u32 %s188, 4
          %s196 = int_to_ptr.vmem [resolvable:$true] %s195
          %201 = dma.hbm_to_vmem [thread:$0]  %s194, 512, %s196, %s185, 128, 128, 8
        $region28: #{skipmodule_forward.5} parent=23 // pred_fallthru
          _
        // Predicated region
        $region29: #{skipmodule_forward.5} parent=23 // pred_check
          %p202 = pneg %p66
        $region30: #{skipmodule_forward.5} parent=23 // pred_check_branch
          %204 = sbr.rel (%p202) target = $region32
        $region31: #{skipmodule_forward.5} parent=23 // pred_region
          %s205 = sand.u32 %s20, 1
          %s206 = scalar_lea.sflag [#allocation6], %s205
          %s207 = sand.u32 %s56, 1
          %s208 = smul.addr %s207, 32
          %s209 = scalar_lea.vmem [#allocation5], %s208
          %s210 = smul.u32 4, %s20
          %s212 = ssub.s32 512, 512
          %213 = vsyncadd %s206, %s212
          %s214 = smul.addr %s210, 128
          %s215 = scalar_lea.hbm %s1, %s214
          %s216 = sshll.u32 %s209, 4
          %s217 = int_to_ptr.vmem [resolvable:$true] %s216
          %222 = dma.hbm_to_vmem [thread:$0]  %s215, 512, %s217, %s206, 128, 128, 8
        $region32: #{skipmodule_forward.5} parent=23 // pred_fallthru
          _
      $region24: #{skipmodule_forward.5} parent=5 // pred_fallthru
        _
      %p223 = scmp.le.s32.totalorder 1, %s20
      %p224 = scmp.lt.s32.totalorder %s20, 5
      %p225 = pnand %p223, %p224
      %p226 = pneg %p225
      // Predicated region
      $region33: #{skipmodule_forward.5} parent=5 // pred_check
        _
      $region34: #{skipmodule_forward.5} parent=5 // pred_check_branch
        %228 = sbr.rel (%p225) target = $region36
      $region35: #{skipmodule_forward.5} parent=5 // pred_region
        %s229 = ssub.s32 %s20, 1
        %s230 = sand.u32 %s33, 1
        %s231 = scalar_lea.sflag [#allocation3], %s230
        %s232 = sand.u32 %s33, 1
        %s233 = smul.addr %s232, 32
        %s234 = scalar_lea.vmem [#allocation2], %s233
        // Predicated region
        $region37: #{skipmodule_forward.5} parent=35 // pred_check
          %p235 = pneg %p46
        $region38: #{skipmodule_forward.5} parent=35 // pred_check_branch
          %237 = sbr.rel (%p235) target = $region40
        $region39: #{skipmodule_forward.5} parent=35 // pred_region
          %238 = dma.done %s231, 512
        $region40: #{skipmodule_forward.5} parent=35 // pred_fallthru
          _
        %s239 = sand.u32 %s25, 1
        %s240 = scalar_lea.sflag [#allocation6], %s239
        %s241 = sand.u32 %s59, 1
        %s242 = smul.addr %s241, 32
        %s243 = scalar_lea.vmem [#allocation5], %s242
        // Predicated region
        $region41: #{skipmodule_forward.5} parent=35 // pred_check
          %p244 = pneg %p72
        $region42: #{skipmodule_forward.5} parent=35 // pred_check_branch
          %246 = sbr.rel (%p244) target = $region44
        $region43: #{skipmodule_forward.5} parent=35 // pred_region
          %247 = dma.done %s240, 512
        $region44: #{skipmodule_forward.5} parent=35 // pred_fallthru
          _
        // Predicated region
        $region45: #{skipmodule_forward.5} parent=35 // pred_check
          %p248 = pneg %p93
        $region46: #{skipmodule_forward.5} parent=35 // pred_check_branch
          %250 = sbr.rel (%p248) target = $region48
        $region47: #{skipmodule_forward.5} parent=35 // pred_region
          %251 = dma.done [#allocation6], 16
        $region48: #{skipmodule_forward.5} parent=35 // pred_fallthru
          _
        // Predicated region
        $region49: #{skipmodule_forward.5} parent=35 // pred_check
          %p252 = pneg %p114
        $region50: #{skipmodule_forward.5} parent=35 // pred_check_branch
          %254 = sbr.rel (%p252) target = $region52
        $region51: #{skipmodule_forward.5} parent=35 // pred_region
          %255 = dma.done [#allocation9], 16
        $region52: #{skipmodule_forward.5} parent=35 // pred_fallthru
          _
        %s256 = sand.u32 %s33, 1
        %s257 = scalar_lea.sflag [#allocation3], %s256
        %s258 = sand.u32 %s33, 1
        %s259 = smul.addr %s258, 32
        %s260 = scalar_lea.vmem [#allocation2], %s259
        %p261 = pneg %p46
        %p262 = pneg %p43
        %s263 = sand.u32 %s25, 1
        %s264 = scalar_lea.sflag [#allocation6], %s263
        %s265 = sand.u32 %s59, 1
        %s266 = smul.addr %s265, 32
        %s267 = scalar_lea.vmem [#allocation5], %s266
        %p268 = pneg %p72
        %p269 = pneg %p69
        %p270 = pneg %p93
        %p271 = pneg %p90
        %p272 = pneg %p114
        %p273 = pneg %p111
        %p274 = pneg %p140
        %p275 = pneg %p137
        %s276 = sand.u32 %s127, 1
        %s277 = scalar_lea.sflag [#allocation4], %s276
        %s278 = sand.u32 %s127, 1
        %s279 = smul.addr %s278, 32
        %s280 = scalar_lea.vmem [#allocation10], %s279
        %s281 = smul.u32 4, %s25
        %s282 = smul.u32 4, %s25
        %s283 = smul.u32 4, %s25
        %v284 = vld [vmem:[%s234] sm:$0xff]
        %v285 = vld [vmem:[%s234 + $0x8] sm:$0xff]
        %v286 = vld [vmem:[%s234 + $0x10] sm:$0xff]
        %v287 = vld [vmem:[%s234 + $0x18] sm:$0xff]
        %v288 = vld [vmem:[#allocation7] sm:$0x1]
        %v290 = vlaneseq
        %v291 = vshrl.u32 %v290, 7
        %v292 = vsub.s32 0, %v291
        %v293 = vrot.slane %v288, %v292
        %v295 = vmul.f32 %v284, %v293
        %v296 = vmul.f32 %v285, %v293
        %v297 = vmul.f32 %v286, %v293
        %v298 = vmul.f32 %v287, %v293
        %v299 = vld [vmem:[#allocation8] sm:$0x1]
        %v301 = vlaneseq
        %v302 = vshrl.u32 %v301, 7
        %v303 = vsub.s32 0, %v302
        %v304 = vrot.slane %v299, %v303
        %v306 = vadd.f32 %v295, %v304
        %v307 = vadd.f32 %v296, %v304
        %v308 = vadd.f32 %v297, %v304
        %v309 = vadd.f32 %v298, %v304
        %v310 = vld [vmem:[%s243] sm:$0xff]
        %v311 = vld [vmem:[%s243 + $0x8] sm:$0xff]
        %v312 = vld [vmem:[%s243 + $0x10] sm:$0xff]
        %v313 = vld [vmem:[%s243 + $0x18] sm:$0xff]
        %v314 = vadd.f32 %v306, %v310
        %v315 = vadd.f32 %v307, %v311
        %v316 = vadd.f32 %v308, %v312
        %v317 = vadd.f32 %v309, %v313
        %v318 = vmul.f32 %v314, 0.5
        %v319 = vmul.f32 %v315, 0.5
        %v320 = vmul.f32 %v316, 0.5
        %v321 = vmul.f32 %v317, 0.5
        %v322 = vmul.f32 %v314, 0.70710677
        %v323 = vmul.f32 %v315, 0.70710677
        %v324 = vmul.f32 %v316, 0.70710677
        %v325 = vmul.f32 %v317, 0.70710677
        %vm326 = vcmp.ge.f32.partialorder %v322, 0.0
        %vm327 = vcmp.ge.f32.partialorder %v323, 0.0
        %vm328 = vcmp.ge.f32.partialorder %v324, 0.0
        %vm329 = vcmp.ge.f32.partialorder %v325, 0.0
        %v330 = vsel %vm326, 1.0, -1.0
        %v331 = vsel %vm327, 1.0, -1.0
        %v332 = vsel %vm328, 1.0, -1.0
        %v333 = vsel %vm329, 1.0, -1.0
        %v334 = vand.u32 2147483647, %v322
        %v335 = vand.u32 2147483647, %v323
        %v336 = vand.u32 2147483647, %v324
        %v337 = vand.u32 2147483647, %v325
        %v338 = vmul.f32 %v334, 0.3275911
        %v339 = vmul.f32 %v335, 0.3275911
        %v340 = vmul.f32 %v336, 0.3275911
        %v341 = vmul.f32 %v337, 0.3275911
        %v342 = vadd.f32 %v338, 1.0
        %v343 = vadd.f32 %v339, 1.0
        %v344 = vadd.f32 %v340, 1.0
        %v345 = vadd.f32 %v341, 1.0
        %v346 = vrcp.pop %v342
        %v347 = vrcp.pop %v343
        %v348 = vrcp.pop %v344
        %v349 = vrcp.pop %v345
        %v350 = vmul.f32 %v346, 1.0614054
        %v351 = vmul.f32 %v347, 1.0614054
        %v352 = vmul.f32 %v348, 1.0614054
        %v353 = vmul.f32 %v349, 1.0614054
        %v354 = vadd.f32 %v350, -1.4531521
        %v355 = vadd.f32 %v351, -1.4531521
        %v356 = vadd.f32 %v352, -1.4531521
        %v357 = vadd.f32 %v353, -1.4531521
        %v358 = vmul.f32 %v354, %v346
        %v359 = vmul.f32 %v355, %v347
        %v360 = vmul.f32 %v356, %v348
        %v361 = vmul.f32 %v357, %v349
        %v362 = vadd.f32 %v358, 1.4214138
        %v363 = vadd.f32 %v359, 1.4214138
        %v364 = vadd.f32 %v360, 1.4214138
        %v365 = vadd.f32 %v361, 1.4214138
        %v366 = vmul.f32 %v362, %v346
        %v367 = vmul.f32 %v363, %v347
        %v368 = vmul.f32 %v364, %v348
        %v369 = vmul.f32 %v365, %v349
        %v370 = vadd.f32 %v366, -0.28449672
        %v371 = vadd.f32 %v367, -0.28449672
        %v372 = vadd.f32 %v368, -0.28449672
        %v373 = vadd.f32 %v369, -0.28449672
        %v374 = vmul.f32 %v370, %v346
        %v375 = vmul.f32 %v371, %v347
        %v376 = vmul.f32 %v372, %v348
        %v377 = vmul.f32 %v373, %v349
        %v378 = vadd.f32 %v374, 0.2548296
        %v379 = vadd.f32 %v375, 0.2548296
        %v380 = vadd.f32 %v376, 0.2548296
        %v381 = vadd.f32 %v377, 0.2548296
        %v382 = vmul.f32 %v378, %v346
        %v383 = vmul.f32 %v379, %v347
        %v384 = vmul.f32 %v380, %v348
        %v385 = vmul.f32 %v381, %v349
        %v386 = vsub.f32 0.0, %v334
        %v387 = vsub.f32 0.0, %v335
        %v388 = vsub.f32 0.0, %v336
        %v389 = vsub.f32 0.0, %v337
        %v390 = vmul.f32 %v386, %v334
        %v391 = vmul.f32 %v387, %v335
        %v392 = vmul.f32 %v388, %v336
        %v393 = vmul.f32 %v389, %v337
        %v394 = vmul.f32 %v390, 1.442695
        %v395 = vpow.pop %v394
        %v396 = vmul.f32 %v391, 1.442695
        %v397 = vpow.pop %v396
        %v398 = vmul.f32 %v392, 1.442695
        %v399 = vpow.pop %v398
        %v400 = vmul.f32 %v393, 1.442695
        %v401 = vpow.pop %v400
        %v402 = vmul.f32 %v382, %v395
        %v403 = vmul.f32 %v383, %v397
        %v404 = vmul.f32 %v384, %v399
        %v405 = vmul.f32 %v385, %v401
        %v406 = vsub.f32 1.0, %v402
        %v407 = vsub.f32 1.0, %v403
        %v408 = vsub.f32 1.0, %v404
        %v409 = vsub.f32 1.0, %v405
        %v410 = vmul.f32 %v330, %v406
        %v411 = vmul.f32 %v331, %v407
        %v412 = vmul.f32 %v332, %v408
        %v413 = vmul.f32 %v333, %v409
        %v414 = vadd.f32 %v410, 1.0
        %v415 = vadd.f32 %v411, 1.0
        %v416 = vadd.f32 %v412, 1.0
        %v417 = vadd.f32 %v413, 1.0
        %v418 = vmul.f32 %v318, %v414
        %v419 = vmul.f32 %v319, %v415
        %v420 = vmul.f32 %v320, %v416
        %v421 = vmul.f32 %v321, %v417
        %422 = vst [vmem:[%s280] sm:$0xff] %v418
        %423 = vst [vmem:[%s280 + $0x8] sm:$0xff] %v419
        %424 = vst [vmem:[%s280 + $0x10] sm:$0xff] %v420
        %425 = vst [vmem:[%s280 + $0x18] sm:$0xff] %v421
        %s426 = sand.u32 %s127, 1
        %s427 = scalar_lea.sflag [#allocation4], %s426
        %s428 = sand.u32 %s127, 1
        %s429 = smul.addr %s428, 32
        %s430 = scalar_lea.vmem [#allocation10], %s429
        // Predicated region
        $region53: #{skipmodule_forward.5} parent=35 // pred_check
          %p431 = pneg %p137
        $region54: #{skipmodule_forward.5} parent=35 // pred_check_branch
          %433 = sbr.rel (%p431) target = $region56
        $region55: #{skipmodule_forward.5} parent=35 // pred_region
          %s434 = smul.u32 4, %s25
          %s436 = ssub.s32 512, 512
          %437 = vsyncadd %s427, %s436
          %s438 = smul.addr %s434, 128
          %s439 = scalar_lea.hbm %s4, %s438
          %s440 = sshll.u32 %s430, 4
          %s441 = int_to_ptr.vmem [resolvable:$true] %s440
          %446 = dma.vmem_to_hbm [thread:$0]  %s441, 512, %s439, %s427, 128, 128, 8
        $region56: #{skipmodule_forward.5} parent=35 // pred_fallthru
          _
      $region36: #{skipmodule_forward.5} parent=5 // pred_fallthru
        _
      %p447 = scmp.le.s32.totalorder 2, %s20
      // Predicated region
      $region57: #{skipmodule_forward.5} parent=5 // pred_check
        %p448 = pneg %p447
      $region58: #{skipmodule_forward.5} parent=5 // pred_check_branch
        %450 = sbr.rel (%p448) target = $region60
      $region59: #{skipmodule_forward.5} parent=5 // pred_region
        %s451 = ssub.s32 %s20, 2
        // Predicated region
        $region61: #{skipmodule_forward.5} parent=59 // pred_check
          %p452 = pneg %p143
        $region62: #{skipmodule_forward.5} parent=59 // pred_check_branch
          %454 = sbr.rel (%p452) target = $region64
        $region63: #{skipmodule_forward.5} parent=59 // pred_region
          %s455 = sand.u32 %s128, 1
          %s456 = scalar_lea.sflag [#allocation4], %s455
          %s457 = sand.u32 %s128, 1
          %s458 = smul.addr %s457, 32
          %s459 = scalar_lea.vmem [#allocation10], %s458
          %460 = dma.done %s456, 512
        $region64: #{skipmodule_forward.5} parent=59 // pred_fallthru
          _
      $region60: #{skipmodule_forward.5} parent=5 // pred_fallthru
        _
    $region6: #{skipmodule_forward.5} parent=1 // loop_footer
      %s24 = sadd.s32 1, %s20
    $region7: #{skipmodule_forward.5} parent=1 // loop_footer_branch
      %19 = sbr.rel target = $region3
    $region8: #{skipmodule_forward.5} parent=1 // loop_exit
      _
    %461 = vsyncpa [#allocation3], 1
    %s462 = scalar_lea.sflag [#allocation3], 1
    %463 = vsyncpa %s462, 1
    %464 = vsyncpa [#allocation6], 1
    %s465 = scalar_lea.sflag [#allocation6], 1
    %466 = vsyncpa %s465, 1
    %467 = vsyncpa [#allocation9], 1
    %468 = vsyncpa [#allocation4], 1
    %s469 = scalar_lea.sflag [#allocation4], 1
    %470 = vsyncpa %s469, 1

// kernel: skipmodule_forward.3
$region0: #{skipmodule_forward.3}
  #allocation0 [shape = 'u32[]', space=smem, size = 0x4, offset = 0x4, fixed_abs, tag = 'smem constant byte address 0x4 - core index']
  #allocation1 [shape = 'u32[144,128]{1,0:T(1,128)}', space=vmem, size = 0x12000, scoped, tag = 'internal scratch']
  %s0 = inlined_call_operand.hbm [shape: bf16[128,36], index: 0, kind: input, shape index: {}]
  %s1 = inlined_call_operand.hbm [shape: bf16[36,128], index: 1, kind: input, shape index: {}]
  %s2 = inlined_call_operand.hbm [shape: f32[1,128], index: 2, kind: input, shape index: {}]
  %s3 = inlined_call_operand.hbm [shape: bf16[36,128], index: 3, kind: input, shape index: {}]
  %s4 = inlined_call_operand.hbm [shape: f32[1,128], index: 4, kind: input, shape index: {}]
  %s5 = inlined_call_operand.hbm [shape: f32[128,128], index: 5, kind: output, shape index: {0}]
  %s6 = inlined_call_operand.hbm [shape: f32[128,128], index: 6, kind: output, shape index: {1}]
  %s7 = inlined_call_operand.hbm [shape: f32[4,2,128], index: 7, kind: output, shape index: {2}]
  %8 = xla_tuple %s5, %s6, %s7
  %s9 = sld [smem:[#allocation0]]
  $region89: #{skipmodule_forward.3} parent=0
    _
  %s11 = ssub.s32 1, %s9
  %s12 = scalar_select 0, %s11, %s9
  $region1: #{skipmodule_forward.3} parent=0
    #allocation2 [shape = 'u8[16384]{0}', space=vmem, size = 0x4000, scoped, tag = 'input window, operand 0']
    #allocation3 [shape = 's32[2]{0}', space=sflag, size = 0x8, scoped, tag = 'scoped memory for skipmodule_forward.3']
    #allocation4 [shape = 's32[2]{0}', space=sflag, size = 0x8, scoped, tag = 'scoped memory for skipmodule_forward.3']
    #allocation5 [shape = 'u8[10240]{0}', space=vmem, size = 0x2800, scoped, tag = 'input window, operand 1, single buffered']
    #allocation6 [shape = 's32[1]{0}', space=sflag, size = 0x4, scoped, tag = 'scoped memory for skipmodule_forward.3']
    #allocation7 [shape = 'u8[512]{0}', space=vmem, size = 0x400, scoped, tag = 'input window, operand 2, single buffered']
    #allocation8 [shape = 'u8[10240]{0}', space=vmem, size = 0x2800, scoped, tag = 'input window, operand 3, single buffered']
    #allocation9 [shape = 's32[1]{0}', space=sflag, size = 0x4, scoped, tag = 'scoped memory for skipmodule_forward.3']
    #allocation10 [shape = 'u8[512]{0}', space=vmem, size = 0x400, scoped, tag = 'input window, operand 4, single buffered']
    #allocation11 [shape = 'u8[32768]{0}', space=vmem, size = 0x8000, scoped, tag = 'output window, operand 0']
    #allocation12 [shape = 'u8[32768]{0}', space=vmem, size = 0x8000, scoped, tag = 'output window, operand 1']
    #allocation13 [shape = 's32[2]{0}', space=sflag, size = 0x8, scoped, tag = 'scoped memory for skipmodule_forward.3']
    #allocation14 [shape = 'u8[2048]{0}', space=vmem, size = 0x800, scoped, tag = 'output window, operand 2']
    %13 = vsyncpa [#allocation3], 0
    %s14 = scalar_lea.sflag [#allocation3], 1
    %15 = vsyncpa %s14, 0
    %16 = vsyncpa [#allocation6], 0
    %17 = vsyncpa [#allocation9], 0
    %18 = vsyncpa [#allocation4], 0
    %s19 = scalar_lea.sflag [#allocation4], 1
    %20 = vsyncpa %s19, 0
    %21 = vsyncpa [#allocation13], 0
    %s22 = scalar_lea.sflag [#allocation13], 1
    %23 = vsyncpa %s22, 0
    loop: start=0, step=1, limit=6
    $region2: #{skipmodule_forward.3} parent=1 // loop_pre_header
      _
    $region3: #{skipmodule_forward.3} parent=1 // loop_header
      %s25 = sphi 0, %s29
      %p26 = scmp.ge.s32.totalorder %s25, 6
      %s35 = sphi 0, %s37
      %s38 = sphi 0, %s35
      %s39 = sphi 0, %s38
      %s55 = sphi 0, %s39
      %s59 = sphi 0, %s59
      %s61 = sphi 0, %s59
      %s62 = sphi 0, %s61
      %s76 = sphi 0, %s62
      %s80 = sphi 0, %s80
      %s82 = sphi 0, %s80
      %s83 = sphi 0, %s82
      %s97 = sphi 0, %s83
      %s101 = sphi 0, %s101
      %s103 = sphi 0, %s101
      %s104 = sphi 0, %s103
      %s118 = sphi 0, %s104
      %s122 = sphi 0, %s122
      %s124 = sphi 0, %s122
      %s125 = sphi 0, %s124
      %s139 = sphi 0, %s125
      %s145 = sphi 0, %s147
      %s148 = sphi 0, %s145
      %s149 = sphi 0, %s148
      %s165 = sphi 0, %s149
      %s171 = sphi 0, %s173
      %s174 = sphi 0, %s171
      %s175 = sphi 0, %s174
      %s191 = sphi 0, %s175
      %s197 = sphi 0, %s199
      %s200 = sphi 0, %s197
      %s201 = sphi 0, %s200
      %s217 = sphi 0, %s201
    $region4: #{skipmodule_forward.3} parent=1 // loop_header_branch
      %28 = sbr.rel (%p26) target = $region8
    $region5: #{skipmodule_forward.3} parent=1 // loop_body
      %s30 = ssub.s32 %s25, 1
      %s31 = ssub.s32 %s25, 2
      %s32 = sadd.s32 %s25, 1
      %s33 = ssub.s32 %s25, %s32
      %p34 = scmp.eq.s32.totalorder %s33, 0
      %s36 = sadd.s32 %s35, 1
      %s37 = scalar_select %p34, %s35, %s36
      %p40 = pneg %p34
      %p41 = scmp.eq.s32.totalorder %s25, 3
      %p42 = por %p40, %p41
      %p43 = scmp.ne.s32.totalorder %s35, %s38
      %p44 = scmp.eq.s32.totalorder %s25, 0
      %p45 = por %p43, %p44
      %p46 = scmp.ne.s32.totalorder %s35, %s38
      %p47 = scmp.eq.s32.totalorder %s30, 3
      %p48 = por %p46, %p47
      %p49 = scmp.ne.s32.totalorder %s38, %s39
      %p50 = scmp.eq.s32.totalorder %s30, 0
      %p51 = por %p49, %p50
      %p52 = scmp.ne.s32.totalorder %s38, %s39
      %p53 = scmp.eq.s32.totalorder %s31, 3
      %p54 = por %p52, %p53
      %p56 = scmp.ne.s32.totalorder %s39, %s55
      %p57 = scmp.eq.s32.totalorder %s31, 0
      %p58 = por %p56, %p57
      %s60 = sadd.s32 %s59, 1
      %p63 = scmp.eq.s32.totalorder %s25, 3
      %p64 = scmp.ne.s32.totalorder %s59, %s61
      %p65 = scmp.eq.s32.totalorder %s25, 0
      %p66 = por %p64, %p65
      %p67 = scmp.ne.s32.totalorder %s59, %s61
      %p68 = scmp.eq.s32.totalorder %s30, 3
      %p69 = por %p67, %p68
      %p70 = scmp.ne.s32.totalorder %s61, %s62
      %p71 = scmp.eq.s32.totalorder %s30, 0
      %p72 = por %p70, %p71
      %p73 = scmp.ne.s32.totalorder %s61, %s62
      %p74 = scmp.eq.s32.totalorder %s31, 3
      %p75 = por %p73, %p74
      %p77 = scmp.ne.s32.totalorder %s62, %s76
      %p78 = scmp.eq.s32.totalorder %s31, 0
      %p79 = por %p77, %p78
      %s81 = sadd.s32 %s80, 1
      %p84 = scmp.eq.s32.totalorder %s25, 3
      %p85 = scmp.ne.s32.totalorder %s80, %s82
      %p86 = scmp.eq.s32.totalorder %s25, 0
      %p87 = por %p85, %p86
      %p88 = scmp.ne.s32.totalorder %s80, %s82
      %p89 = scmp.eq.s32.totalorder %s30, 3
      %p90 = por %p88, %p89
      %p91 = scmp.ne.s32.totalorder %s82, %s83
      %p92 = scmp.eq.s32.totalorder %s30, 0
      %p93 = por %p91, %p92
      %p94 = scmp.ne.s32.totalorder %s82, %s83
      %p95 = scmp.eq.s32.totalorder %s31, 3
      %p96 = por %p94, %p95
      %p98 = scmp.ne.s32.totalorder %s83, %s97
      %p99 = scmp.eq.s32.totalorder %s31, 0
      %p100 = por %p98, %p99
      %s102 = sadd.s32 %s101, 1
      %p105 = scmp.eq.s32.totalorder %s25, 3
      %p106 = scmp.ne.s32.totalorder %s101, %s103
      %p107 = scmp.eq.s32.totalorder %s25, 0
      %p108 = por %p106, %p107
      %p109 = scmp.ne.s32.totalorder %s101, %s103
      %p110 = scmp.eq.s32.totalorder %s30, 3
      %p111 = por %p109, %p110
      %p112 = scmp.ne.s32.totalorder %s103, %s104
      %p113 = scmp.eq.s32.totalorder %s30, 0
      %p114 = por %p112, %p113
      %p115 = scmp.ne.s32.totalorder %s103, %s104
      %p116 = scmp.eq.s32.totalorder %s31, 3
      %p117 = por %p115, %p116
      %p119 = scmp.ne.s32.totalorder %s104, %s118
      %p120 = scmp.eq.s32.totalorder %s31, 0
      %p121 = por %p119, %p120
      %s123 = sadd.s32 %s122, 1
      %p126 = scmp.eq.s32.totalorder %s25, 3
      %p127 = scmp.ne.s32.totalorder %s122, %s124
      %p128 = scmp.eq.s32.totalorder %s25, 0
      %p129 = por %p127, %p128
      %p130 = scmp.ne.s32.totalorder %s122, %s124
      %p131 = scmp.eq.s32.totalorder %s30, 3
      %p132 = por %p130, %p131
      %p133 = scmp.ne.s32.totalorder %s124, %s125
      %p134 = scmp.eq.s32.totalorder %s30, 0
      %p135 = por %p133, %p134
      %p136 = scmp.ne.s32.totalorder %s124, %s125
      %p137 = scmp.eq.s32.totalorder %s31, 3
      %p138 = por %p136, %p137
      %p140 = scmp.ne.s32.totalorder %s125, %s139
      %p141 = scmp.eq.s32.totalorder %s31, 0
      %p142 = por %p140, %p141
      %s143 = ssub.s32 %s25, %s32
      %p144 = scmp.eq.s32.totalorder %s143, 0
      %s146 = sadd.s32 %s145, 1
      %s147 = scalar_select %p144, %s145, %s146
      %p150 = pneg %p144
      %p151 = scmp.eq.s32.totalorder %s25, 3
      %p152 = por %p150, %p151
      %p153 = scmp.ne.s32.totalorder %s145, %s148
      %p154 = scmp.eq.s32.totalorder %s25, 0
      %p155 = por %p153, %p154
      %p156 = scmp.ne.s32.totalorder %s145, %s148
      %p157 = scmp.eq.s32.totalorder %s30, 3
      %p158 = por %p156, %p157
      %p159 = scmp.ne.s32.totalorder %s148, %s149
      %p160 = scmp.eq.s32.totalorder %s30, 0
      %p161 = por %p159, %p160
      %p162 = scmp.ne.s32.totalorder %s148, %s149
      %p163 = scmp.eq.s32.totalorder %s31, 3
      %p164 = por %p162, %p163
      %p166 = scmp.ne.s32.totalorder %s149, %s165
      %p167 = scmp.eq.s32.totalorder %s31, 0
      %p168 = por %p166, %p167
      %s169 = ssub.s32 %s25, %s32
      %p170 = scmp.eq.s32.totalorder %s169, 0
      %s172 = sadd.s32 %s171, 1
      %s173 = scalar_select %p170, %s171, %s172
      %p176 = pneg %p170
      %p177 = scmp.eq.s32.totalorder %s25, 3
      %p178 = por %p176, %p177
      %p179 = scmp.ne.s32.totalorder %s171, %s174
      %p180 = scmp.eq.s32.totalorder %s25, 0
      %p181 = por %p179, %p180
      %p182 = scmp.ne.s32.totalorder %s171, %s174
      %p183 = scmp.eq.s32.totalorder %s30, 3
      %p184 = por %p182, %p183
      %p185 = scmp.ne.s32.totalorder %s174, %s175
      %p186 = scmp.eq.s32.totalorder %s30, 0
      %p187 = por %p185, %p186
      %p188 = scmp.ne.s32.totalorder %s174, %s175
      %p189 = scmp.eq.s32.totalorder %s31, 3
      %p190 = por %p188, %p189
      %p192 = scmp.ne.s32.totalorder %s175, %s191
      %p193 = scmp.eq.s32.totalorder %s31, 0
      %p194 = por %p192, %p193
      %s195 = ssub.s32 %s25, %s32
      %p196 = scmp.eq.s32.totalorder %s195, 0
      %s198 = sadd.s32 %s197, 1
      %s199 = scalar_select %p196, %s197, %s198
      %p202 = pneg %p196
      %p203 = scmp.eq.s32.totalorder %s25, 3
      %p204 = por %p202, %p203
      %p205 = scmp.ne.s32.totalorder %s197, %s200
      %p206 = scmp.eq.s32.totalorder %s25, 0
      %p207 = por %p205, %p206
      %p208 = scmp.ne.s32.totalorder %s197, %s200
      %p209 = scmp.eq.s32.totalorder %s30, 3
      %p210 = por %p208, %p209
      %p211 = scmp.ne.s32.totalorder %s200, %s201
      %p212 = scmp.eq.s32.totalorder %s30, 0
      %p213 = por %p211, %p212
      %p214 = scmp.ne.s32.totalorder %s200, %s201
      %p215 = scmp.eq.s32.totalorder %s31, 3
      %p216 = por %p214, %p215
      %p218 = scmp.ne.s32.totalorder %s201, %s217
      %p219 = scmp.eq.s32.totalorder %s31, 0
      %p220 = por %p218, %p219
      %p221 = scmp.le.s32.totalorder 1, %s25
      %p222 = scmp.lt.s32.totalorder %s25, 5
      %p223 = pnand %p221, %p222
      %p224 = pneg %p223
      // Predicated region
      $region9: #{skipmodule_forward.3} parent=5 // pred_check
        _
      $region10: #{skipmodule_forward.3} parent=5 // pred_check_branch
        %226 = sbr.rel (%p223) target = $region12
      $region11: #{skipmodule_forward.3} parent=5 // pred_region
        %s227 = ssub.s32 %s25, 1
        // Predicated region
        $region13: #{skipmodule_forward.3} parent=11 // pred_check
          %p228 = pneg %p72
        $region14: #{skipmodule_forward.3} parent=11 // pred_check_branch
          %230 = sbr.rel (%p228) target = $region16
        $region15: #{skipmodule_forward.3} parent=11 // pred_region
          %s232 = ssub.s32 320, 320
          %233 = vsyncadd [#allocation6], %s232
          %s234 = sshll.u32 [#allocation5], 4
          %s235 = int_to_ptr.vmem [resolvable:$true] %s234
          %240 = dma.hbm_to_vmem [thread:$0]  %s1, 320, %s235, [#allocation6], 64, 64, 4
        $region16: #{skipmodule_forward.3} parent=11 // pred_fallthru
          _
        // Predicated region
        $region17: #{skipmodule_forward.3} parent=11 // pred_check
          %p241 = pneg %p93
        $region18: #{skipmodule_forward.3} parent=11 // pred_check_branch
          %243 = sbr.rel (%p241) target = $region20
        $region19: #{skipmodule_forward.3} parent=11 // pred_region
          %s245 = ssub.s32 16, 16
          %246 = vsyncadd [#allocation6], %s245
          %s248 = sshll.u32 [#allocation7], 4
          %s249 = int_to_ptr.vmem [resolvable:$true] %s248
          %251 = dma.hbm_to_vmem [thread:$0]  %s2, 16, %s249, [#allocation6]
        $region20: #{skipmodule_forward.3} parent=11 // pred_fallthru
          _
        // Predicated region
        $region21: #{skipmodule_forward.3} parent=11 // pred_check
          %p252 = pneg %p114
        $region22: #{skipmodule_forward.3} parent=11 // pred_check_branch
          %254 = sbr.rel (%p252) target = $region24
        $region23: #{skipmodule_forward.3} parent=11 // pred_region
          %s256 = ssub.s32 320, 320
          %257 = vsyncadd [#allocation9], %s256
          %s258 = sshll.u32 [#allocation8], 4
          %s259 = int_to_ptr.vmem [resolvable:$true] %s258
          %264 = dma.hbm_to_vmem [thread:$0]  %s3, 320, %s259, [#allocation9], 64, 64, 4
        $region24: #{skipmodule_forward.3} parent=11 // pred_fallthru
          _
        // Predicated region
        $region25: #{skipmodule_forward.3} parent=11 // pred_check
          %p265 = pneg %p135
        $region26: #{skipmodule_forward.3} parent=11 // pred_check_branch
          %267 = sbr.rel (%p265) target = $region28
        $region27: #{skipmodule_forward.3} parent=11 // pred_region
          %s269 = ssub.s32 16, 16
          %270 = vsyncadd [#allocation9], %s269
          %s272 = sshll.u32 [#allocation10], 4
          %s273 = int_to_ptr.vmem [resolvable:$true] %s272
          %275 = dma.hbm_to_vmem [thread:$0]  %s4, 16, %s273, [#allocation9]
        $region28: #{skipmodule_forward.3} parent=11 // pred_fallthru
          _
      $region12: #{skipmodule_forward.3} parent=5 // pred_fallthru
        _
      %p276 = scmp.lt.s32.totalorder %s25, 4
      // Predicated region
      $region29: #{skipmodule_forward.3} parent=5 // pred_check
        %p277 = pneg %p276
      $region30: #{skipmodule_forward.3} parent=5 // pred_check_branch
        %279 = sbr.rel (%p277) target = $region32
      $region31: #{skipmodule_forward.3} parent=5 // pred_region
        // Predicated region
        $region33: #{skipmodule_forward.3} parent=31 // pred_check
          %p280 = pneg %p45
        $region34: #{skipmodule_forward.3} parent=31 // pred_check_branch
          %282 = sbr.rel (%p280) target = $region36
        $region35: #{skipmodule_forward.3} parent=31 // pred_region
          %s283 = sand.u32 %s35, 1
          %s284 = scalar_lea.sflag [#allocation3], %s283
          %s285 = sand.u32 %s35, 1
          %s286 = smul.addr %s285, 16
          %s287 = scalar_lea.vmem [#allocation2], %s286
          %s288 = smul.u32 4, %s25
          %s290 = ssub.s32 256, 256
          %291 = vsyncadd %s284, %s290
          %s292 = smul.addr %s288, 64
          %s293 = scalar_lea.hbm %s0, %s292
          %s294 = sshll.u32 %s287, 4
          %s295 = int_to_ptr.vmem [resolvable:$true] %s294
          %300 = dma.hbm_to_vmem [thread:$0]  %s293, 256, %s295, %s284, 64, 64, 4
        $region36: #{skipmodule_forward.3} parent=31 // pred_fallthru
          _
      $region32: #{skipmodule_forward.3} parent=5 // pred_fallthru
        _
      %p301 = scmp.le.s32.totalorder 1, %s25
      %p302 = scmp.lt.s32.totalorder %s25, 5
      %p303 = pnand %p301, %p302
      %p304 = pneg %p303
      // Predicated region
      $region37: #{skipmodule_forward.3} parent=5 // pred_check
        _
      $region38: #{skipmodule_forward.3} parent=5 // pred_check_branch
        %306 = sbr.rel (%p303) target = $region40
      $region39: #{skipmodule_forward.3} parent=5 // pred_region
        %s307 = ssub.s32 %s25, 1
        %s308 = sand.u32 %s38, 1
        %s309 = scalar_lea.sflag [#allocation3], %s308
        %s310 = sand.u32 %s38, 1
        %s311 = smul.addr %s310, 16
        %s312 = scalar_lea.vmem [#allocation2], %s311
        // Predicated region
        $region41: #{skipmodule_forward.3} parent=39 // pred_check
          %p313 = pneg %p51
        $region42: #{skipmodule_forward.3} parent=39 // pred_check_branch
          %315 = sbr.rel (%p313) target = $region44
        $region43: #{skipmodule_forward.3} parent=39 // pred_region
          %316 = dma.done %s309, 256
        $region44: #{skipmodule_forward.3} parent=39 // pred_fallthru
          _
        // Predicated region
        $region45: #{skipmodule_forward.3} parent=39 // pred_check
          %p317 = pneg %p72
        $region46: #{skipmodule_forward.3} parent=39 // pred_check_branch
          %319 = sbr.rel (%p317) target = $region48
        $region47: #{skipmodule_forward.3} parent=39 // pred_region
          %320 = dma.done [#allocation6], 320
        $region48: #{skipmodule_forward.3} parent=39 // pred_fallthru
          _
        // Predicated region
        $region49: #{skipmodule_forward.3} parent=39 // pred_check
          %p321 = pneg %p93
        $region50: #{skipmodule_forward.3} parent=39 // pred_check_branch
          %323 = sbr.rel (%p321) target = $region52
        $region51: #{skipmodule_forward.3} parent=39 // pred_region
          %324 = dma.done [#allocation6], 16
        $region52: #{skipmodule_forward.3} parent=39 // pred_fallthru
          _
        // Predicated region
        $region53: #{skipmodule_forward.3} parent=39 // pred_check
          %p325 = pneg %p114
        $region54: #{skipmodule_forward.3} parent=39 // pred_check_branch
          %327 = sbr.rel (%p325) target = $region56
        $region55: #{skipmodule_forward.3} parent=39 // pred_region
          %328 = dma.done [#allocation9], 320
        $region56: #{skipmodule_forward.3} parent=39 // pred_fallthru
          _
        // Predicated region
        $region57: #{skipmodule_forward.3} parent=39 // pred_check
          %p329 = pneg %p135
        $region58: #{skipmodule_forward.3} parent=39 // pred_check_branch
          %331 = sbr.rel (%p329) target = $region60
        $region59: #{skipmodule_forward.3} parent=39 // pred_region
          %332 = dma.done [#allocation9], 16
        $region60: #{skipmodule_forward.3} parent=39 // pred_fallthru
          _
        %s333 = sand.u32 %s38, 1
        %s334 = scalar_lea.sflag [#allocation3], %s333
        %s335 = sand.u32 %s38, 1
        %s336 = smul.addr %s335, 16
        %s337 = scalar_lea.vmem [#allocation2], %s336
        %p338 = pneg %p51
        %p339 = pneg %p48
        %p340 = pneg %p72
        %p341 = pneg %p69
        %p342 = pneg %p93
        %p343 = pneg %p90
        %p344 = pneg %p114
        %p345 = pneg %p111
        %p346 = pneg %p135
        %p347 = pneg %p132
        %p348 = pneg %p161
        %p349 = pneg %p158
        %s350 = sand.u32 %s148, 1
        %s351 = scalar_lea.sflag [#allocation4], %s350
        %s352 = sand.u32 %s148, 1
        %s353 = smul.addr %s352, 32
        %s354 = scalar_lea.vmem [#allocation11], %s353
        %p355 = pneg %p187
        %p356 = pneg %p184
        %s357 = sand.u32 %s30, 1
        %s358 = scalar_lea.sflag [#allocation13], %s357
        %s359 = sand.u32 %s174, 1
        %s360 = smul.addr %s359, 32
        %s361 = scalar_lea.vmem [#allocation12], %s360
        %p362 = pneg %p213
        %p363 = pneg %p210
        %s364 = sand.u32 %s30, 1
        %s365 = scalar_lea.sflag [#allocation13], %s364
        %s366 = sand.u32 %s200, 1
        %s367 = smul.addr %s366, 2
        %s368 = scalar_lea.vmem [#allocation14], %s367
        %s369 = smul.u32 4, %s30
        %s370 = smul.u32 4, %s30
        %s371 = smul.u32 4, %s30
        %v373 = vld [vmem:[%s312] sm:$0xf]
        %v374 = vld [vmem:[%s312 + $0x4] sm:$0xf]
        %v375 = vld [vmem:[%s312 + $0x8] sm:$0xf]
        %v376 = vld [vmem:[%s312 + $0xc] sm:$0xf]
        %v377 = vld [vmem:[#allocation5] sm:$0xf]
        %v378 = vld [vmem:[#allocation5 + $0x4] sm:$0xf]
        %v379 = vld [vmem:[#allocation5 + $0x8] sm:$0xf]
        %v380 = vld [vmem:[#allocation5 + $0xc] sm:$0xf]
        %v381 = vld [vmem:[#allocation5 + $0x10] sm:$0x3]
        %v382 = vld [vmem:[#allocation7] sm:$0x1]
        %v384 = vlaneseq
        %v385 = vshrl.u32 %v384, 7
        %v386 = vsub.s32 0, %v385
        %v387 = vrot.slane %v382, %v386
        %v393 = vunpack.c.l.b16 %v373
        %v394 = vunpack.c.l.b16 %v374
        %v395 = vunpack.c.l.b16 %v375
        %v396 = vunpack.c.l.b16 %v376
        %v397 = vpack.c.b16 %v394, %v393
        %v398 = vpack.c.b16 %v396, %v395
        %v404 = vunpack.c.l.b16 %v377
        %v405 = vunpack.c.l.b16 %v378
        %v406 = vunpack.c.l.b16 %v379
        %v407 = vunpack.c.l.b16 %v380
        %v408 = vunpack.c.l.b16 %v381
        %v409 = vpack.c.b16 %v405, %v404
        %v410 = vpack.c.b16 %v407, %v406
        %v411 = vpack.c.b16 %v408, %v408
        %vm414 = vcmask 293888
        %v416 = vsel %vm414, %v397, 0
        %v419 = vsel %vm414, %v398, 0
        %vm421 = vcmask 1041408
        %v423 = vsel %vm421, %v411, 0
        %425 = vmatprep.subr.bf16.mxu0 0
        %426 = vmatpush1.bf16.msra.mxu0 %v409
        %427 = vmatprep.subr.bf16.mxu0 0
        %428 = vmatpush1.bf16.msra.mxu0 %v410
        %429 = vmatprep.subr.bf16.mxu0 0
        %430 = vmatpush1.bf16.msra.mxu0 %v423
        %431 = vmatprep.subr.bf16.mxu0 0
        %432 = vmatpush1.bf16.msra.mxu0 0
        %433 = vmatprep.subr.bf16.mxu0 0
        %434 = vmatpush1.bf16.msra.mxu0 0
        %435 = vmatprep.subr.bf16.mxu0 0
        %436 = vmatpush1.bf16.msra.mxu0 0
        %437 = vmatprep.subr.bf16.mxu0 0
        %438 = vmatpush1.bf16.msra.mxu0 0
        %439 = vmatprep.subr.bf16.mxu0 0
        %440 = vmatpush1.bf16.msra.mxu0 0
        %441 = vmatprep.subr.bf16.mxu0 0
        %442 = vmatpush1.bf16.msra.mxu0 0
        %443 = vmatprep.subr.bf16.mxu0 0
        %444 = vmatpush1.bf16.msra.mxu0 0
        %445 = vmatprep.subr.bf16.mxu0 0
        %446 = vmatpush1.bf16.msra.mxu0 0
        %447 = vmatprep.subr.bf16.mxu0 0
        %448 = vmatpush1.bf16.msra.mxu0 0
        %449 = vmatprep.subr.bf16.mxu0 0
        %450 = vmatpush1.bf16.msra.mxu0 0
        %451 = vmatprep.subr.bf16.mxu0 0
        %452 = vmatpush1.bf16.msra.mxu0 0
        %453 = vmatprep.subr.bf16.mxu0 0
        %454 = vmatpush1.bf16.msra.mxu0 0
        %455 = vmatprep.subr.bf16.mxu0 0
        %456 = vmatpush1.bf16.msra.mxu0 0
        %457 = vmatprep.mubr.bf16.mxu0 0
        %458 = vmatmul.mubr.bf16.gmra.mrb[0].mxu0 %v416
        %v459 = vpop.f32.mrb[0].mxu0
        %v460 = vadd.f32 %v387, %v459
        %v461 = vpop.f32.mrb[0].mxu0
        %v462 = vpop.f32.mrb[0].mxu0
        %v463 = vadd.f32 %v387, %v462
        %v464 = vpop.f32.mrb[0].mxu0
        %465 = vmatprep.mubr.bf16.mxu0 0
        %466 = vmatmul.mubr.bf16.gmra.mrb[0].mxu0 %v419
        %v467 = vpop.f32.mrb[0].mxu0
        %v468 = vadd.f32 %v387, %v467
        %v469 = vpop.f32.mrb[0].mxu0
        %v470 = vpop.f32.mrb[0].mxu0
        %v471 = vadd.f32 %v387, %v470
        %v472 = vpop.f32.mrb[0].mxu0
        %473 = vdwg.mxu0
        %v474 = vld [vmem:[#allocation8] sm:$0xf]
        %v475 = vld [vmem:[#allocation8 + $0x4] sm:$0xf]
        %v476 = vld [vmem:[#allocation8 + $0x8] sm:$0xf]
        %v477 = vld [vmem:[#allocation8 + $0xc] sm:$0xf]
        %v478 = vld [vmem:[#allocation8 + $0x10] sm:$0x3]
        %v479 = vld [vmem:[#allocation10] sm:$0x1]
        %v481 = vlaneseq
        %v482 = vshrl.u32 %v481, 7
        %v483 = vsub.s32 0, %v482
        %v484 = vrot.slane %v479, %v483
        %v491 = vunpack.c.l.b16 %v474
        %v492 = vunpack.c.l.b16 %v475
        %v493 = vunpack.c.l.b16 %v476
        %v494 = vunpack.c.l.b16 %v477
        %v495 = vunpack.c.l.b16 %v478
        %v496 = vpack.c.b16 %v492, %v491
        %v497 = vpack.c.b16 %v494, %v493
        %v498 = vpack.c.b16 %v495, %v495
        %v502 = vsel %vm421, %v498, 0
        %504 = vmatprep.subr.bf16.mxu0 0
        %505 = vmatpush1.bf16.msra.mxu0 %v496
        %506 = vmatprep.subr.bf16.mxu0 0
        %507 = vmatpush1.bf16.msra.mxu0 %v497
        %508 = vmatprep.subr.bf16.mxu0 0
        %509 = vmatpush1.bf16.msra.mxu0 %v502
        %510 = vmatprep.subr.bf16.mxu0 0
        %511 = vmatpush1.bf16.msra.mxu0 0
        %512 = vmatprep.subr.bf16.mxu0 0
        %513 = vmatpush1.bf16.msra.mxu0 0
        %514 = vmatprep.subr.bf16.mxu0 0
        %515 = vmatpush1.bf16.msra.mxu0 0
        %516 = vmatprep.subr.bf16.mxu0 0
        %517 = vmatpush1.bf16.msra.mxu0 0
        %518 = vmatprep.subr.bf16.mxu0 0
        %519 = vmatpush1.bf16.msra.mxu0 0
        %520 = vmatprep.subr.bf16.mxu0 0
        %521 = vmatpush1.bf16.msra.mxu0 0
        %522 = vmatprep.subr.bf16.mxu0 0
        %523 = vmatpush1.bf16.msra.mxu0 0
        %524 = vmatprep.subr.bf16.mxu0 0
        %525 = vmatpush1.bf16.msra.mxu0 0
        %526 = vmatprep.subr.bf16.mxu0 0
        %527 = vmatpush1.bf16.msra.mxu0 0
        %528 = vmatprep.subr.bf16.mxu0 0
        %529 = vmatpush1.bf16.msra.mxu0 0
        %530 = vmatprep.subr.bf16.mxu0 0
        %531 = vmatpush1.bf16.msra.mxu0 0
        %532 = vmatprep.subr.bf16.mxu0 0
        %533 = vmatpush1.bf16.msra.mxu0 0
        %534 = vmatprep.subr.bf16.mxu0 0
        %535 = vmatpush1.bf16.msra.mxu0 0
        %536 = vmatprep.mubr.bf16.mxu0 0
        %537 = vmatmul.mubr.bf16.gmra.mrb[0].mxu0 %v416
        %v538 = vpop.f32.mrb[0].mxu0
        %v539 = vadd.f32 %v484, %v538
        %v540 = vpop.f32.mrb[0].mxu0
        %v541 = vpop.f32.mrb[0].mxu0
        %v542 = vadd.f32 %v484, %v541
        %v543 = vpop.f32.mrb[0].mxu0
        %544 = vmatprep.mubr.bf16.mxu0 0
        %545 = vmatmul.mubr.bf16.gmra.mrb[0].mxu0 %v419
        %v546 = vpop.f32.mrb[0].mxu0
        %v547 = vadd.f32 %v484, %v546
        %v548 = vpop.f32.mrb[0].mxu0
        %v549 = vpop.f32.mrb[0].mxu0
        %v550 = vadd.f32 %v484, %v549
        %v551 = vpop.f32.mrb[0].mxu0
        %552 = vdwg.mxu0
        %553 = vst [vmem:[%s354] sm:$0xff] %v460
        %554 = vst [vmem:[%s354 + $0x8] sm:$0xff] %v463
        %555 = vst [vmem:[%s354 + $0x10] sm:$0xff] %v468
        %556 = vst [vmem:[%s354 + $0x18] sm:$0xff] %v471
        %557 = vst [vmem:[%s361] sm:$0xff] %v539
        %558 = vst [vmem:[%s361 + $0x8] sm:$0xff] %v542
        %559 = vst [vmem:[%s361 + $0x10] sm:$0xff] %v547
        %560 = vst [vmem:[%s361 + $0x18] sm:$0xff] %v550
        %v561 = vadd.f32 %v460, %v463
        %v562 = vadd.f32 %v561, %v468
        %v563 = vadd.f32 %v562, %v471
        %v564 = vrot.slane %v563, 4
        %v565 = vadd.f32 %v563, %v564
        %v566 = vrot.slane %v565, 2
        %v567 = vadd.f32 %v565, %v566
        %v568 = vrot.slane %v567, 1
        %v569 = vadd.f32 %v567, %v568
        %v570 = vmul.f32 %v460, %v460
        %v571 = vmul.f32 %v463, %v463
        %v572 = vmul.f32 %v468, %v468
        %v573 = vmul.f32 %v471, %v471
        %v574 = vadd.f32 %v570, %v571
        %v575 = vadd.f32 %v574, %v572
        %v576 = vadd.f32 %v575, %v573
        %v577 = vrot.slane %v576, 4
        %v578 = vadd.f32 %v576, %v577
        %v579 = vrot.slane %v578, 2
        %v580 = vadd.f32 %v578, %v579
        %v581 = vrot.slane %v580, 1
        %v582 = vadd.f32 %v580, %v581
        %vm583 = vcmask 1040384
        %v584 = vsel %vm583, %v569, %v582
        %585 = vst [vmem:[%s368] sm:$0x3] %v584
        %s586 = sand.u32 %s148, 1
        %s587 = scalar_lea.sflag [#allocation4], %s586
        %s588 = sand.u32 %s148, 1
        %s589 = smul.addr %s588, 32
        %s590 = scalar_lea.vmem [#allocation11], %s589
        %s591 = sand.u32 %s30, 1
        %s592 = scalar_lea.sflag [#allocation13], %s591
        %s593 = sand.u32 %s174, 1
        %s594 = smul.addr %s593, 32
        %s595 = scalar_lea.vmem [#allocation12], %s594
        %s596 = sand.u32 %s30, 1
        %s597 = scalar_lea.sflag [#allocation13], %s596
        %s598 = sand.u32 %s200, 1
        %s599 = smul.addr %s598, 2
        %s600 = scalar_lea.vmem [#allocation14], %s599
        // Predicated region
        $region61: #{skipmodule_forward.3} parent=39 // pred_check
          %p601 = pneg %p158
        $region62: #{skipmodule_forward.3} parent=39 // pred_check_branch
          %603 = sbr.rel (%p601) target = $region64
        $region63: #{skipmodule_forward.3} parent=39 // pred_region
          %s604 = smul.u32 4, %s30
          %s606 = ssub.s32 512, 512
          %607 = vsyncadd %s587, %s606
          %s608 = smul.addr %s604, 128
          %s609 = scalar_lea.hbm %s5, %s608
          %s610 = sshll.u32 %s590, 4
          %s611 = int_to_ptr.vmem [resolvable:$true] %s610
          %616 = dma.vmem_to_hbm [thread:$0]  %s611, 512, %s609, %s587, 128, 128, 8
        $region64: #{skipmodule_forward.3} parent=39 // pred_fallthru
          _
        // Predicated region
        $region65: #{skipmodule_forward.3} parent=39 // pred_check
          %p617 = pneg %p184
        $region66: #{skipmodule_forward.3} parent=39 // pred_check_branch
          %619 = sbr.rel (%p617) target = $region68
        $region67: #{skipmodule_forward.3} parent=39 // pred_region
          %s620 = smul.u32 4, %s30
          %s622 = ssub.s32 512, 512
          %623 = vsyncadd %s592, %s622
          %s624 = smul.addr %s620, 128
          %s625 = scalar_lea.hbm %s6, %s624
          %s626 = sshll.u32 %s595, 4
          %s627 = int_to_ptr.vmem [resolvable:$true] %s626
          %632 = dma.vmem_to_hbm [thread:$0]  %s627, 512, %s625, %s592, 128, 128, 8
        $region68: #{skipmodule_forward.3} parent=39 // pred_fallthru
          _
        // Predicated region
        $region69: #{skipmodule_forward.3} parent=39 // pred_check
          %p633 = pneg %p210
        $region70: #{skipmodule_forward.3} parent=39 // pred_check_branch
          %635 = sbr.rel (%p633) target = $region72
        $region71: #{skipmodule_forward.3} parent=39 // pred_region
          %s637 = ssub.s32 32, 32
          %638 = vsyncadd %s597, %s637
          %s639 = smul.addr %s30, 32
          %s640 = scalar_lea.hbm %s7, %s639
          %s642 = sshll.u32 %s600, 4
          %s643 = int_to_ptr.vmem [resolvable:$true] %s642
          %645 = dma.vmem_to_hbm [thread:$0]  %s643, 32, %s640, %s597
        $region72: #{skipmodule_forward.3} parent=39 // pred_fallthru
          _
      $region40: #{skipmodule_forward.3} parent=5 // pred_fallthru
        _
      %p646 = scmp.le.s32.totalorder 2, %s25
      // Predicated region
      $region73: #{skipmodule_forward.3} parent=5 // pred_check
        %p647 = pneg %p646
      $region74: #{skipmodule_forward.3} parent=5 // pred_check_branch
        %649 = sbr.rel (%p647) target = $region76
      $region75: #{skipmodule_forward.3} parent=5 // pred_region
        %s650 = ssub.s32 %s25, 2
        // Predicated region
        $region77: #{skipmodule_forward.3} parent=75 // pred_check
          %p651 = pneg %p164
        $region78: #{skipmodule_forward.3} parent=75 // pred_check_branch
          %653 = sbr.rel (%p651) target = $region80
        $region79: #{skipmodule_forward.3} parent=75 // pred_region
          %s654 = sand.u32 %s149, 1
          %s655 = scalar_lea.sflag [#allocation4], %s654
          %s656 = sand.u32 %s149, 1
          %s657 = smul.addr %s656, 32
          %s658 = scalar_lea.vmem [#allocation11], %s657
          %659 = dma.done %s655, 512
        $region80: #{skipmodule_forward.3} parent=75 // pred_fallthru
          _
        // Predicated region
        $region81: #{skipmodule_forward.3} parent=75 // pred_check
          %p660 = pneg %p190
        $region82: #{skipmodule_forward.3} parent=75 // pred_check_branch
          %662 = sbr.rel (%p660) target = $region84
        $region83: #{skipmodule_forward.3} parent=75 // pred_region
          %s663 = sand.u32 %s31, 1
          %s664 = scalar_lea.sflag [#allocation13], %s663
          %s665 = sand.u32 %s175, 1
          %s666 = smul.addr %s665, 32
          %s667 = scalar_lea.vmem [#allocation12], %s666
          %668 = dma.done %s664, 512
        $region84: #{skipmodule_forward.3} parent=75 // pred_fallthru
          _
        // Predicated region
        $region85: #{skipmodule_forward.3} parent=75 // pred_check
          %p669 = pneg %p216
        $region86: #{skipmodule_forward.3} parent=75 // pred_check_branch
          %671 = sbr.rel (%p669) target = $region88
        $region87: #{skipmodule_forward.3} parent=75 // pred_region
          %s672 = sand.u32 %s31, 1
          %s673 = scalar_lea.sflag [#allocation13], %s672
          %s674 = sand.u32 %s201, 1
          %s675 = smul.addr %s674, 2
          %s676 = scalar_lea.vmem [#allocation14], %s675
          %677 = dma.done %s673, 32
        $region88: #{skipmodule_forward.3} parent=75 // pred_fallthru
          _
      $region76: #{skipmodule_forward.3} parent=5 // pred_fallthru
        _
    $region6: #{skipmodule_forward.3} parent=1 // loop_footer
      %s29 = sadd.s32 1, %s25
    $region7: #{skipmodule_forward.3} parent=1 // loop_footer_branch
      %24 = sbr.rel target = $region3
    $region8: #{skipmodule_forward.3} parent=1 // loop_exit
      _
    %678 = vsyncpa [#allocation3], 1
    %s679 = scalar_lea.sflag [#allocation3], 1
    %680 = vsyncpa %s679, 1
    %681 = vsyncpa [#allocation6], 1
    %682 = vsyncpa [#allocation9], 1
    %683 = vsyncpa [#allocation4], 1
    %s684 = scalar_lea.sflag [#allocation4], 1
    %685 = vsyncpa %s684, 1
    %686 = vsyncpa [#allocation13], 1
    %s687 = scalar_lea.sflag [#allocation13], 1
    %688 = vsyncpa %s687, 1

// kernel: skipmodule_forward.4
$region0: #{skipmodule_forward.4}
  #allocation0 [shape = 'u32[]', space=smem, size = 0x4, offset = 0x4, fixed_abs, tag = 'smem constant byte address 0x4 - core index']
  #allocation1 [shape = 'u32[144,128]{1,0:T(1,128)}', space=vmem, size = 0x12000, scoped, tag = 'internal scratch']
  #allocation2 [shape = 'f32[6,10,128]{2,1,0:T(8,128)}', space=vmem, size = 0xc000, scoped, tag = 'scratch operand']
  %s0 = inlined_call_operand.hbm [shape: f32[2,8,8,128], index: 0, kind: input, shape index: {}, may-alias: {0,1,2}]
  %s1 = inlined_call_operand.hbm [shape: f32[2,8,8,128], index: 1, kind: input, shape index: {}, may-alias: {0,1,2}]
  %s2 = inlined_call_operand.hbm [shape: f32[2,8,8,128], index: 2, kind: input, shape index: {}, may-alias: {0,1,2}]
  %s3 = inlined_call_operand.hbm [shape: f32[1,128], index: 3, kind: input, shape index: {}]
  %s4 = inlined_call_operand.hbm [shape: f32[1,128], index: 4, kind: input, shape index: {}]
  %s5 = inlined_call_operand.hbm [shape: bf16[1152,128], index: 5, kind: input, shape index: {}]
  %s6 = inlined_call_operand.hbm [shape: f32[1,128], index: 6, kind: input, shape index: {}]
  %s7 = inlined_call_operand.hbm [shape: f32[2,8,8,128], index: 7, kind: output, shape index: {0}]
  %s8 = inlined_call_operand.hbm [shape: f32[2,2,2,128], index: 8, kind: output, shape index: {1}]
  %9 = xla_tuple %s7, %s8
  %s10 = sld [smem:[#allocation0]]
  $region97: #{skipmodule_forward.4} parent=0
    _
  %s12 = ssub.s32 1, %s10
  %s13 = scalar_select 0, %s12, %s10
  $region1: #{skipmodule_forward.4} parent=0
    #allocation3 [shape = 'u8[32768]{0}', space=vmem, size = 0x8000, scoped, tag = 'input window, operand 0']
    #allocation4 [shape = 's32[2]{0}', space=sflag, size = 0x8, scoped, tag = 'scoped memory for skipmodule_forward.4']
    #allocation5 [shape = 's32[2]{0}', space=sflag, size = 0x8, scoped, tag = 'scoped memory for skipmodule_forward.4']
    #allocation6 [shape = 'u8[8192]{0}', space=vmem, size = 0x2000, scoped, tag = 'input window, operand 1']
    #allocation7 [shape = 's32[2]{0}', space=sflag, size = 0x8, scoped, tag = 'scoped memory for skipmodule_forward.4']
    #allocation8 [shape = 'u8[8192]{0}', space=vmem, size = 0x2000, scoped, tag = 'input window, operand 2']
    #allocation9 [shape = 'u8[512]{0}', space=vmem, size = 0x400, scoped, tag = 'input window, operand 3, single buffered']
    #allocation10 [shape = 's32[1]{0}', space=sflag, size = 0x4, scoped, tag = 'scoped memory for skipmodule_forward.4']
    #allocation11 [shape = 'u8[512]{0}', space=vmem, size = 0x400, scoped, tag = 'input window, operand 4, single buffered']
    #allocation12 [shape = 'u8[294912]{0}', space=vmem, size = 0x48000, scoped, tag = 'input window, operand 5, single buffered']
    #allocation13 [shape = 's32[1]{0}', space=sflag, size = 0x4, scoped, tag = 'scoped memory for skipmodule_forward.4']
    #allocation14 [shape = 'u8[512]{0}', space=vmem, size = 0x400, scoped, tag = 'input window, operand 6, single buffered']
    #allocation15 [shape = 'u8[32768]{0}', space=vmem, size = 0x8000, scoped, tag = 'output window, operand 0']
    #allocation16 [shape = 'u8[2048]{0}', space=vmem, size = 0x800, scoped, tag = 'output window, operand 1']
    #allocation17 [shape = 's32[2]{0}', space=sflag, size = 0x8, scoped, tag = 'scoped memory for skipmodule_forward.4']
    %14 = vsyncpa [#allocation4], 0
    %s15 = scalar_lea.sflag [#allocation4], 1
    %16 = vsyncpa %s15, 0
    %17 = vsyncpa [#allocation7], 0
    %s18 = scalar_lea.sflag [#allocation7], 1
    %19 = vsyncpa %s18, 0
    %20 = vsyncpa [#allocation10], 0
    %21 = vsyncpa [#allocation13], 0
    %22 = vsyncpa [#allocation5], 0
    %s23 = scalar_lea.sflag [#allocation5], 1
    %24 = vsyncpa %s23, 0
    %25 = vsyncpa [#allocation17], 0
    %s26 = scalar_lea.sflag [#allocation17], 1
    %27 = vsyncpa %s26, 0
    loop: start=0, step=1, limit=6
    $region2: #{skipmodule_forward.4} parent=1 // loop_pre_header
      _
    $region3: #{skipmodule_forward.4} parent=1 // loop_header
      %s29 = sphi 0, %s33
      %p30 = scmp.ge.s32.totalorder %s29, 6
      %s36 = sphi 0, %s48
      %s37 = sphi 0, %s44
      %s38 = sphi 0, %s36
      %s39 = sphi 0, %s37
      %s40 = sphi 0, %s38
      %s41 = sphi 0, %s39
      %s53 = sphi 0, %s55
      %s56 = sphi 0, %s53
      %s57 = sphi 0, %s56
      %s73 = sphi 0, %s57
      %s89 = sphi 0, %s91
      %s92 = sphi 0, %s89
      %s93 = sphi 0, %s92
      %s109 = sphi 0, %s93
      %s125 = sphi 0, %s127
      %s128 = sphi 0, %s125
      %s129 = sphi 0, %s128
      %s145 = sphi 0, %s129
      %s149 = sphi 0, %s149
      %s151 = sphi 0, %s149
      %s152 = sphi 0, %s151
      %s166 = sphi 0, %s152
      %s170 = sphi 0, %s170
      %s172 = sphi 0, %s170
      %s173 = sphi 0, %s172
      %s187 = sphi 0, %s173
      %s191 = sphi 0, %s191
      %s193 = sphi 0, %s191
      %s194 = sphi 0, %s193
      %s208 = sphi 0, %s194
      %s212 = sphi 0, %s212
      %s214 = sphi 0, %s212
      %s215 = sphi 0, %s214
      %s229 = sphi 0, %s215
      %s237 = sphi 0, %s239
      %s240 = sphi 0, %s237
      %s241 = sphi 0, %s240
      %s257 = sphi 0, %s241
      %s265 = sphi 0, %s267
      %s268 = sphi 0, %s265
      %s269 = sphi 0, %s268
      %s285 = sphi 0, %s269
    $region4: #{skipmodule_forward.4} parent=1 // loop_header_branch
      %32 = sbr.rel (%p30) target = $region8
    $region5: #{skipmodule_forward.4} parent=1 // loop_body
      %s34 = ssub.s32 %s29, 1
      %s35 = ssub.s32 %s29, 2
      %s42 = sadd.s32 1, %s37
      %p43 = scmp.ge.s32.totalorder %s42, 2
      %s44 = scalar_select %p43, 0, %s42
      %s45 = sadd.s32 1, %s36
      %s46 = scalar_select %p43, %s45, %s36
      %p47 = scmp.ge.s32.totalorder %s46, 2
      %s48 = scalar_select %p47, 0, %s46
      %s49 = ssub.s32 %s36, %s48
      %s50 = ssub.s32 %s37, %s44
      %s51 = sor.u32 %s49, %s50
      %p52 = scmp.eq.s32.totalorder %s51, 0
      %s54 = sadd.s32 %s53, 1
      %s55 = scalar_select %p52, %s53, %s54
      %p58 = pneg %p52
      %p59 = scmp.eq.s32.totalorder %s29, 3
      %p60 = por %p58, %p59
      %p61 = scmp.ne.s32.totalorder %s53, %s56
      %p62 = scmp.eq.s32.totalorder %s29, 0
      %p63 = por %p61, %p62
      %p64 = scmp.ne.s32.totalorder %s53, %s56
      %p65 = scmp.eq.s32.totalorder %s34, 3
      %p66 = por %p64, %p65
      %p67 = scmp.ne.s32.totalorder %s56, %s57
      %p68 = scmp.eq.s32.totalorder %s34, 0
      %p69 = por %p67, %p68
      %p70 = scmp.ne.s32.totalorder %s56, %s57
      %p71 = scmp.eq.s32.totalorder %s35, 3
      %p72 = por %p70, %p71
      %p74 = scmp.ne.s32.totalorder %s57, %s73
      %p75 = scmp.eq.s32.totalorder %s35, 0
      %p76 = por %p74, %p75
      %s77 = smul.u32 %s37, 4
      %s78 = ssub.s32 %s77, 1
      %p79 = scmp.gt.s32.totalorder %s78, 0
      %s80 = scalar_select %p79, %s78, 0
      %s81 = smul.u32 %s44, 4
      %s82 = ssub.s32 %s81, 1
      %p83 = scmp.gt.s32.totalorder %s82, 0
      %s84 = scalar_select %p83, %s82, 0
      %s85 = ssub.s32 %s36, %s48
      %s86 = ssub.s32 %s80, %s84
      %s87 = sor.u32 %s85, %s86
      %p88 = scmp.eq.s32.totalorder %s87, 0
      %s90 = sadd.s32 %s89, 1
      %s91 = scalar_select %p88, %s89, %s90
      %p94 = pneg %p88
      %p95 = scmp.eq.s32.totalorder %s29, 3
      %p96 = por %p94, %p95
      %p97 = scmp.ne.s32.totalorder %s89, %s92
      %p98 = scmp.eq.s32.totalorder %s29, 0
      %p99 = por %p97, %p98
      %p100 = scmp.ne.s32.totalorder %s89, %s92
      %p101 = scmp.eq.s32.totalorder %s34, 3
      %p102 = por %p100, %p101
      %p103 = scmp.ne.s32.totalorder %s92, %s93
      %p104 = scmp.eq.s32.totalorder %s34, 0
      %p105 = por %p103, %p104
      %p106 = scmp.ne.s32.totalorder %s92, %s93
      %p107 = scmp.eq.s32.totalorder %s35, 3
      %p108 = por %p106, %p107
      %p110 = scmp.ne.s32.totalorder %s93, %s109
      %p111 = scmp.eq.s32.totalorder %s35, 0
      %p112 = por %p110, %p111
      %s113 = sadd.s32 %s37, 1
      %s114 = smul.u32 %s113, 4
      %p115 = scmp.lt.s32.totalorder %s114, 7
      %s116 = scalar_select %p115, %s114, 7
      %s117 = sadd.s32 %s44, 1
      %s118 = smul.u32 %s117, 4
      %p119 = scmp.lt.s32.totalorder %s118, 7
      %s120 = scalar_select %p119, %s118, 7
      %s121 = ssub.s32 %s36, %s48
      %s122 = ssub.s32 %s116, %s120
      %s123 = sor.u32 %s121, %s122
      %p124 = scmp.eq.s32.totalorder %s123, 0
      %s126 = sadd.s32 %s125, 1
      %s127 = scalar_select %p124, %s125, %s126
      %p130 = pneg %p124
      %p131 = scmp.eq.s32.totalorder %s29, 3
      %p132 = por %p130, %p131
      %p133 = scmp.ne.s32.totalorder %s125, %s128
      %p134 = scmp.eq.s32.totalorder %s29, 0
      %p135 = por %p133, %p134
      %p136 = scmp.ne.s32.totalorder %s125, %s128
      %p137 = scmp.eq.s32.totalorder %s34, 3
      %p138 = por %p136, %p137
      %p139 = scmp.ne.s32.totalorder %s128, %s129
      %p140 = scmp.eq.s32.totalorder %s34, 0
      %p141 = por %p139, %p140
      %p142 = scmp.ne.s32.totalorder %s128, %s129
      %p143 = scmp.eq.s32.totalorder %s35, 3
      %p144 = por %p142, %p143
      %p146 = scmp.ne.s32.totalorder %s129, %s145
      %p147 = scmp.eq.s32.totalorder %s35, 0
      %p148 = por %p146, %p147
      %s150 = sadd.s32 %s149, 1
      %p153 = scmp.eq.s32.totalorder %s29, 3
      %p154 = scmp.ne.s32.totalorder %s149, %s151
      %p155 = scmp.eq.s32.totalorder %s29, 0
      %p156 = por %p154, %p155
      %p157 = scmp.ne.s32.totalorder %s149, %s151
      %p158 = scmp.eq.s32.totalorder %s34, 3
      %p159 = por %p157, %p158
      %p160 = scmp.ne.s32.totalorder %s151, %s152
      %p161 = scmp.eq.s32.totalorder %s34, 0
      %p162 = por %p160, %p161
      %p163 = scmp.ne.s32.totalorder %s151, %s152
      %p164 = scmp.eq.s32.totalorder %s35, 3
      %p165 = por %p163, %p164
      %p167 = scmp.ne.s32.totalorder %s152, %s166
      %p168 = scmp.eq.s32.totalorder %s35, 0
      %p169 = por %p167, %p168
      %s171 = sadd.s32 %s170, 1
      %p174 = scmp.eq.s32.totalorder %s29, 3
      %p175 = scmp.ne.s32.totalorder %s170, %s172
      %p176 = scmp.eq.s32.totalorder %s29, 0
      %p177 = por %p175, %p176
      %p178 = scmp.ne.s32.totalorder %s170, %s172
      %p179 = scmp.eq.s32.totalorder %s34, 3
      %p180 = por %p178, %p179
      %p181 = scmp.ne.s32.totalorder %s172, %s173
      %p182 = scmp.eq.s32.totalorder %s34, 0
      %p183 = por %p181, %p182
      %p184 = scmp.ne.s32.totalorder %s172, %s173
      %p185 = scmp.eq.s32.totalorder %s35, 3
      %p186 = por %p184, %p185
      %p188 = scmp.ne.s32.totalorder %s173, %s187
      %p189 = scmp.eq.s32.totalorder %s35, 0
      %p190 = por %p188, %p189
      %s192 = sadd.s32 %s191, 1
      %p195 = scmp.eq.s32.totalorder %s29, 3
      %p196 = scmp.ne.s32.totalorder %s191, %s193
      %p197 = scmp.eq.s32.totalorder %s29, 0
      %p198 = por %p196, %p197
      %p199 = scmp.ne.s32.totalorder %s191, %s193
      %p200 = scmp.eq.s32.totalorder %s34, 3
      %p201 = por %p199, %p200
      %p202 = scmp.ne.s32.totalorder %s193, %s194
      %p203 = scmp.eq.s32.totalorder %s34, 0
      %p204 = por %p202, %p203
      %p205 = scmp.ne.s32.totalorder %s193, %s194
      %p206 = scmp.eq.s32.totalorder %s35, 3
      %p207 = por %p205, %p206
      %p209 = scmp.ne.s32.totalorder %s194, %s208
      %p210 = scmp.eq.s32.totalorder %s35, 0
      %p211 = por %p209, %p210
      %s213 = sadd.s32 %s212, 1
      %p216 = scmp.eq.s32.totalorder %s29, 3
      %p217 = scmp.ne.s32.totalorder %s212, %s214
      %p218 = scmp.eq.s32.totalorder %s29, 0
      %p219 = por %p217, %p218
      %p220 = scmp.ne.s32.totalorder %s212, %s214
      %p221 = scmp.eq.s32.totalorder %s34, 3
      %p222 = por %p220, %p221
      %p223 = scmp.ne.s32.totalorder %s214, %s215
      %p224 = scmp.eq.s32.totalorder %s34, 0
      %p225 = por %p223, %p224
      %p226 = scmp.ne.s32.totalorder %s214, %s215
      %p227 = scmp.eq.s32.totalorder %s35, 3
      %p228 = por %p226, %p227
      %p230 = scmp.ne.s32.totalorder %s215, %s229
      %p231 = scmp.eq.s32.totalorder %s35, 0
      %p232 = por %p230, %p231
      %s233 = ssub.s32 %s36, %s48
      %s234 = ssub.s32 %s37, %s44
      %s235 = sor.u32 %s233, %s234
      %p236 = scmp.eq.s32.totalorder %s235, 0
      %s238 = sadd.s32 %s237, 1
      %s239 = scalar_select %p236, %s237, %s238
      %p242 = pneg %p236
      %p243 = scmp.eq.s32.totalorder %s29, 3
      %p244 = por %p242, %p243
      %p245 = scmp.ne.s32.totalorder %s237, %s240
      %p246 = scmp.eq.s32.totalorder %s29, 0
      %p247 = por %p245, %p246
      %p248 = scmp.ne.s32.totalorder %s237, %s240
      %p249 = scmp.eq.s32.totalorder %s34, 3
      %p250 = por %p248, %p249
      %p251 = scmp.ne.s32.totalorder %s240, %s241
      %p252 = scmp.eq.s32.totalorder %s34, 0
      %p253 = por %p251, %p252
      %p254 = scmp.ne.s32.totalorder %s240, %s241
      %p255 = scmp.eq.s32.totalorder %s35, 3
      %p256 = por %p254, %p255
      %p258 = scmp.ne.s32.totalorder %s241, %s257
      %p259 = scmp.eq.s32.totalorder %s35, 0
      %p260 = por %p258, %p259
      %s261 = ssub.s32 %s36, %s48
      %s262 = ssub.s32 %s37, %s44
      %s263 = sor.u32 %s261, %s262
      %p264 = scmp.eq.s32.totalorder %s263, 0
      %s266 = sadd.s32 %s265, 1
      %s267 = scalar_select %p264, %s265, %s266
      %p270 = pneg %p264
      %p271 = scmp.eq.s32.totalorder %s29, 3
      %p272 = por %p270, %p271
      %p273 = scmp.ne.s32.totalorder %s265, %s268
      %p274 = scmp.eq.s32.totalorder %s29, 0
      %p275 = por %p273, %p274
      %p276 = scmp.ne.s32.totalorder %s265, %s268
      %p277 = scmp.eq.s32.totalorder %s34, 3
      %p278 = por %p276, %p277
      %p279 = scmp.ne.s32.totalorder %s268, %s269
      %p280 = scmp.eq.s32.totalorder %s34, 0
      %p281 = por %p279, %p280
      %p282 = scmp.ne.s32.totalorder %s268, %s269
      %p283 = scmp.eq.s32.totalorder %s35, 3
      %p284 = por %p282, %p283
      %p286 = scmp.ne.s32.totalorder %s269, %s285
      %p287 = scmp.eq.s32.totalorder %s35, 0
      %p288 = por %p286, %p287
      %p289 = scmp.le.s32.totalorder 1, %s29
      %p290 = scmp.lt.s32.totalorder %s29, 5
      %p291 = pnand %p289, %p290
      %p292 = pneg %p291
      // Predicated region
      $region9: #{skipmodule_forward.4} parent=5 // pred_check
        _
      $region10: #{skipmodule_forward.4} parent=5 // pred_check_branch
        %294 = sbr.rel (%p291) target = $region12
      $region11: #{skipmodule_forward.4} parent=5 // pred_region
        %s295 = ssub.s32 %s29, 1
        // Predicated region
        $region13: #{skipmodule_forward.4} parent=11 // pred_check
          %p296 = pneg %p162
        $region14: #{skipmodule_forward.4} parent=11 // pred_check_branch
          %298 = sbr.rel (%p296) target = $region16
        $region15: #{skipmodule_forward.4} parent=11 // pred_region
          %s300 = ssub.s32 16, 16
          %301 = vsyncadd [#allocation10], %s300
          %s303 = sshll.u32 [#allocation9], 4
          %s304 = int_to_ptr.vmem [resolvable:$true] %s303
          %306 = dma.hbm_to_vmem [thread:$0]  %s3, 16, %s304, [#allocation10]
        $region16: #{skipmodule_forward.4} parent=11 // pred_fallthru
          _
        // Predicated region
        $region17: #{skipmodule_forward.4} parent=11 // pred_check
          %p307 = pneg %p183
        $region18: #{skipmodule_forward.4} parent=11 // pred_check_branch
          %309 = sbr.rel (%p307) target = $region20
        $region19: #{skipmodule_forward.4} parent=11 // pred_region
          %s311 = ssub.s32 16, 16
          %312 = vsyncadd [#allocation10], %s311
          %s314 = sshll.u32 [#allocation11], 4
          %s315 = int_to_ptr.vmem [resolvable:$true] %s314
          %317 = dma.hbm_to_vmem [thread:$0]  %s4, 16, %s315, [#allocation10]
        $region20: #{skipmodule_forward.4} parent=11 // pred_fallthru
          _
        // Predicated region
        $region21: #{skipmodule_forward.4} parent=11 // pred_check
          %p318 = pneg %p204
        $region22: #{skipmodule_forward.4} parent=11 // pred_check_branch
          %320 = sbr.rel (%p318) target = $region24
        $region23: #{skipmodule_forward.4} parent=11 // pred_region
          %s322 = ssub.s32 9216, 9216
          %323 = vsyncadd [#allocation13], %s322
          %s324 = sshll.u32 [#allocation12], 4
          %s325 = int_to_ptr.vmem [resolvable:$true] %s324
          %330 = dma.hbm_to_vmem [thread:$0]  %s5, 9216, %s325, [#allocation13], 64, 64, 4
        $region24: #{skipmodule_forward.4} parent=11 // pred_fallthru
          _
        // Predicated region
        $region25: #{skipmodule_forward.4} parent=11 // pred_check
          %p331 = pneg %p225
        $region26: #{skipmodule_forward.4} parent=11 // pred_check_branch
          %333 = sbr.rel (%p331) target = $region28
        $region27: #{skipmodule_forward.4} parent=11 // pred_region
          %s335 = ssub.s32 16, 16
          %336 = vsyncadd [#allocation13], %s335
          %s338 = sshll.u32 [#allocation14], 4
          %s339 = int_to_ptr.vmem [resolvable:$true] %s338
          %341 = dma.hbm_to_vmem [thread:$0]  %s6, 16, %s339, [#allocation13]
        $region28: #{skipmodule_forward.4} parent=11 // pred_fallthru
          _
      $region12: #{skipmodule_forward.4} parent=5 // pred_fallthru
        _
      %p342 = scmp.lt.s32.totalorder %s29, 4
      // Predicated region
      $region29: #{skipmodule_forward.4} parent=5 // pred_check
        %p343 = pneg %p342
      $region30: #{skipmodule_forward.4} parent=5 // pred_check_branch
        %345 = sbr.rel (%p343) target = $region32
      $region31: #{skipmodule_forward.4} parent=5 // pred_region
        // Predicated region
        $region33: #{skipmodule_forward.4} parent=31 // pred_check
          %p346 = pneg %p63
        $region34: #{skipmodule_forward.4} parent=31 // pred_check_branch
          %348 = sbr.rel (%p346) target = $region36
        $region35: #{skipmodule_forward.4} parent=31 // pred_region
          %s349 = sand.u32 %s53, 1
          %s350 = scalar_lea.sflag [#allocation4], %s349
          %s351 = sand.u32 %s53, 1
          %s352 = smul.addr %s351, 32
          %s353 = scalar_lea.vmem [#allocation3], %s352
          %s354 = smul.u32 4, %s37
          %s356 = ssub.s32 512, 512
          %357 = vsyncadd %s350, %s356
          %s358 = smul.addr %s36, 8
          %s359 = sadd.s32 %s354, %s358
          %s360 = smul.addr %s359, 128
          %s361 = scalar_lea.hbm %s0, %s360
          %s362 = sshll.u32 %s353, 4
          %s363 = int_to_ptr.vmem [resolvable:$true] %s362
          %368 = dma.hbm_to_vmem [thread:$0]  %s361, 512, %s363, %s350, 128, 128, 8
        $region36: #{skipmodule_forward.4} parent=31 // pred_fallthru
          _
        // Predicated region
        $region37: #{skipmodule_forward.4} parent=31 // pred_check
          %p369 = pneg %p99
        $region38: #{skipmodule_forward.4} parent=31 // pred_check_branch
          %371 = sbr.rel (%p369) target = $region40
        $region39: #{skipmodule_forward.4} parent=31 // pred_region
          %s372 = sand.u32 %s29, 1
          %s373 = scalar_lea.sflag [#allocation7], %s372
          %s374 = sand.u32 %s89, 1
          %s375 = smul.addr %s374, 8
          %s376 = scalar_lea.vmem [#allocation6], %s375
          %s377 = smul.u32 %s37, 4
          %s378 = ssub.s32 %s377, 1
          %p379 = scmp.gt.s32.totalorder %s378, 0
          %s380 = scalar_select %p379, %s378, 0
          %s382 = ssub.s32 128, 128
          %383 = vsyncadd %s373, %s382
          %s384 = smul.addr %s36, 8
          %s385 = sadd.s32 %s380, %s384
          %s386 = smul.addr %s385, 128
          %s387 = scalar_lea.hbm %s1, %s386
          %s389 = sshll.u32 %s376, 4
          %s390 = int_to_ptr.vmem [resolvable:$true] %s389
          %392 = dma.hbm_to_vmem [thread:$0]  %s387, 128, %s390, %s373
        $region40: #{skipmodule_forward.4} parent=31 // pred_fallthru
          _
        // Predicated region
        $region41: #{skipmodule_forward.4} parent=31 // pred_check
          %p393 = pneg %p135
        $region42: #{skipmodule_forward.4} parent=31 // pred_check_branch
          %395 = sbr.rel (%p393) target = $region44
        $region43: #{skipmodule_forward.4} parent=31 // pred_region
          %s396 = sand.u32 %s29, 1
          %s397 = scalar_lea.sflag [#allocation7], %s396
          %s398 = sand.u32 %s125, 1
          %s399 = smul.addr %s398, 8
          %s400 = scalar_lea.vmem [#allocation8], %s399
          %s401 = sadd.s32 %s37, 1
          %s402 = smul.u32 %s401, 4
          %p403 = scmp.lt.s32.totalorder %s402, 7
          %s404 = scalar_select %p403, %s402, 7
          %s406 = ssub.s32 128, 128
          %407 = vsyncadd %s397, %s406
          %s408 = smul.addr %s36, 8
          %s409 = sadd.s32 %s404, %s408
          %s410 = smul.addr %s409, 128
          %s411 = scalar_lea.hbm %s2, %s410
          %s413 = sshll.u32 %s400, 4
          %s414 = int_to_ptr.vmem [resolvable:$true] %s413
          %416 = dma.hbm_to_vmem [thread:$0]  %s411, 128, %s414, %s397
        $region44: #{skipmodule_forward.4} parent=31 // pred_fallthru
          _
      $region32: #{skipmodule_forward.4} parent=5 // pred_fallthru
        _
      %p417 = scmp.le.s32.totalorder 1, %s29
      %p418 = scmp.lt.s32.totalorder %s29, 5
      %p419 = pnand %p417, %p418
      %p420 = pneg %p419
      // Predicated region
      $region45: #{skipmodule_forward.4} parent=5 // pred_check
        _
      $region46: #{skipmodule_forward.4} parent=5 // pred_check_branch
        %422 = sbr.rel (%p419) target = $region48
      $region47: #{skipmodule_forward.4} parent=5 // pred_region
        %s423 = ssub.s32 %s29, 1
        %s424 = sand.u32 %s56, 1
        %s425 = scalar_lea.sflag [#allocation4], %s424
        %s426 = sand.u32 %s56, 1
        %s427 = smul.addr %s426, 32
        %s428 = scalar_lea.vmem [#allocation3], %s427
        // Predicated region
        $region49: #{skipmodule_forward.4} parent=47 // pred_check
          %p429 = pneg %p69
        $region50: #{skipmodule_forward.4} parent=47 // pred_check_branch
          %431 = sbr.rel (%p429) target = $region52
        $region51: #{skipmodule_forward.4} parent=47 // pred_region
          %432 = dma.done %s425, 512
        $region52: #{skipmodule_forward.4} parent=47 // pred_fallthru
          _
        %s433 = sand.u32 %s34, 1
        %s434 = scalar_lea.sflag [#allocation7], %s433
        %s435 = sand.u32 %s92, 1
        %s436 = smul.addr %s435, 8
        %s437 = scalar_lea.vmem [#allocation6], %s436
        // Predicated region
        $region53: #{skipmodule_forward.4} parent=47 // pred_check
          %p438 = pneg %p105
        $region54: #{skipmodule_forward.4} parent=47 // pred_check_branch
          %440 = sbr.rel (%p438) target = $region56
        $region55: #{skipmodule_forward.4} parent=47 // pred_region
          %441 = dma.done %s434, 128
        $region56: #{skipmodule_forward.4} parent=47 // pred_fallthru
          _
        %s442 = sand.u32 %s34, 1
        %s443 = scalar_lea.sflag [#allocation7], %s442
        %s444 = sand.u32 %s128, 1
        %s445 = smul.addr %s444, 8
        %s446 = scalar_lea.vmem [#allocation8], %s445
        // Predicated region
        $region57: #{skipmodule_forward.4} parent=47 // pred_check
          %p447 = pneg %p141
        $region58: #{skipmodule_forward.4} parent=47 // pred_check_branch
          %449 = sbr.rel (%p447) target = $region60
        $region59: #{skipmodule_forward.4} parent=47 // pred_region
          %450 = dma.done %s443, 128
        $region60: #{skipmodule_forward.4} parent=47 // pred_fallthru
          _
        // Predicated region
        $region61: #{skipmodule_forward.4} parent=47 // pred_check
          %p451 = pneg %p162
        $region62: #{skipmodule_forward.4} parent=47 // pred_check_branch
          %453 = sbr.rel (%p451) target = $region64
        $region63: #{skipmodule_forward.4} parent=47 // pred_region
          %454 = dma.done [#allocation10], 16
        $region64: #{skipmodule_forward.4} parent=47 // pred_fallthru
          _
        // Predicated region
        $region65: #{skipmodule_forward.4} parent=47 // pred_check
          %p455 = pneg %p183
        $region66: #{skipmodule_forward.4} parent=47 // pred_check_branch
          %457 = sbr.rel (%p455) target = $region68
        $region67: #{skipmodule_forward.4} parent=47 // pred_region
          %458 = dma.done [#allocation10], 16
        $region68: #{skipmodule_forward.4} parent=47 // pred_fallthru
          _
        // Predicated region
        $region69: #{skipmodule_forward.4} parent=47 // pred_check
          %p459 = pneg %p204
        $region70: #{skipmodule_forward.4} parent=47 // pred_check_branch
          %461 = sbr.rel (%p459) target = $region72
        $region71: #{skipmodule_forward.4} parent=47 // pred_region
          %462 = dma.done [#allocation13], 9216
        $region72: #{skipmodule_forward.4} parent=47 // pred_fallthru
          _
        // Predicated region
        $region73: #{skipmodule_forward.4} parent=47 // pred_check
          %p463 = pneg %p225
        $region74: #{skipmodule_forward.4} parent=47 // pred_check_branch
          %465 = sbr.rel (%p463) target = $region76
        $region75: #{skipmodule_forward.4} parent=47 // pred_region
          %466 = dma.done [#allocation13], 16
        $region76: #{skipmodule_forward.4} parent=47 // pred_fallthru
          _
        %s467 = sand.u32 %s56, 1
        %s468 = scalar_lea.sflag [#allocation4], %s467
        %s469 = sand.u32 %s56, 1
        %s470 = smul.addr %s469, 32
        %s471 = scalar_lea.vmem [#allocation3], %s470
        %p472 = pneg %p69
        %p473 = pneg %p66
        %s474 = sand.u32 %s34, 1
        %s475 = scalar_lea.sflag [#allocation7], %s474
        %s476 = sand.u32 %s92, 1
        %s477 = smul.addr %s476, 8
        %s478 = scalar_lea.vmem [#allocation6], %s477
        %p479 = pneg %p105
        %p480 = pneg %p102
        %s481 = sand.u32 %s34, 1
        %s482 = scalar_lea.sflag [#allocation7], %s481
        %s483 = sand.u32 %s128, 1
        %s484 = smul.addr %s483, 8
        %s485 = scalar_lea.vmem [#allocation8], %s484
        %p486 = pneg %p141
        %p487 = pneg %p138
        %p488 = pneg %p162
        %p489 = pneg %p159
        %p490 = pneg %p183
        %p491 = pneg %p180
        %p492 = pneg %p204
        %p493 = pneg %p201
        %p494 = pneg %p225
        %p495 = pneg %p222
        %p496 = pneg %p253
        %p497 = pneg %p250
        %s498 = sand.u32 %s240, 1
        %s499 = scalar_lea.sflag [#allocation5], %s498
        %s500 = sand.u32 %s240, 1
        %s501 = smul.addr %s500, 32
        %s502 = scalar_lea.vmem [#allocation15], %s501
        %p503 = pneg %p281
        %p504 = pneg %p278
        %s505 = sand.u32 %s268, 1
        %s506 = scalar_lea.sflag [#allocation17], %s505
        %s507 = sand.u32 %s268, 1
        %s508 = smul.addr %s507, 2
        %s509 = scalar_lea.vmem [#allocation16], %s508
        %s510 = smul.u32 4, %s39
        %s511 = smul.u32 %s39, 4
        %s512 = ssub.s32 %s511, 1
        %p513 = scmp.gt.s32.totalorder %s512, 0
        %s514 = scalar_select %p513, %s512, 0
        %s515 = sadd.s32 %s39, 1
        %s516 = smul.u32 %s515, 4
        %p517 = scmp.lt.s32.totalorder %s516, 7
        %s518 = scalar_select %p517, %s516, 7
        %s519 = smul.u32 4, %s39
        %v521 = vld [vmem:[#allocation9] sm:$0x1]
        %v522 = vld [vmem:[#allocation11] sm:$0x1]
        %v523 = vld [vmem:[%s428] sm:$0xff]
        %v524 = vld [vmem:[%s428 + $0x8] sm:$0xff]
        %v525 = vld [vmem:[%s428 + $0x10] sm:$0xff]
        %v526 = vld [vmem:[%s428 + $0x18] sm:$0xff]
        %v528 = vlaneseq
        %v529 = vshrl.u32 %v528, 7
        %v530 = vsub.s32 0, %v529
        %v531 = vrot.slane %v521, %v530
        %v533 = vmul.f32 %v523, %v531
        %v534 = vmul.f32 %v524, %v531
        %v535 = vmul.f32 %v525, %v531
        %v536 = vmul.f32 %v526, %v531
        %v538 = vlaneseq
        %v539 = vshrl.u32 %v538, 7
        %v540 = vsub.s32 0, %v539
        %v541 = vrot.slane %v522, %v540
        %v543 = vadd.f32 %v533, %v541
        %v544 = vadd.f32 %v534, %v541
        %v545 = vadd.f32 %v535, %v541
        %v546 = vadd.f32 %v536, %v541
        %v547 = vmul.f32 %v543, 0.5
        %v548 = vmul.f32 %v544, 0.5
        %v549 = vmul.f32 %v545, 0.5
        %v550 = vmul.f32 %v546, 0.5
        %v551 = vmul.f32 %v543, 0.70710677
        %v552 = vmul.f32 %v544, 0.70710677
        %v553 = vmul.f32 %v545, 0.70710677
        %v554 = vmul.f32 %v546, 0.70710677
        %vm555 = vcmp.ge.f32.partialorder %v551, 0.0
        %vm556 = vcmp.ge.f32.partialorder %v552, 0.0
        %vm557 = vcmp.ge.f32.partialorder %v553, 0.0
        %vm558 = vcmp.ge.f32.partialorder %v554, 0.0
        %v559 = vsel %vm555, 1.0, -1.0
        %v560 = vsel %vm556, 1.0, -1.0
        %v561 = vsel %vm557, 1.0, -1.0
        %v562 = vsel %vm558, 1.0, -1.0
        %v563 = vand.u32 2147483647, %v551
        %v564 = vand.u32 2147483647, %v552
        %v565 = vand.u32 2147483647, %v553
        %v566 = vand.u32 2147483647, %v554
        %v567 = vmul.f32 %v563, 0.3275911
        %v568 = vmul.f32 %v564, 0.3275911
        %v569 = vmul.f32 %v565, 0.3275911
        %v570 = vmul.f32 %v566, 0.3275911
        %v571 = vadd.f32 %v567, 1.0
        %v572 = vadd.f32 %v568, 1.0
        %v573 = vadd.f32 %v569, 1.0
        %v574 = vadd.f32 %v570, 1.0
        %v575 = vrcp.pop %v571
        %v576 = vrcp.pop %v572
        %v577 = vrcp.pop %v573
        %v578 = vrcp.pop %v574
        %v579 = vmul.f32 %v575, 1.0614054
        %v580 = vmul.f32 %v576, 1.0614054
        %v581 = vmul.f32 %v577, 1.0614054
        %v582 = vmul.f32 %v578, 1.0614054
        %v583 = vadd.f32 %v579, -1.4531521
        %v584 = vadd.f32 %v580, -1.4531521
        %v585 = vadd.f32 %v581, -1.4531521
        %v586 = vadd.f32 %v582, -1.4531521
        %v587 = vmul.f32 %v583, %v575
        %v588 = vmul.f32 %v584, %v576
        %v589 = vmul.f32 %v585, %v577
        %v590 = vmul.f32 %v586, %v578
        %v591 = vadd.f32 %v587, 1.4214138
        %v592 = vadd.f32 %v588, 1.4214138
        %v593 = vadd.f32 %v589, 1.4214138
        %v594 = vadd.f32 %v590, 1.4214138
        %v595 = vmul.f32 %v591, %v575
        %v596 = vmul.f32 %v592, %v576
        %v597 = vmul.f32 %v593, %v577
        %v598 = vmul.f32 %v594, %v578
        %v599 = vadd.f32 %v595, -0.28449672
        %v600 = vadd.f32 %v596, -0.28449672
        %v601 = vadd.f32 %v597, -0.28449672
        %v602 = vadd.f32 %v598, -0.28449672
        %v603 = vmul.f32 %v599, %v575
        %v604 = vmul.f32 %v600, %v576
        %v605 = vmul.f32 %v601, %v577
        %v606 = vmul.f32 %v602, %v578
        %v607 = vadd.f32 %v603, 0.2548296
        %v608 = vadd.f32 %v604, 0.2548296
        %v609 = vadd.f32 %v605, 0.2548296
        %v610 = vadd.f32 %v606, 0.2548296
        %v611 = vmul.f32 %v607, %v575
        %v612 = vmul.f32 %v608, %v576
        %v613 = vmul.f32 %v609, %v577
        %v614 = vmul.f32 %v610, %v578
        %v615 = vsub.f32 0.0, %v563
        %v616 = vsub.f32 0.0, %v564
        %v617 = vsub.f32 0.0, %v565
        %v618 = vsub.f32 0.0, %v566
        %v619 = vmul.f32 %v615, %v563
        %v620 = vmul.f32 %v616, %v564
        %v621 = vmul.f32 %v617, %v565
        %v622 = vmul.f32 %v618, %v566
        %v623 = vmul.f32 %v619, 1.442695
        %v624 = vpow.pop %v623
        %v625 = vmul.f32 %v620, 1.442695
        %v626 = vpow.pop %v625
        %v627 = vmul.f32 %v621, 1.442695
        %v628 = vpow.pop %v627
        %v629 = vmul.f32 %v622, 1.442695
        %v630 = vpow.pop %v629
        %v631 = vmul.f32 %v611, %v624
        %v632 = vmul.f32 %v612, %v626
        %v633 = vmul.f32 %v613, %v628
        %v634 = vmul.f32 %v614, %v630
        %v635 = vsub.f32 1.0, %v631
        %v636 = vsub.f32 1.0, %v632
        %v637 = vsub.f32 1.0, %v633
        %v638 = vsub.f32 1.0, %v634
        %v639 = vmul.f32 %v559, %v635
        %v640 = vmul.f32 %v560, %v636
        %v641 = vmul.f32 %v561, %v637
        %v642 = vmul.f32 %v562, %v638
        %v643 = vadd.f32 %v639, 1.0
        %v644 = vadd.f32 %v640, 1.0
        %v645 = vadd.f32 %v641, 1.0
        %v646 = vadd.f32 %v642, 1.0
        %v647 = vmul.f32 %v547, %v643
        %v648 = vmul.f32 %v548, %v644
        %v649 = vmul.f32 %v549, %v645
        %v650 = vmul.f32 %v550, %v646
        %v651 = vld [vmem:[%s437] sm:$0xff]
        %v652 = vmul.f32 %v651, %v531
        %v653 = vadd.f32 %v652, %v541
        %v654 = vmul.f32 %v653, 0.5
        %v655 = vmul.f32 %v653, 0.70710677
        %vm656 = vcmp.ge.f32.partialorder %v655, 0.0
        %v657 = vsel %vm656, 1.0, -1.0
        %v658 = vand.u32 2147483647, %v655
        %v659 = vmul.f32 %v658, 0.3275911
        %v660 = vadd.f32 %v659, 1.0
        %v661 = vrcp.pop %v660
        %v662 = vmul.f32 %v661, 1.0614054
        %v663 = vadd.f32 %v662, -1.4531521
        %v664 = vmul.f32 %v663, %v661
        %v665 = vadd.f32 %v664, 1.4214138
        %v666 = vmul.f32 %v665, %v661
        %v667 = vadd.f32 %v666, -0.28449672
        %v668 = vmul.f32 %v667, %v661
        %v669 = vadd.f32 %v668, 0.2548296
        %v670 = vmul.f32 %v669, %v661
        %v671 = vsub.f32 0.0, %v658
        %v672 = vmul.f32 %v671, %v658
        %v673 = vmul.f32 %v672, 1.442695
        %v674 = vpow.pop %v673
        %v675 = vmul.f32 %v670, %v674
        %v676 = vsub.f32 1.0, %v675
        %v677 = vmul.f32 %v657, %v676
        %v678 = vadd.f32 %v677, 1.0
        %v679 = vmul.f32 %v654, %v678
        %v680 = vld [vmem:[%s446] sm:$0xff]
        %v681 = vmul.f32 %v680, %v531
        %v682 = vadd.f32 %v681, %v541
        %v683 = vmul.f32 %v682, 0.5
        %v684 = vmul.f32 %v682, 0.70710677
        %vm685 = vcmp.ge.f32.partialorder %v684, 0.0
        %v686 = vsel %vm685, 1.0, -1.0
        %v687 = vand.u32 2147483647, %v684
        %v688 = vmul.f32 %v687, 0.3275911
        %v689 = vadd.f32 %v688, 1.0
        %v690 = vrcp.pop %v689
        %v691 = vmul.f32 %v690, 1.0614054
        %v692 = vadd.f32 %v691, -1.4531521
        %v693 = vmul.f32 %v692, %v690
        %v694 = vadd.f32 %v693, 1.4214138
        %v695 = vmul.f32 %v694, %v690
        %v696 = vadd.f32 %v695, -0.28449672
        %v697 = vmul.f32 %v696, %v690
        %v698 = vadd.f32 %v697, 0.2548296
        %v699 = vmul.f32 %v698, %v690
        %v700 = vsub.f32 0.0, %v687
        %v701 = vmul.f32 %v700, %v687
        %v702 = vmul.f32 %v701, 1.442695
        %v703 = vpow.pop %v702
        %v704 = vmul.f32 %v699, %v703
        %v705 = vsub.f32 1.0, %v704
        %v706 = vmul.f32 %v686, %v705
        %v707 = vadd.f32 %v706, 1.0
        %v708 = vmul.f32 %v683, %v707
        %p709 = scmp.gt.s32.totalorder %s39, 0
        %s710 = scalar_select %p709, 1, 0
        %s711 = scvt.s32.f32 %s710
        %v712 = vstv %s711
        %v713 = vmul.f32 %v679, %v712
        %p714 = scmp.lt.s32.totalorder %s39, 1
        %s715 = scalar_select %p714, 1, 0
        %s716 = scvt.s32.f32 %s715
        %v717 = vstv %s716
        %v718 = vmul.f32 %v708, %v717
        %719 = vst [vmem:[#allocation2] sm:$0x1] 0.0
        %720 = vst [vmem:[#allocation2 + $0x10] sm:$0x1] 0.0
        %721 = vst [vmem:[#allocation2 + $0x20] sm:$0x1] 0.0
        %722 = vst [vmem:[#allocation2 + $0x30] sm:$0x1] 0.0
        %723 = vst [vmem:[#allocation2 + $0x40] sm:$0x1] 0.0
        %724 = vst [vmem:[#allocation2 + $0x50] sm:$0x1] 0.0
        %725 = vst [vmem:[#allocation2 + $0x9] sm:$0x1] 0.0
        %726 = vst [vmem:[#allocation2 + $0x19] sm:$0x1] 0.0
        %727 = vst [vmem:[#allocation2 + $0x29] sm:$0x1] 0.0
        %728 = vst [vmem:[#allocation2 + $0x39] sm:$0x1] 0.0
        %729 = vst [vmem:[#allocation2 + $0x49] sm:$0x1] 0.0
        %730 = vst [vmem:[#allocation2 + $0x59] sm:$0x1] 0.0
        %731 = vst [vmem:[#allocation2 + $0x1] sm:$0xff] %v713
        %s732 = scalar_lea.vmem [#allocation2], 80
        %733 = vst [vmem:[%s732 + $0x1] sm:$0xff] %v718
        %s734 = scalar_lea.vmem [#allocation2], 16
        %735 = vst [vmem:[%s734 + $0x1] sm:$0xff] %v647
        %736 = vst [vmem:[%s734 + $0x11] sm:$0xff] %v648
        %737 = vst [vmem:[%s734 + $0x21] sm:$0xff] %v649
        %738 = vst [vmem:[%s734 + $0x31] sm:$0xff] %v650
        %v739 = vld [vmem:[#allocation2] sm:$0xff]
        %v740 = vld [vmem:[#allocation2 + $0x10] sm:$0xff]
        %v741 = vld [vmem:[#allocation2 + $0x20] sm:$0xff]
        %v742 = vld [vmem:[#allocation2 + $0x30] sm:$0xff]
        %v743 = vpack.c.bf16 %v740, %v739
        %v744 = vpack.c.bf16 %v742, %v741
        %v745 = vld [vmem:[#allocation2 + $0x1] sm:$0xff]
        %v746 = vld [vmem:[#allocation2 + $0x11] sm:$0xff]
        %v747 = vld [vmem:[#allocation2 + $0x21] sm:$0xff]
        %v748 = vld [vmem:[#allocation2 + $0x31] sm:$0xff]
        %v749 = vpack.c.bf16 %v746, %v745
        %v750 = vpack.c.bf16 %v748, %v747
        %v751 = vld [vmem:[#allocation2 + $0x2] sm:$0xff]
        %v752 = vld [vmem:[#allocation2 + $0x12] sm:$0xff]
        %v753 = vld [vmem:[#allocation2 + $0x22] sm:$0xff]
        %v754 = vld [vmem:[#allocation2 + $0x32] sm:$0xff]
        %v755 = vpack.c.bf16 %v752, %v751
        %v756 = vpack.c.bf16 %v754, %v753
        %v757 = vld [vmem:[%s734] sm:$0xff]
        %v758 = vld [vmem:[%s734 + $0x10] sm:$0xff]
        %v759 = vld [vmem:[%s734 + $0x20] sm:$0xff]
        %v760 = vld [vmem:[%s734 + $0x30] sm:$0xff]
        %v761 = vpack.c.bf16 %v758, %v757
        %v762 = vpack.c.bf16 %v760, %v759
        %v763 = vld [vmem:[%s734 + $0x1] sm:$0xff]
        %v764 = vld [vmem:[%s734 + $0x11] sm:$0xff]
        %v765 = vld [vmem:[%s734 + $0x21] sm:$0xff]
        %v766 = vld [vmem:[%s734 + $0x31] sm:$0xff]
        %v767 = vpack.c.bf16 %v764, %v763
        %v768 = vpack.c.bf16 %v766, %v765
        %v769 = vld [vmem:[%s734 + $0x2] sm:$0xff]
        %v770 = vld [vmem:[%s734 + $0x12] sm:$0xff]
        %v771 = vld [vmem:[%s734 + $0x22] sm:$0xff]
        %v772 = vld [vmem:[%s734 + $0x32] sm:$0xff]
        %v773 = vpack.c.bf16 %v770, %v769
        %v774 = vpack.c.bf16 %v772, %v771
        %s775 = scalar_lea.vmem [#allocation2], 32
        %v776 = vld [vmem:[%s775] sm:$0xff]
        %v777 = vld [vmem:[%s775 + $0x10] sm:$0xff]
        %v778 = vld [vmem:[%s775 + $0x20] sm:$0xff]
        %v779 = vld [vmem:[%s775 + $0x30] sm:$0xff]
        %v780 = vpack.c.bf16 %v777, %v776
        %v781 = vpack.c.bf16 %v779, %v778
        %v782 = vld [vmem:[%s775 + $0x1] sm:$0xff]
        %v783 = vld [vmem:[%s775 + $0x11] sm:$0xff]
        %v784 = vld [vmem:[%s775 + $0x21] sm:$0xff]
        %v785 = vld [vmem:[%s775 + $0x31] sm:$0xff]
        %v786 = vpack.c.bf16 %v783, %v782
        %v787 = vpack.c.bf16 %v785, %v784
        %v788 = vld [vmem:[%s775 + $0x2] sm:$0xff]
        %v789 = vld [vmem:[%s775 + $0x12] sm:$0xff]
        %v790 = vld [vmem:[%s775 + $0x22] sm:$0xff]
        %v791 = vld [vmem:[%s775 + $0x32] sm:$0xff]
        %v792 = vpack.c.bf16 %v789, %v788
        %v793 = vpack.c.bf16 %v791, %v790
        %v794 = vld [vmem:[#allocation12] sm:$0xf]
        %v795 = vld [vmem:[#allocation12 + $0x4] sm:$0xf]
        %v796 = vld [vmem:[#allocation12 + $0x8] sm:$0xf]
        %v797 = vld [vmem:[#allocation12 + $0xc] sm:$0xf]
        %v798 = vld [vmem:[#allocation12 + $0x10] sm:$0xf]
        %v799 = vld [vmem:[#allocation12 + $0x14] sm:$0xf]
        %v800 = vld [vmem:[#allocation12 + $0x18] sm:$0xf]
        %v801 = vld [vmem:[#allocation12 + $0x1c] sm:$0xf]
        %v802 = vld [vmem:[#allocation12 + $0x20] sm:$0xf]
        %v803 = vld [vmem:[#allocation12 + $0x24] sm:$0xf]
        %v804 = vld [vmem:[#allocation12 + $0x28] sm:$0xf]
        %v805 = vld [vmem:[#allocation12 + $0x2c] sm:$0xf]
        %v806 = vld [vmem:[#allocation12 + $0x30] sm:$0xf]
        %v807 = vld [vmem:[#allocation12 + $0x34] sm:$0xf]
        %v808 = vld [vmem:[#allocation12 + $0x38] sm:$0xf]
        %v809 = vld [vmem:[#allocation12 + $0x3c] sm:$0xf]
        %v810 = vld [vmem:[#allocation12 + $0x40] sm:$0xf]
        %v811 = vld [vmem:[#allocation12 + $0x44] sm:$0xf]
        %v812 = vld [vmem:[#allocation12 + $0x48] sm:$0xf]
        %v813 = vld [vmem:[#allocation12 + $0x4c] sm:$0xf]
        %v814 = vld [vmem:[#allocation12 + $0x50] sm:$0xf]
        %v815 = vld [vmem:[#allocation12 + $0x54] sm:$0xf]
        %v816 = vld [vmem:[#allocation12 + $0x58] sm:$0xf]
        %v817 = vld [vmem:[#allocation12 + $0x5c] sm:$0xf]
        %v818 = vld [vmem:[#allocation12 + $0x60] sm:$0xf]
        %v819 = vld [vmem:[#allocation12 + $0x64] sm:$0xf]
        %v820 = vld [vmem:[#allocation12 + $0x68] sm:$0xf]
        %v821 = vld [vmem:[#allocation12 + $0x6c] sm:$0xf]
        %v822 = vld [vmem:[#allocation12 + $0x70] sm:$0xf]
        %v823 = vld [vmem:[#allocation12 + $0x74] sm:$0xf]
        %v824 = vld [vmem:[#allocation12 + $0x78] sm:$0xf]
        %v825 = vld [vmem:[#allocation12 + $0x7c] sm:$0xf]
        %v826 = vld [vmem:[#allocation12 + $0x80] sm:$0xf]
        %v827 = vld [vmem:[#allocation12 + $0x84] sm:$0xf]
        %v828 = vld [vmem:[#allocation12 + $0x88] sm:$0xf]
        %v829 = vld [vmem:[#allocation12 + $0x8c] sm:$0xf]
        %v830 = vld [vmem:[#allocation12 + $0x90] sm:$0xf]
        %v831 = vld [vmem:[#allocation12 + $0x94] sm:$0xf]
        %v832 = vld [vmem:[#allocation12 + $0x98] sm:$0xf]
        %v833 = vld [vmem:[#allocation12 + $0x9c] sm:$0xf]
        %v834 = vld [vmem:[#allocation12 + $0xa0] sm:$0xf]
        %v835 = vld [vmem:[#allocation12 + $0xa4] sm:$0xf]
        %v836 = vld [vmem:[#allocation12 + $0xa8] sm:$0xf]
        %v837 = vld [vmem:[#allocation12 + $0xac] sm:$0xf]
        %v838 = vld [vmem:[#allocation12 + $0xb0] sm:$0xf]
        %v839 = vld [vmem:[#allocation12 + $0xb4] sm:$0xf]
        %v840 = vld [vmem:[#allocation12 + $0xb8] sm:$0xf]
        %v841 = vld [vmem:[#allocation12 + $0xbc] sm:$0xf]
        %v842 = vld [vmem:[#allocation12 + $0xc0] sm:$0xf]
        %v843 = vld [vmem:[#allocation12 + $0xc4] sm:$0xf]
        %v844 = vld [vmem:[#allocation12 + $0xc8] sm:$0xf]
        %v845 = vld [vmem:[#allocation12 + $0xcc] sm:$0xf]
        %v846 = vld [vmem:[#allocation12 + $0xd0] sm:$0xf]
        %v847 = vld [vmem:[#allocation12 + $0xd4] sm:$0xf]
        %v848 = vld [vmem:[#allocation12 + $0xd8] sm:$0xf]
        %v849 = vld [vmem:[#allocation12 + $0xdc] sm:$0xf]
        %v850 = vld [vmem:[#allocation12 + $0xe0] sm:$0xf]
        %v851 = vld [vmem:[#allocation12 + $0xe4] sm:$0xf]
        %v852 = vld [vmem:[#allocation12 + $0xe8] sm:$0xf]
        %v853 = vld [vmem:[#allocation12 + $0xec] sm:$0xf]
        %v854 = vld [vmem:[#allocation12 + $0xf0] sm:$0xf]
        %v855 = vld [vmem:[#allocation12 + $0xf4] sm:$0xf]
        %v856 = vld [vmem:[#allocation12 + $0xf8] sm:$0xf]
        %v857 = vld [vmem:[#allocation12 + $0xfc] sm:$0xf]
        %v858 = vld [vmem:[#allocation12 + $0x100] sm:$0xf]
        %v859 = vld [vmem:[#allocation12 + $0x104] sm:$0xf]
        %v860 = vld [vmem:[#allocation12 + $0x108] sm:$0xf]
        %v861 = vld [vmem:[#allocation12 + $0x10c] sm:$0xf]
        %v862 = vld [vmem:[#allocation12 + $0x110] sm:$0xf]
        %v863 = vld [vmem:[#allocation12 + $0x114] sm:$0xf]
        %v864 = vld [vmem:[#allocation12 + $0x118] sm:$0xf]
        %v865 = vld [vmem:[#allocation12 + $0x11c] sm:$0xf]
        %v866 = vld [vmem:[#allocation12 + $0x120] sm:$0xf]
        %v867 = vld [vmem:[#allocation12 + $0x124] sm:$0xf]
        %v868 = vld [vmem:[#allocation12 + $0x128] sm:$0xf]
        %v869 = vld [vmem:[#allocation12 + $0x12c] sm:$0xf]
        %v870 = vld [vmem:[#allocation12 + $0x130] sm:$0xf]
        %v871 = vld [vmem:[#allocation12 + $0x134] sm:$0xf]
        %v872 = vld [vmem:[#allocation12 + $0x138] sm:$0xf]
        %v873 = vld [vmem:[#allocation12 + $0x13c] sm:$0xf]
        %v874 = vld [vmem:[#allocation12 + $0x140] sm:$0xf]
        %v875 = vld [vmem:[#allocation12 + $0x144] sm:$0xf]
        %v876 = vld [vmem:[#allocation12 + $0x148] sm:$0xf]
        %v877 = vld [vmem:[#allocation12 + $0x14c] sm:$0xf]
        %v878 = vld [vmem:[#allocation12 + $0x150] sm:$0xf]
        %v879 = vld [vmem:[#allocation12 + $0x154] sm:$0xf]
        %v880 = vld [vmem:[#allocation12 + $0x158] sm:$0xf]
        %v881 = vld [vmem:[#allocation12 + $0x15c] sm:$0xf]
        %v882 = vld [vmem:[#allocation12 + $0x160] sm:$0xf]
        %v883 = vld [vmem:[#allocation12 + $0x164] sm:$0xf]
        %v884 = vld [vmem:[#allocation12 + $0x168] sm:$0xf]
        %v885 = vld [vmem:[#allocation12 + $0x16c] sm:$0xf]
        %v886 = vld [vmem:[#allocation12 + $0x170] sm:$0xf]
        %v887 = vld [vmem:[#allocation12 + $0x174] sm:$0xf]
        %v888 = vld [vmem:[#allocation12 + $0x178] sm:$0xf]
        %v889 = vld [vmem:[#allocation12 + $0x17c] sm:$0xf]
        %v890 = vld [vmem:[#allocation12 + $0x180] sm:$0xf]
        %v891 = vld [vmem:[#allocation12 + $0x184] sm:$0xf]
        %v892 = vld [vmem:[#allocation12 + $0x188] sm:$0xf]
        %v893 = vld [vmem:[#allocation12 + $0x18c] sm:$0xf]
        %v894 = vld [vmem:[#allocation12 + $0x190] sm:$0xf]
        %v895 = vld [vmem:[#allocation12 + $0x194] sm:$0xf]
        %v896 = vld [vmem:[#allocation12 + $0x198] sm:$0xf]
        %v897 = vld [vmem:[#allocation12 + $0x19c] sm:$0xf]
        %v898 = vld [vmem:[#allocation12 + $0x1a0] sm:$0xf]
        %v899 = vld [vmem:[#allocation12 + $0x1a4] sm:$0xf]
        %v900 = vld [vmem:[#allocation12 + $0x1a8] sm:$0xf]
        %v901 = vld [vmem:[#allocation12 + $0x1ac] sm:$0xf]
        %v902 = vld [vmem:[#allocation12 + $0x1b0] sm:$0xf]
        %v903 = vld [vmem:[#allocation12 + $0x1b4] sm:$0xf]
        %v904 = vld [vmem:[#allocation12 + $0x1b8] sm:$0xf]
        %v905 = vld [vmem:[#allocation12 + $0x1bc] sm:$0xf]
        %v906 = vld [vmem:[#allocation12 + $0x1c0] sm:$0xf]
        %v907 = vld [vmem:[#allocation12 + $0x1c4] sm:$0xf]
        %v908 = vld [vmem:[#allocation12 + $0x1c8] sm:$0xf]
        %v909 = vld [vmem:[#allocation12 + $0x1cc] sm:$0xf]
        %v910 = vld [vmem:[#allocation12 + $0x1d0] sm:$0xf]
        %v911 = vld [vmem:[#allocation12 + $0x1d4] sm:$0xf]
        %v912 = vld [vmem:[#allocation12 + $0x1d8] sm:$0xf]
        %v913 = vld [vmem:[#allocation12 + $0x1dc] sm:$0xf]
        %v914 = vld [vmem:[#allocation12 + $0x1e0] sm:$0xf]
        %v915 = vld [vmem:[#allocation12 + $0x1e4] sm:$0xf]
        %v916 = vld [vmem:[#allocation12 + $0x1e8] sm:$0xf]
        %v917 = vld [vmem:[#allocation12 + $0x1ec] sm:$0xf]
        %v918 = vld [vmem:[#allocation12 + $0x1f0] sm:$0xf]
        %v919 = vld [vmem:[#allocation12 + $0x1f4] sm:$0xf]
        %v920 = vld [vmem:[#allocation12 + $0x1f8] sm:$0xf]
        %v921 = vld [vmem:[#allocation12 + $0x1fc] sm:$0xf]
        %v922 = vld [vmem:[#allocation12 + $0x200] sm:$0xf]
        %v923 = vld [vmem:[#allocation12 + $0x204] sm:$0xf]
        %v924 = vld [vmem:[#allocation12 + $0x208] sm:$0xf]
        %v925 = vld [vmem:[#allocation12 + $0x20c] sm:$0xf]
        %v926 = vld [vmem:[#allocation12 + $0x210] sm:$0xf]
        %v927 = vld [vmem:[#allocation12 + $0x214] sm:$0xf]
        %v928 = vld [vmem:[#allocation12 + $0x218] sm:$0xf]
        %v929 = vld [vmem:[#allocation12 + $0x21c] sm:$0xf]
        %v930 = vld [vmem:[#allocation12 + $0x220] sm:$0xf]
        %v931 = vld [vmem:[#allocation12 + $0x224] sm:$0xf]
        %v932 = vld [vmem:[#allocation12 + $0x228] sm:$0xf]
        %v933 = vld [vmem:[#allocation12 + $0x22c] sm:$0xf]
        %v934 = vld [vmem:[#allocation12 + $0x230] sm:$0xf]
        %v935 = vld [vmem:[#allocation12 + $0x234] sm:$0xf]
        %v936 = vld [vmem:[#allocation12 + $0x238] sm:$0xf]
        %v937 = vld [vmem:[#allocation12 + $0x23c] sm:$0xf]
        %v938 = vld [vmem:[#allocation14] sm:$0x1]
        %v940 = vlaneseq
        %v941 = vshrl.u32 %v940, 7
        %v942 = vsub.s32 0, %v941
        %v943 = vrot.slane %v938, %v942
        %v1089 = vunpack.c.l.b16 %v794
        %v1090 = vunpack.c.l.b16 %v795
        %v1091 = vunpack.c.l.b16 %v796
        %v1092 = vunpack.c.l.b16 %v797
        %v1093 = vunpack.c.l.b16 %v798
        %v1094 = vunpack.c.l.b16 %v799
        %v1095 = vunpack.c.l.b16 %v800
        %v1096 = vunpack.c.l.b16 %v801
        %v1097 = vunpack.c.l.b16 %v802
        %v1098 = vunpack.c.l.b16 %v803
        %v1099 = vunpack.c.l.b16 %v804
        %v1100 = vunpack.c.l.b16 %v805
        %v1101 = vunpack.c.l.b16 %v806
        %v1102 = vunpack.c.l.b16 %v807
        %v1103 = vunpack.c.l.b16 %v808
        %v1104 = vunpack.c.l.b16 %v809
        %v1105 = vunpack.c.l.b16 %v810
        %v1106 = vunpack.c.l.b16 %v811
        %v1107 = vunpack.c.l.b16 %v812
        %v1108 = vunpack.c.l.b16 %v813
        %v1109 = vunpack.c.l.b16 %v814
        %v1110 = vunpack.c.l.b16 %v815
        %v1111 = vunpack.c.l.b16 %v816
        %v1112 = vunpack.c.l.b16 %v817
        %v1113 = vunpack.c.l.b16 %v818
        %v1114 = vunpack.c.l.b16 %v819
        %v1115 = vunpack.c.l.b16 %v820
        %v1116 = vunpack.c.l.b16 %v821
        %v1117 = vunpack.c.l.b16 %v822
        %v1118 = vunpack.c.l.b16 %v823
        %v1119 = vunpack.c.l.b16 %v824
        %v1120 = vunpack.c.l.b16 %v825
        %v1121 = vunpack.c.l.b16 %v826
        %v1122 = vunpack.c.l.b16 %v827
        %v1123 = vunpack.c.l.b16 %v828
        %v1124 = vunpack.c.l.b16 %v829
        %v1125 = vunpack.c.l.b16 %v830
        %v1126 = vunpack.c.l.b16 %v831
        %v1127 = vunpack.c.l.b16 %v832
        %v1128 = vunpack.c.l.b16 %v833
        %v1129 = vunpack.c.l.b16 %v834
        %v1130 = vunpack.c.l.b16 %v835
        %v1131 = vunpack.c.l.b16 %v836
        %v1132 = vunpack.c.l.b16 %v837
        %v1133 = vunpack.c.l.b16 %v838
        %v1134 = vunpack.c.l.b16 %v839
        %v1135 = vunpack.c.l.b16 %v840
        %v1136 = vunpack.c.l.b16 %v841
        %v1137 = vunpack.c.l.b16 %v842
        %v1138 = vunpack.c.l.b16 %v843
        %v1139 = vunpack.c.l.b16 %v844
        %v1140 = vunpack.c.l.b16 %v845
        %v1141 = vunpack.c.l.b16 %v846
        %v1142 = vunpack.c.l.b16 %v847
        %v1143 = vunpack.c.l.b16 %v848
        %v1144 = vunpack.c.l.b16 %v849
        %v1145 = vunpack.c.l.b16 %v850
        %v1146 = vunpack.c.l.b16 %v851
        %v1147 = vunpack.c.l.b16 %v852
        %v1148 = vunpack.c.l.b16 %v853
        %v1149 = vunpack.c.l.b16 %v854
        %v1150 = vunpack.c.l.b16 %v855
        %v1151 = vunpack.c.l.b16 %v856
        %v1152 = vunpack.c.l.b16 %v857
        %v1153 = vunpack.c.l.b16 %v858
        %v1154 = vunpack.c.l.b16 %v859
        %v1155 = vunpack.c.l.b16 %v860
        %v1156 = vunpack.c.l.b16 %v861
        %v1157 = vunpack.c.l.b16 %v862
        %v1158 = vunpack.c.l.b16 %v863
        %v1159 = vunpack.c.l.b16 %v864
        %v1160 = vunpack.c.l.b16 %v865
        %v1161 = vunpack.c.l.b16 %v866
        %v1162 = vunpack.c.l.b16 %v867
        %v1163 = vunpack.c.l.b16 %v868
        %v1164 = vunpack.c.l.b16 %v869
        %v1165 = vunpack.c.l.b16 %v870
        %v1166 = vunpack.c.l.b16 %v871
        %v1167 = vunpack.c.l.b16 %v872
        %v1168 = vunpack.c.l.b16 %v873
        %v1169 = vunpack.c.l.b16 %v874
        %v1170 = vunpack.c.l.b16 %v875
        %v1171 = vunpack.c.l.b16 %v876
        %v1172 = vunpack.c.l.b16 %v877
        %v1173 = vunpack.c.l.b16 %v878
        %v1174 = vunpack.c.l.b16 %v879
        %v1175 = vunpack.c.l.b16 %v880
        %v1176 = vunpack.c.l.b16 %v881
        %v1177 = vunpack.c.l.b16 %v882
        %v1178 = vunpack.c.l.b16 %v883
        %v1179 = vunpack.c.l.b16 %v884
        %v1180 = vunpack.c.l.b16 %v885
        %v1181 = vunpack.c.l.b16 %v886
        %v1182 = vunpack.c.l.b16 %v887
        %v1183 = vunpack.c.l.b16 %v888
        %v1184 = vunpack.c.l.b16 %v889
        %v1185 = vunpack.c.l.b16 %v890
        %v1186 = vunpack.c.l.b16 %v891
        %v1187 = vunpack.c.l.b16 %v892
        %v1188 = vunpack.c.l.b16 %v893
        %v1189 = vunpack.c.l.b16 %v894
        %v1190 = vunpack.c.l.b16 %v895
        %v1191 = vunpack.c.l.b16 %v896
        %v1192 = vunpack.c.l.b16 %v897
        %v1193 = vunpack.c.l.b16 %v898
        %v1194 = vunpack.c.l.b16 %v899
        %v1195 = vunpack.c.l.b16 %v900
        %v1196 = vunpack.c.l.b16 %v901
        %v1197 = vunpack.c.l.b16 %v902
        %v1198 = vunpack.c.l.b16 %v903
        %v1199 = vunpack.c.l.b16 %v904
        %v1200 = vunpack.c.l.b16 %v905
        %v1201 = vunpack.c.l.b16 %v906
        %v1202 = vunpack.c.l.b16 %v907
        %v1203 = vunpack.c.l.b16 %v908
        %v1204 = vunpack.c.l.b16 %v909
        %v1205 = vunpack.c.l.b16 %v910
        %v1206 = vunpack.c.l.b16 %v911
        %v1207 = vunpack.c.l.b16 %v912
        %v1208 = vunpack.c.l.b16 %v913
        %v1209 = vunpack.c.l.b16 %v914
        %v1210 = vunpack.c.l.b16 %v915
        %v1211 = vunpack.c.l.b16 %v916
        %v1212 = vunpack.c.l.b16 %v917
        %v1213 = vunpack.c.l.b16 %v918
        %v1214 = vunpack.c.l.b16 %v919
        %v1215 = vunpack.c.l.b16 %v920
        %v1216 = vunpack.c.l.b16 %v921
        %v1217 = vunpack.c.l.b16 %v922
        %v1218 = vunpack.c.l.b16 %v923
        %v1219 = vunpack.c.l.b16 %v924
        %v1220 = vunpack.c.l.b16 %v925
        %v1221 = vunpack.c.l.b16 %v926
        %v1222 = vunpack.c.l.b16 %v927
        %v1223 = vunpack.c.l.b16 %v928
        %v1224 = vunpack.c.l.b16 %v929
        %v1225 = vunpack.c.l.b16 %v930
        %v1226 = vunpack.c.l.b16 %v931
        %v1227 = vunpack.c.l.b16 %v932
        %v1228 = vunpack.c.l.b16 %v933
        %v1229 = vunpack.c.l.b16 %v934
        %v1230 = vunpack.c.l.b16 %v935
        %v1231 = vunpack.c.l.b16 %v936
        %v1232 = vunpack.c.l.b16 %v937
        %v1233 = vpack.c.b16 %v1090, %v1089
        %v1234 = vpack.c.b16 %v1092, %v1091
        %v1235 = vpack.c.b16 %v1094, %v1093
        %v1236 = vpack.c.b16 %v1096, %v1095
        %v1237 = vpack.c.b16 %v1098, %v1097
        %v1238 = vpack.c.b16 %v1100, %v1099
        %v1239 = vpack.c.b16 %v1102, %v1101
        %v1240 = vpack.c.b16 %v1104, %v1103
        %v1241 = vpack.c.b16 %v1106, %v1105
        %v1242 = vpack.c.b16 %v1108, %v1107
        %v1243 = vpack.c.b16 %v1110, %v1109
        %v1244 = vpack.c.b16 %v1112, %v1111
        %v1245 = vpack.c.b16 %v1114, %v1113
        %v1246 = vpack.c.b16 %v1116, %v1115
        %v1247 = vpack.c.b16 %v1118, %v1117
        %v1248 = vpack.c.b16 %v1120, %v1119
        %v1249 = vpack.c.b16 %v1122, %v1121
        %v1250 = vpack.c.b16 %v1124, %v1123
        %v1251 = vpack.c.b16 %v1126, %v1125
        %v1252 = vpack.c.b16 %v1128, %v1127
        %v1253 = vpack.c.b16 %v1130, %v1129
        %v1254 = vpack.c.b16 %v1132, %v1131
        %v1255 = vpack.c.b16 %v1134, %v1133
        %v1256 = vpack.c.b16 %v1136, %v1135
        %v1257 = vpack.c.b16 %v1138, %v1137
        %v1258 = vpack.c.b16 %v1140, %v1139
        %v1259 = vpack.c.b16 %v1142, %v1141
        %v1260 = vpack.c.b16 %v1144, %v1143
        %v1261 = vpack.c.b16 %v1146, %v1145
        %v1262 = vpack.c.b16 %v1148, %v1147
        %v1263 = vpack.c.b16 %v1150, %v1149
        %v1264 = vpack.c.b16 %v1152, %v1151
        %v1265 = vpack.c.b16 %v1154, %v1153
        %v1266 = vpack.c.b16 %v1156, %v1155
        %v1267 = vpack.c.b16 %v1158, %v1157
        %v1268 = vpack.c.b16 %v1160, %v1159
        %v1269 = vpack.c.b16 %v1162, %v1161
        %v1270 = vpack.c.b16 %v1164, %v1163
        %v1271 = vpack.c.b16 %v1166, %v1165
        %v1272 = vpack.c.b16 %v1168, %v1167
        %v1273 = vpack.c.b16 %v1170, %v1169
        %v1274 = vpack.c.b16 %v1172, %v1171
        %v1275 = vpack.c.b16 %v1174, %v1173
        %v1276 = vpack.c.b16 %v1176, %v1175
        %v1277 = vpack.c.b16 %v1178, %v1177
        %v1278 = vpack.c.b16 %v1180, %v1179
        %v1279 = vpack.c.b16 %v1182, %v1181
        %v1280 = vpack.c.b16 %v1184, %v1183
        %v1281 = vpack.c.b16 %v1186, %v1185
        %v1282 = vpack.c.b16 %v1188, %v1187
        %v1283 = vpack.c.b16 %v1190, %v1189
        %v1284 = vpack.c.b16 %v1192, %v1191
        %v1285 = vpack.c.b16 %v1194, %v1193
        %v1286 = vpack.c.b16 %v1196, %v1195
        %v1287 = vpack.c.b16 %v1198, %v1197
        %v1288 = vpack.c.b16 %v1200, %v1199
        %v1289 = vpack.c.b16 %v1202, %v1201
        %v1290 = vpack.c.b16 %v1204, %v1203
        %v1291 = vpack.c.b16 %v1206, %v1205
        %v1292 = vpack.c.b16 %v1208, %v1207
        %v1293 = vpack.c.b16 %v1210, %v1209
        %v1294 = vpack.c.b16 %v1212, %v1211
        %v1295 = vpack.c.b16 %v1214, %v1213
        %v1296 = vpack.c.b16 %v1216, %v1215
        %v1297 = vpack.c.b16 %v1218, %v1217
        %v1298 = vpack.c.b16 %v1220, %v1219
        %v1299 = vpack.c.b16 %v1222, %v1221
        %v1300 = vpack.c.b16 %v1224, %v1223
        %v1301 = vpack.c.b16 %v1226, %v1225
        %v1302 = vpack.c.b16 %v1228, %v1227
        %v1303 = vpack.c.b16 %v1230, %v1229
        %v1304 = vpack.c.b16 %v1232, %v1231
        %1377 = vmatprep.subr.bf16.mxu0 0
        %1378 = vmatpush1.bf16.msra.mxu0 %v1233
        %1379 = vmatprep.subr.bf16.mxu0 0
        %1380 = vmatpush1.bf16.msra.mxu0 %v1234
        %1381 = vmatprep.subr.bf16.mxu0 0
        %1382 = vmatpush1.bf16.msra.mxu0 %v1235
        %1383 = vmatprep.subr.bf16.mxu0 0
        %1384 = vmatpush1.bf16.msra.mxu0 %v1236
        %1385 = vmatprep.subr.bf16.mxu0 0
        %1386 = vmatpush1.bf16.msra.mxu0 %v1237
        %1387 = vmatprep.subr.bf16.mxu0 0
        %1388 = vmatpush1.bf16.msra.mxu0 %v1238
        %1389 = vmatprep.subr.bf16.mxu0 0
        %1390 = vmatpush1.bf16.msra.mxu0 %v1239
        %1391 = vmatprep.subr.bf16.mxu0 0
        %1392 = vmatpush1.bf16.msra.mxu0 %v1240
        %1393 = vmatprep.subr.bf16.mxu0 0
        %1394 = vmatpush1.bf16.msra.mxu0 %v1241
        %1395 = vmatprep.subr.bf16.mxu0 0
        %1396 = vmatpush1.bf16.msra.mxu0 %v1242
        %1397 = vmatprep.subr.bf16.mxu0 0
        %1398 = vmatpush1.bf16.msra.mxu0 %v1243
        %1399 = vmatprep.subr.bf16.mxu0 0
        %1400 = vmatpush1.bf16.msra.mxu0 %v1244
        %1401 = vmatprep.subr.bf16.mxu0 0
        %1402 = vmatpush1.bf16.msra.mxu0 %v1245
        %1403 = vmatprep.subr.bf16.mxu0 0
        %1404 = vmatpush1.bf16.msra.mxu0 %v1246
        %1405 = vmatprep.subr.bf16.mxu0 0
        %1406 = vmatpush1.bf16.msra.mxu0 %v1247
        %1407 = vmatprep.subr.bf16.mxu0 0
        %1408 = vmatpush1.bf16.msra.mxu0 %v1248
        %1409 = vmatprep.mubr.bf16.mxu0 %v749
        %1410 = vmatmul.mubr.bf16.gmra.mrb[0].mxu0 %v743
        %v1411 = vpop.f32.mrb[0].mxu0
        %v1412 = vadd.f32 %v943, %v1411
        %v1413 = vpop.f32.mrb[0].mxu0
        %v1414 = vpop.f32.mrb[0].mxu0
        %v1415 = vadd.f32 %v943, %v1414
        %v1416 = vpop.f32.mrb[0].mxu0
        %1417 = vmatprep.mubr.bf16.mxu0 %v750
        %1418 = vmatmul.mubr.bf16.gmra.mrb[0].mxu0 %v744
        %v1419 = vpop.f32.mrb[0].mxu0
        %v1420 = vadd.f32 %v943, %v1419
        %v1421 = vpop.f32.mrb[0].mxu0
        %v1422 = vpop.f32.mrb[0].mxu0
        %v1423 = vadd.f32 %v943, %v1422
        %v1424 = vpop.f32.mrb[0].mxu0
        %1425 = vdwg.mxu0
        %1426 = vmatprep.subr.bf16.mxu0 0
        %1427 = vmatpush1.bf16.msra.mxu0 %v1249
        %1428 = vmatprep.subr.bf16.mxu0 0
        %1429 = vmatpush1.bf16.msra.mxu0 %v1250
        %1430 = vmatprep.subr.bf16.mxu0 0
        %1431 = vmatpush1.bf16.msra.mxu0 %v1251
        %1432 = vmatprep.subr.bf16.mxu0 0
        %1433 = vmatpush1.bf16.msra.mxu0 %v1252
        %1434 = vmatprep.subr.bf16.mxu0 0
        %1435 = vmatpush1.bf16.msra.mxu0 %v1253
        %1436 = vmatprep.subr.bf16.mxu0 0
        %1437 = vmatpush1.bf16.msra.mxu0 %v1254
        %1438 = vmatprep.subr.bf16.mxu0 0
        %1439 = vmatpush1.bf16.msra.mxu0 %v1255
        %1440 = vmatprep.subr.bf16.mxu0 0
        %1441 = vmatpush1.bf16.msra.mxu0 %v1256
        %1442 = vmatprep.subr.bf16.mxu0 0
        %1443 = vmatpush1.bf16.msra.mxu0 %v1257
        %1444 = vmatprep.subr.bf16.mxu0 0
        %1445 = vmatpush1.bf16.msra.mxu0 %v1258
        %1446 = vmatprep.subr.bf16.mxu0 0
        %1447 = vmatpush1.bf16.msra.mxu0 %v1259
        %1448 = vmatprep.subr.bf16.mxu0 0
        %1449 = vmatpush1.bf16.msra.mxu0 %v1260
        %1450 = vmatprep.subr.bf16.mxu0 0
        %1451 = vmatpush1.bf16.msra.mxu0 %v1261
        %1452 = vmatprep.subr.bf16.mxu0 0
        %1453 = vmatpush1.bf16.msra.mxu0 %v1262
        %1454 = vmatprep.subr.bf16.mxu0 0
        %1455 = vmatpush1.bf16.msra.mxu0 %v1263
        %1456 = vmatprep.subr.bf16.mxu0 0
        %1457 = vmatpush1.bf16.msra.mxu0 %v1264
        %1458 = vmatprep.mubr.bf16.mxu0 %v761
        %1459 = vmatmul.mubr.bf16.gmra.mrb[0].mxu0 %v755
        %v1460 = vpop.f32.mrb[0].mxu0
        %v1461 = vadd.f32 %v1412, %v1460
        %v1462 = vpop.f32.mrb[0].mxu0
        %v1463 = vpop.f32.mrb[0].mxu0
        %v1464 = vadd.f32 %v1415, %v1463
        %v1465 = vpop.f32.mrb[0].mxu0
        %1466 = vmatprep.mubr.bf16.mxu0 %v762
        %1467 = vmatmul.mubr.bf16.gmra.mrb[0].mxu0 %v756
        %v1468 = vpop.f32.mrb[0].mxu0
        %v1469 = vadd.f32 %v1420, %v1468
        %v1470 = vpop.f32.mrb[0].mxu0
        %v1471 = vpop.f32.mrb[0].mxu0
        %v1472 = vadd.f32 %v1423, %v1471
        %v1473 = vpop.f32.mrb[0].mxu0
        %1474 = vdwg.mxu0
        %1475 = vmatprep.subr.bf16.mxu0 0
        %1476 = vmatpush1.bf16.msra.mxu0 %v1265
        %1477 = vmatprep.subr.bf16.mxu0 0
        %1478 = vmatpush1.bf16.msra.mxu0 %v1266
        %1479 = vmatprep.subr.bf16.mxu0 0
        %1480 = vmatpush1.bf16.msra.mxu0 %v1267
        %1481 = vmatprep.subr.bf16.mxu0 0
        %1482 = vmatpush1.bf16.msra.mxu0 %v1268
        %1483 = vmatprep.subr.bf16.mxu0 0
        %1484 = vmatpush1.bf16.msra.mxu0 %v1269
        %1485 = vmatprep.subr.bf16.mxu0 0
        %1486 = vmatpush1.bf16.msra.mxu0 %v1270
        %1487 = vmatprep.subr.bf16.mxu0 0
        %1488 = vmatpush1.bf16.msra.mxu0 %v1271
        %1489 = vmatprep.subr.bf16.mxu0 0
        %1490 = vmatpush1.bf16.msra.mxu0 %v1272
        %1491 = vmatprep.subr.bf16.mxu0 0
        %1492 = vmatpush1.bf16.msra.mxu0 %v1273
        %1493 = vmatprep.subr.bf16.mxu0 0
        %1494 = vmatpush1.bf16.msra.mxu0 %v1274
        %1495 = vmatprep.subr.bf16.mxu0 0
        %1496 = vmatpush1.bf16.msra.mxu0 %v1275
        %1497 = vmatprep.subr.bf16.mxu0 0
        %1498 = vmatpush1.bf16.msra.mxu0 %v1276
        %1499 = vmatprep.subr.bf16.mxu0 0
        %1500 = vmatpush1.bf16.msra.mxu0 %v1277
        %1501 = vmatprep.subr.bf16.mxu0 0
        %1502 = vmatpush1.bf16.msra.mxu0 %v1278
        %1503 = vmatprep.subr.bf16.mxu0 0
        %1504 = vmatpush1.bf16.msra.mxu0 %v1279
        %1505 = vmatprep.subr.bf16.mxu0 0
        %1506 = vmatpush1.bf16.msra.mxu0 %v1280
        %1507 = vmatprep.mubr.bf16.mxu0 %v773
        %1508 = vmatmul.mubr.bf16.gmra.mrb[0].mxu0 %v767
        %v1509 = vpop.f32.mrb[0].mxu0
        %v1510 = vadd.f32 %v1461, %v1509
        %v1511 = vpop.f32.mrb[0].mxu0
        %v1512 = vpop.f32.mrb[0].mxu0
        %v1513 = vadd.f32 %v1464, %v1512
        %v1514 = vpop.f32.mrb[0].mxu0
        %1515 = vmatprep.mubr.bf16.mxu0 %v774
        %1516 = vmatmul.mubr.bf16.gmra.mrb[0].mxu0 %v768
        %v1517 = vpop.f32.mrb[0].mxu0
        %v1518 = vadd.f32 %v1469, %v1517
        %v1519 = vpop.f32.mrb[0].mxu0
        %v1520 = vpop.f32.mrb[0].mxu0
        %v1521 = vadd.f32 %v1472, %v1520
        %v1522 = vpop.f32.mrb[0].mxu0
        %1523 = vdwg.mxu0
        %1524 = vmatprep.subr.bf16.mxu0 0
        %1525 = vmatpush1.bf16.msra.mxu0 %v1281
        %1526 = vmatprep.subr.bf16.mxu0 0
        %1527 = vmatpush1.bf16.msra.mxu0 %v1282
        %1528 = vmatprep.subr.bf16.mxu0 0
        %1529 = vmatpush1.bf16.msra.mxu0 %v1283
        %1530 = vmatprep.subr.bf16.mxu0 0
        %1531 = vmatpush1.bf16.msra.mxu0 %v1284
        %1532 = vmatprep.subr.bf16.mxu0 0
        %1533 = vmatpush1.bf16.msra.mxu0 %v1285
        %1534 = vmatprep.subr.bf16.mxu0 0
        %1535 = vmatpush1.bf16.msra.mxu0 %v1286
        %1536 = vmatprep.subr.bf16.mxu0 0
        %1537 = vmatpush1.bf16.msra.mxu0 %v1287
        %1538 = vmatprep.subr.bf16.mxu0 0
        %1539 = vmatpush1.bf16.msra.mxu0 %v1288
        %1540 = vmatprep.subr.bf16.mxu0 0
        %1541 = vmatpush1.bf16.msra.mxu0 %v1289
        %1542 = vmatprep.subr.bf16.mxu0 0
        %1543 = vmatpush1.bf16.msra.mxu0 %v1290
        %1544 = vmatprep.subr.bf16.mxu0 0
        %1545 = vmatpush1.bf16.msra.mxu0 %v1291
        %1546 = vmatprep.subr.bf16.mxu0 0
        %1547 = vmatpush1.bf16.msra.mxu0 %v1292
        %1548 = vmatprep.subr.bf16.mxu0 0
        %1549 = vmatpush1.bf16.msra.mxu0 %v1293
        %1550 = vmatprep.subr.bf16.mxu0 0
        %1551 = vmatpush1.bf16.msra.mxu0 %v1294
        %1552 = vmatprep.subr.bf16.mxu0 0
        %1553 = vmatpush1.bf16.msra.mxu0 %v1295
        %1554 = vmatprep.subr.bf16.mxu0 0
        %1555 = vmatpush1.bf16.msra.mxu0 %v1296
        %1556 = vmatprep.mubr.bf16.mxu0 %v786
        %1557 = vmatmul.mubr.bf16.gmra.mrb[0].mxu0 %v780
        %v1558 = vpop.f32.mrb[0].mxu0
        %v1559 = vadd.f32 %v1510, %v1558
        %v1560 = vpop.f32.mrb[0].mxu0
        %v1561 = vpop.f32.mrb[0].mxu0
        %v1562 = vadd.f32 %v1513, %v1561
        %v1563 = vpop.f32.mrb[0].mxu0
        %1564 = vmatprep.mubr.bf16.mxu0 %v787
        %1565 = vmatmul.mubr.bf16.gmra.mrb[0].mxu0 %v781
        %v1566 = vpop.f32.mrb[0].mxu0
        %v1567 = vadd.f32 %v1518, %v1566
        %v1568 = vpop.f32.mrb[0].mxu0
        %v1569 = vpop.f32.mrb[0].mxu0
        %v1570 = vadd.f32 %v1521, %v1569
        %v1571 = vpop.f32.mrb[0].mxu0
        %1572 = vdwg.mxu0
        %1573 = vmatprep.subr.bf16.mxu0 0
        %1574 = vmatpush1.bf16.msra.mxu0 %v1297
        %1575 = vmatprep.subr.bf16.mxu0 0
        %1576 = vmatpush1.bf16.msra.mxu0 %v1298
        %1577 = vmatprep.subr.bf16.mxu0 0
        %1578 = vmatpush1.bf16.msra.mxu0 %v1299
        %1579 = vmatprep.subr.bf16.mxu0 0
        %1580 = vmatpush1.bf16.msra.mxu0 %v1300
        %1581 = vmatprep.subr.bf16.mxu0 0
        %1582 = vmatpush1.bf16.msra.mxu0 %v1301
        %1583 = vmatprep.subr.bf16.mxu0 0
        %1584 = vmatpush1.bf16.msra.mxu0 %v1302
        %1585 = vmatprep.subr.bf16.mxu0 0
        %1586 = vmatpush1.bf16.msra.mxu0 %v1303
        %1587 = vmatprep.subr.bf16.mxu0 0
        %1588 = vmatpush1.bf16.msra.mxu0 %v1304
        %1589 = vmatprep.subr.bf16.mxu0 0
        %1590 = vmatpush1.bf16.msra.mxu0 0
        %1591 = vmatprep.subr.bf16.mxu0 0
        %1592 = vmatpush1.bf16.msra.mxu0 0
        %1593 = vmatprep.subr.bf16.mxu0 0
        %1594 = vmatpush1.bf16.msra.mxu0 0
        %1595 = vmatprep.subr.bf16.mxu0 0
        %1596 = vmatpush1.bf16.msra.mxu0 0
        %1597 = vmatprep.subr.bf16.mxu0 0
        %1598 = vmatpush1.bf16.msra.mxu0 0
        %1599 = vmatprep.subr.bf16.mxu0 0
        %1600 = vmatpush1.bf16.msra.mxu0 0
        %1601 = vmatprep.subr.bf16.mxu0 0
        %1602 = vmatpush1.bf16.msra.mxu0 0
        %1603 = vmatprep.subr.bf16.mxu0 0
        %1604 = vmatpush1.bf16.msra.mxu0 0
        %1605 = vmatprep.mubr.bf16.mxu0 0
        %1606 = vmatmul.mubr.bf16.gmra.mrb[0].mxu0 %v792
        %v1607 = vpop.f32.mrb[0].mxu0
        %v1608 = vadd.f32 %v1559, %v1607
        %v1609 = vpop.f32.mrb[0].mxu0
        %v1610 = vpop.f32.mrb[0].mxu0
        %v1611 = vadd.f32 %v1562, %v1610
        %v1612 = vpop.f32.mrb[0].mxu0
        %1613 = vmatprep.mubr.bf16.mxu0 0
        %1614 = vmatmul.mubr.bf16.gmra.mrb[0].mxu0 %v793
        %v1615 = vpop.f32.mrb[0].mxu0
        %v1616 = vadd.f32 %v1567, %v1615
        %v1617 = vpop.f32.mrb[0].mxu0
        %v1618 = vpop.f32.mrb[0].mxu0
        %v1619 = vadd.f32 %v1570, %v1618
        %v1620 = vpop.f32.mrb[0].mxu0
        %1621 = vdwg.mxu0
        %1622 = vst [vmem:[%s502] sm:$0xff] %v1608
        %1623 = vst [vmem:[%s502 + $0x8] sm:$0xff] %v1611
        %1624 = vst [vmem:[%s502 + $0x10] sm:$0xff] %v1616
        %1625 = vst [vmem:[%s502 + $0x18] sm:$0xff] %v1619
        %v1626 = vadd.f32 %v1608, %v1611
        %v1627 = vadd.f32 %v1626, %v1616
        %v1628 = vadd.f32 %v1627, %v1619
        %v1629 = vrot.slane %v1628, 4
        %v1630 = vadd.f32 %v1628, %v1629
        %v1631 = vrot.slane %v1630, 2
        %v1632 = vadd.f32 %v1630, %v1631
        %v1633 = vrot.slane %v1632, 1
        %v1634 = vadd.f32 %v1632, %v1633
        %v1635 = vmul.f32 %v1608, %v1608
        %v1636 = vmul.f32 %v1611, %v1611
        %v1637 = vmul.f32 %v1616, %v1616
        %v1638 = vmul.f32 %v1619, %v1619
        %v1639 = vadd.f32 %v1635, %v1636
        %v1640 = vadd.f32 %v1639, %v1637
        %v1641 = vadd.f32 %v1640, %v1638
        %v1642 = vrot.slane %v1641, 4
        %v1643 = vadd.f32 %v1641, %v1642
        %v1644 = vrot.slane %v1643, 2
        %v1645 = vadd.f32 %v1643, %v1644
        %v1646 = vrot.slane %v1645, 1
        %v1647 = vadd.f32 %v1645, %v1646
        %vm1648 = vcmask 1040384
        %v1649 = vsel %vm1648, %v1634, %v1647
        %1650 = vst [vmem:[%s509] sm:$0x3] %v1649
        %s1651 = sand.u32 %s240, 1
        %s1652 = scalar_lea.sflag [#allocation5], %s1651
        %s1653 = sand.u32 %s240, 1
        %s1654 = smul.addr %s1653, 32
        %s1655 = scalar_lea.vmem [#allocation15], %s1654
        %s1656 = sand.u32 %s268, 1
        %s1657 = scalar_lea.sflag [#allocation17], %s1656
        %s1658 = sand.u32 %s268, 1
        %s1659 = smul.addr %s1658, 2
        %s1660 = scalar_lea.vmem [#allocation16], %s1659
        // Predicated region
        $region77: #{skipmodule_forward.4} parent=47 // pred_check
          %p1661 = pneg %p250
        $region78: #{skipmodule_forward.4} parent=47 // pred_check_branch
          %1663 = sbr.rel (%p1661) target = $region80
        $region79: #{skipmodule_forward.4} parent=47 // pred_region
          %s1664 = smul.u32 4, %s39
          %s1666 = ssub.s32 512, 512
          %1667 = vsyncadd %s1652, %s1666
          %s1668 = smul.addr %s38, 8
          %s1669 = sadd.s32 %s1664, %s1668
          %s1670 = smul.addr %s1669, 128
          %s1671 = scalar_lea.hbm %s7, %s1670
          %s1672 = sshll.u32 %s1655, 4
          %s1673 = int_to_ptr.vmem [resolvable:$true] %s1672
          %1678 = dma.vmem_to_hbm [thread:$0]  %s1673, 512, %s1671, %s1652, 128, 128, 8
        $region80: #{skipmodule_forward.4} parent=47 // pred_fallthru
          _
        // Predicated region
        $region81: #{skipmodule_forward.4} parent=47 // pred_check
          %p1679 = pneg %p278
        $region82: #{skipmodule_forward.4} parent=47 // pred_check_branch
          %1681 = sbr.rel (%p1679) target = $region84
        $region83: #{skipmodule_forward.4} parent=47 // pred_region
          %s1683 = ssub.s32 32, 32
          %1684 = vsyncadd %s1657, %s1683
          %s1685 = smul.addr %s38, 2
          %s1686 = sadd.s32 %s39, %s1685
          %s1687 = smul.addr %s1686, 32
          %s1688 = scalar_lea.hbm %s8, %s1687
          %s1690 = sshll.u32 %s1660, 4
          %s1691 = int_to_ptr.vmem [resolvable:$true] %s1690
          %1693 = dma.vmem_to_hbm [thread:$0]  %s1691, 32, %s1688, %s1657
        $region84: #{skipmodule_forward.4} parent=47 // pred_fallthru
          _
      $region48: #{skipmodule_forward.4} parent=5 // pred_fallthru
        _
      %p1694 = scmp.le.s32.totalorder 2, %s29
      // Predicated region
      $region85: #{skipmodule_forward.4} parent=5 // pred_check
        %p1695 = pneg %p1694
      $region86: #{skipmodule_forward.4} parent=5 // pred_check_branch
        %1697 = sbr.rel (%p1695) target = $region88
      $region87: #{skipmodule_forward.4} parent=5 // pred_region
        %s1698 = ssub.s32 %s29, 2
        // Predicated region
        $region89: #{skipmodule_forward.4} parent=87 // pred_check
          %p1699 = pneg %p256
        $region90: #{skipmodule_forward.4} parent=87 // pred_check_branch
          %1701 = sbr.rel (%p1699) target = $region92
        $region91: #{skipmodule_forward.4} parent=87 // pred_region
          %s1702 = sand.u32 %s241, 1
          %s1703 = scalar_lea.sflag [#allocation5], %s1702
          %s1704 = sand.u32 %s241, 1
          %s1705 = smul.addr %s1704, 32
          %s1706 = scalar_lea.vmem [#allocation15], %s1705
          %1707 = dma.done %s1703, 512
        $region92: #{skipmodule_forward.4} parent=87 // pred_fallthru
          _
        // Predicated region
        $region93: #{skipmodule_forward.4} parent=87 // pred_check
          %p1708 = pneg %p284
        $region94: #{skipmodule_forward.4} parent=87 // pred_check_branch
          %1710 = sbr.rel (%p1708) target = $region96
        $region95: #{skipmodule_forward.4} parent=87 // pred_region
          %s1711 = sand.u32 %s269, 1
          %s1712 = scalar_lea.sflag [#allocation17], %s1711
          %s1713 = sand.u32 %s269, 1
          %s1714 = smul.addr %s1713, 2
          %s1715 = scalar_lea.vmem [#allocation16], %s1714
          %1716 = dma.done %s1712, 32
        $region96: #{skipmodule_forward.4} parent=87 // pred_fallthru
          _
      $region88: #{skipmodule_forward.4} parent=5 // pred_fallthru
        _
    $region6: #{skipmodule_forward.4} parent=1 // loop_footer
      %s33 = sadd.s32 1, %s29
    $region7: #{skipmodule_forward.4} parent=1 // loop_footer_branch
      %28 = sbr.rel target = $region3
    $region8: #{skipmodule_forward.4} parent=1 // loop_exit
      _
    %1717 = vsyncpa [#allocation4], 1
    %s1718 = scalar_lea.sflag [#allocation4], 1
    %1719 = vsyncpa %s1718, 1
    %1720 = vsyncpa [#allocation7], 1
    %s1721 = scalar_lea.sflag [#allocation7], 1
    %1722 = vsyncpa %s1721, 1
    %1723 = vsyncpa [#allocation10], 1
    %1724 = vsyncpa [#allocation13], 1
    %1725 = vsyncpa [#allocation5], 1
    %s1726 = scalar_lea.sflag [#allocation5], 1
    %1727 = vsyncpa %s1726, 1
    %1728 = vsyncpa [#allocation17], 1
    %s1729 = scalar_lea.sflag [#allocation17], 1
    %1730 = vsyncpa %s1729, 1

</llo_original>
